<compile_context>
chip_gen: v7x
topology: tpu7x:2x2x1
jax: 0.10.0
libtpu: 0.0.40
codegen_flags: <defaults>
</compile_context>

<pallas_src>
import math

import jax
import jax.numpy as jnp
from jax import lax
from jax.experimental import pallas as pl
from jax.experimental.pallas import tpu as pltpu


def _rnn_actor_wavefront_kernel(
    x_ref,                     # (S*B, D)        bf16   time-major flattened input
    w1_ref, b1_ref,            # (D, Hf) bf16, (1, Hf) f32
    wih0_ref, bx0_ref,         # (Hf, 3*Hp) bf16, (1, 3*Hp) f32   layer-0 input gates
    wa_ref,                    # (H, 6*Hp)  bf16   [whh0_pad | wih1_pad] fused
    bx1_ref,                   # (1, 3*Hp)  f32    layer-1 input bias (r/z fold)
    whh1_ref,                  # (H, 3*Hp)  bf16
    bn0_ref, bn1_ref,          # (1, Hp) f32       n-gate recurrent biases
    h0_ref,                    # (L, B, Hp) f32    padded initial hidden
    w2_ref, b2_ref,            # (Hp, Ap) bf16, (1, Ap) f32
    logits_ref,                # out: (S*B, Ap) f32   lane-dense (padded) logits
    hn_ref,                    # out: (L, B, Hp) f32  padded final hidden
    gx0_buf,                   # scratch: (S*B, 3*Hp) f32  hoisted layer-0 gates
):
    f32, bf16 = jnp.float32, jnp.bfloat16
    Hp = bn0_ref.shape[1]            # padded per-gate width (128)
    H = wa_ref.shape[0]              # true rnn hidden width
    B = h0_ref.shape[1]
    S = x_ref.shape[0] // B
    G = 3 * Hp

    # ---------------- fc1 + ReLU: one hoisted matmul, result stays in vregs --
    seq0 = jnp.maximum(
        jnp.dot(x_ref[...], w1_ref[...], preferred_element_type=f32)
        + b1_ref[...], 0.0)                                        # (S*B, Hf) f32

    # ---------------- layer-0 input gates for the whole sequence -------------
    # (r/z recurrent bias pre-folded, gate blocks 128-lane padded); ONE
    # contiguous lane-dense store into VMEM scratch.
    gx0_buf[...] = jnp.dot(seq0.astype(bf16), wih0_ref[...],
                           preferred_element_type=f32) + bx0_ref[...]

    # Hoisted constants (no per-step broadcasts / bias adds).
    bn0 = jnp.broadcast_to(bn0_ref[...], (B, Hp))
    bn1 = jnp.broadcast_to(bn1_ref[...], (B, Hp))
    bx1 = bx1_ref[...]

    def gru_gates(gx, ghh, bn, h):
        # All slices are 128-lane tile aligned -> free vreg selections.
        r = jax.nn.sigmoid(gx[:, 0:Hp] + ghh[:, 0:Hp])
        z = jax.nn.sigmoid(gx[:, Hp:2 * Hp] + ghh[:, Hp:2 * Hp])
        n = jnp.tanh(gx[:, 2 * Hp:3 * Hp] + r * (ghh[:, 2 * Hp:3 * Hp] + bn))
        return (1.0 - z) * n + z * h

    h0 = h0_ref[0]                   # (B, Hp) f32, padded
    h1 = h0_ref[1]
    h1_outs = []

    # ---------------- wavefronted 2-layer GRU recurrence ---------------------
    # Step w runs layer-0 step t=w and layer-1 step t=w-1.  mmA and mmB are
    # independent of each other, so the two per-layer chains interleave and
    # one layer's EUP/VPU gate math hides under the other's MXU push.
    for w in range(S + 1):           # fully unrolled (S is small & static)
        # mmA: h0_{w-1} @ [whh0 | wih1] -> layer-0 GHH and layer-1 raw GX.
        mmA = jnp.dot(h0[:, :H].astype(bf16), wa_ref[...],
                      preferred_element_type=f32)                  # (B, 2G)
        if w >= 1:
            # mmB: h1_{w-2} @ whh1 (independent of mmA).
            mmB = jnp.dot(h1[:, :H].astype(bf16), whh1_ref[...],
                          preferred_element_type=f32)              # (B, G)
            gx1 = mmA[:, G:2 * G] + bx1
            h1 = gru_gates(gx1, mmB, bn1, h1)
            h1_outs.append(h1)                                     # h1_{w-1}
        if w < S:
            gx0 = gx0_buf[pl.ds(w * B, B), :]      # static, sublane-aligned slice
            h0 = gru_gates(gx0, mmA[:, 0:G], bn0, h0)

    # ---------------- fc2 on all layer-1 outputs at once ---------------------
    out_h1 = jnp.concatenate(h1_outs, axis=0)                      # (S*B, Hp) f32
    logits_ref[...] = (
        jnp.dot(out_h1.astype(bf16), w2_ref[...], preferred_element_type=f32)
        + b2_ref[...])                                             # lane-dense store
    hn_ref[0] = h0
    hn_ref[1] = h1


def _pad_gate_cols(w, H, Hp):
    """(rows, 3H) -> (rows, 3*Hp) with gate g placed at columns [g*Hp, g*Hp+H)."""
    rows = w.shape[0]
    out = jnp.zeros((rows, 3 * Hp), w.dtype)
    for g in range(3):
        out = out.at[:, g * Hp:g * Hp + H].set(w[:, g * H:(g + 1) * H])
    return out


def multilayer_rnn_actor_forward(params, x, hidden_state=None):
    """x: (batch, seq, input_dim); hidden_state: reshapable to (L, B, H) or None."""
    B, S, D = x.shape
    Hf = params["w1"].shape[1]
    H = params["whh0"].shape[0]
    A = params["w2"].shape[1]
    L = 2                                # kernel is specialized to 2 GRU layers
    Hp = 128                             # per-gate lane-tile padding
    Ap = ((A + 127) // 128) * 128        # lane-dense logits width
    f32, bf16 = jnp.float32, jnp.bfloat16

    if hidden_state is None:
        h0 = jnp.zeros((L, B, H), f32)
    else:
        h0 = hidden_state.reshape(L, B, H).astype(f32)
    h0_p = jnp.zeros((L, B, Hp), f32).at[..., :H].set(h0)

    # Time-major flatten: every in-kernel matmul is one big MXU push and every
    # store is a contiguous block.  Matmul operands are bf16, math stays f32.
    x_flat = jnp.transpose(x.astype(f32), (1, 0, 2)).reshape(S * B, D).astype(bf16)

    w1 = params["w1"].astype(bf16)
    b1 = params["b1"].astype(f32)

    def layer_prep(l):
        wih = _pad_gate_cols(params[f"wih{l}"], H, Hp).astype(bf16)
        whh = _pad_gate_cols(params[f"whh{l}"], H, Hp).astype(bf16)
        bih, bhh = params[f"bih{l}"], params[f"bhh{l}"]
        # Fold r/z recurrent bias into the input-side bias (exact); n-gate b_hh
        # must stay inside the r*(.) product.
        brz = jnp.concatenate([bhh[:, :2 * H], jnp.zeros((1, H), f32)], axis=1)
        bx = _pad_gate_cols(bih + brz, H, Hp).astype(f32)
        bn = jnp.zeros((1, Hp), f32).at[:, :H].set(bhh[:, 2 * H:])
        return wih, whh, bx, bn

    wih0_p, whh0_p, bx0, bn0 = layer_prep(0)
    wih1_p, whh1_p, bx1, bn1 = layer_prep(1)
    wa = jnp.concatenate([whh0_p, wih1_p], axis=1)        # (H, 6*Hp) bf16

    w2_p = jnp.zeros((Hp, Ap), f32).at[:H, :A].set(params["w2"]).astype(bf16)
    b2_p = jnp.zeros((1, Ap), f32).at[:, :A].set(params["b2"])

    vmem = lambda: pl.BlockSpec(memory_space=pltpu.MemorySpace.VMEM)
    kernel = pl.pallas_call(
        _rnn_actor_wavefront_kernel,
        out_shape=(jax.ShapeDtypeStruct((S * B, Ap), f32),
                   jax.ShapeDtypeStruct((L, B, Hp), f32)),
        in_specs=[vmem() for _ in range(13)],
        out_specs=(vmem(), vmem()),
        scratch_shapes=[pltpu.VMEM((S * B, 3 * Hp), f32)],
    )
    logits_pad, hn_pad = kernel(
        x_flat, w1, b1,
        wih0_p, bx0,
        wa, bx1, whh1_p,
        bn0, bn1,
        h0_p,
        w2_p, b2_p,
    )
    logits = jnp.transpose(logits_pad[:, :A].reshape(S, B, A), (1, 0, 2))  # (B,S,A)
    hn = hn_pad[..., :H]                                                    # (L,B,H)
    return logits, hn


def init_params(key, input_dim, fc_hidden_dim, rnn_hidden_dim, rnn_num_layers, n_actions):
    """Deterministic init mimicking PyTorch uniform(-1/sqrt(fan), 1/sqrt(fan))."""
    assert rnn_num_layers == 2, "kernel specialized to 2 GRU layers"
    ks = jax.random.split(key, 12)

    def unif(k, shape, fan_in):
        b = 1.0 / math.sqrt(fan_in)
        return jax.random.uniform(k, shape, jnp.float32, -b, b)

    H, Hf = rnn_hidden_dim, fc_hidden_dim
    return {
        "w1": unif(ks[0], (input_dim, Hf), input_dim),
        "b1": unif(ks[1], (1, Hf), input_dim),
        "wih0": unif(ks[2], (Hf, 3 * H), H),
        "whh0": unif(ks[3], (H, 3 * H), H),
        "bih0": unif(ks[4], (1, 3 * H), H),
        "bhh0": unif(ks[5], (1, 3 * H), H),
        "wih1": unif(ks[6], (H, 3 * H), H),
        "whh1": unif(ks[7], (H, 3 * H), H),
        "bih1": unif(ks[8], (1, 3 * H), H),
        "bhh1": unif(ks[9], (1, 3 * H), H),
        "w2": unif(ks[10], (H, n_actions), H),
        "b2": unif(ks[11], (1, n_actions), H),
    }


def reference_forward(params, x, hidden_state=None):
    """Pure-JAX, exact-f32 reference matching PyTorch GRU semantics (batch_first)."""
    hp = lax.Precision.HIGHEST
    B, S, _ = x.shape
    H = params["whh0"].shape[0]
    L = 2
    h0 = (jnp.zeros((L, B, H), jnp.float32) if hidden_state is None
          else hidden_state.reshape(L, B, H).astype(jnp.float32))
    seq = jnp.maximum(
        jnp.einsum("bsd,dh->bsh", x, params["w1"], precision=hp) + params["b1"][0], 0.0)
    hn = []
    for l in range(L):
        wih, whh = params[f"wih{l}"], params[f"whh{l}"]
        bih, bhh = params[f"bih{l}"][0], params[f"bhh{l}"][0]
        h = h0[l]
        outs = []
        for t in range(S):
            gx = jnp.dot(seq[:, t], wih, precision=hp) + bih
            gh = jnp.dot(h, whh, precision=hp) + bhh
            r = jax.nn.sigmoid(gx[:, :H] + gh[:, :H])
            z = jax.nn.sigmoid(gx[:, H:2 * H] + gh[:, H:2 * H])
            n = jnp.tanh(gx[:, 2 * H:] + r * gh[:, 2 * H:])
            h = (1.0 - z) * n + z * h
            outs.append(h)
        seq = jnp.stack(outs, axis=1)
        hn.append(h)
    logits = jnp.einsum("bsh,ha->bsa", seq, params["w2"], precision=hp) + params["b2"][0]
    return logits, jnp.stack(hn, axis=0)


if __name__ == "__main__":
    batch, seq = 8, 6
    input_dim, fc_hidden, rnn_hidden, n_layers, n_actions = 20, 32, 32, 2, 7

    key = jax.random.PRNGKey(0)
    kp, kx, kh = jax.random.split(key, 3)
    params = init_params(kp, input_dim, fc_hidden, rnn_hidden, n_layers, n_actions)
    x = jax.random.normal(kx, (batch, seq, input_dim), jnp.float32)
    h0 = 0.1 * jax.random.normal(kh, (n_layers, batch, rnn_hidden), jnp.float32)

    fwd = jax.jit(multilayer_rnn_actor_forward)
    logits, hn = fwd(params, x, h0)
    jax.block_until_ready((logits, hn))

    ref_logits, ref_hn = reference_forward(params, x, h0)
    assert logits.shape == (batch, seq, n_actions)
    assert hn.shape == (n_layers, batch, rnn_hidden)
    # Kernel matmul operands are explicitly bf16 (single-pass MXU pushes, per
    # perf review) with f32 accumulation and f32 gate math; tolerance covers
    # bf16 weight/input quantization plus 6-step recurrence compounding against
    # the exact-f32 reference above.
    assert jnp.allclose(logits, ref_logits, atol=3e-2, rtol=3e-2), "logits mismatch"
    assert jnp.allclose(hn, ref_hn, atol=3e-2, rtol=3e-2), "hidden state mismatch"

    print("KERNEL_OK")
</pallas_src>

<mosaic_0001>
module attributes {stable_mosaic.version = 11 : i64} {
  func.func @_rnn_actor_wavefront_kernel(%arg0: memref<48x20xbf16, #tpu.memory_space<vmem>>, %arg1: memref<20x32xbf16, #tpu.memory_space<vmem>>, %arg2: memref<1x32xf32, #tpu.memory_space<vmem>>, %arg3: memref<32x384xbf16, #tpu.memory_space<vmem>>, %arg4: memref<1x384xf32, #tpu.memory_space<vmem>>, %arg5: memref<32x768xbf16, #tpu.memory_space<vmem>>, %arg6: memref<1x384xf32, #tpu.memory_space<vmem>>, %arg7: memref<32x384xbf16, #tpu.memory_space<vmem>>, %arg8: memref<1x128xf32, #tpu.memory_space<vmem>>, %arg9: memref<1x128xf32, #tpu.memory_space<vmem>>, %arg10: memref<2x8x128xf32, #tpu.memory_space<vmem>>, %arg11: memref<128x128xbf16, #tpu.memory_space<vmem>>, %arg12: memref<1x128xf32, #tpu.memory_space<vmem>>, %arg13: memref<48x128xf32, #tpu.memory_space<vmem>>, %arg14: memref<2x8x128xf32, #tpu.memory_space<vmem>>, %arg15: memref<48x384xf32, #tpu.memory_space<vmem>>) attributes {dimension_semantics = [], scalar_prefetch = 0 : i64, scratch_operands = 1 : i64, tpu.core_type = #tpu.core_type<tc>} {
    %c0 = arith.constant 0 : index
    %c0_0 = arith.constant 0 : index
    %0 = vector.load %arg0[%c0, %c0_0] : memref<48x20xbf16, #tpu.memory_space<vmem>>, vector<48x20xbf16>
    %c0_1 = arith.constant 0 : index
    %c0_2 = arith.constant 0 : index
    %1 = vector.load %arg1[%c0_1, %c0_2] : memref<20x32xbf16, #tpu.memory_space<vmem>>, vector<20x32xbf16>
    %cst = arith.constant dense<0.000000e+00> : vector<48x32xf32>
    %2 = tpu.matmul %0, %1, %cst {dimension_numbers = #tpu.dot_dimension_numbers<[1], [0], [0], [1], [0, 0, 1, 1], [], []>} : vector<48x20xbf16>, vector<20x32xbf16>, vector<48x32xf32> -> vector<48x32xf32>
    %c0_3 = arith.constant 0 : index
    %c0_4 = arith.constant 0 : index
    %3 = vector.load %arg2[%c0_3, %c0_4] : memref<1x32xf32, #tpu.memory_space<vmem>>, vector<1x32xf32>
    %4 = vector.broadcast %3 : vector<1x32xf32> to vector<48x32xf32>
    %5 = arith.addf %2, %4 : vector<48x32xf32>
    %cst_5 = arith.constant 0.000000e+00 : f32
    %6 = vector.broadcast %cst_5 : f32 to vector<48x32xf32>
    %7 = arith.maximumf %5, %6 : vector<48x32xf32>
    %8 = arith.truncf %7 : vector<48x32xf32> to vector<48x32xbf16>
    %c0_6 = arith.constant 0 : index
    %c0_7 = arith.constant 0 : index
    %9 = vector.load %arg3[%c0_6, %c0_7] : memref<32x384xbf16, #tpu.memory_space<vmem>>, vector<32x384xbf16>
    %cst_8 = arith.constant dense<0.000000e+00> : vector<48x384xf32>
    %10 = tpu.matmul %8, %9, %cst_8 {dimension_numbers = #tpu.dot_dimension_numbers<[1], [0], [0], [1], [0, 0, 1, 1], [], []>} : vector<48x32xbf16>, vector<32x384xbf16>, vector<48x384xf32> -> vector<48x384xf32>
    %c0_9 = arith.constant 0 : index
    %c0_10 = arith.constant 0 : index
    %11 = vector.load %arg4[%c0_9, %c0_10] : memref<1x384xf32, #tpu.memory_space<vmem>>, vector<1x384xf32>
    %12 = vector.broadcast %11 : vector<1x384xf32> to vector<48x384xf32>
    %13 = arith.addf %10, %12 : vector<48x384xf32>
    %c0_11 = arith.constant 0 : index
    %c0_12 = arith.constant 0 : index
    %14 = vector.load %arg15[%c0_11, %c0_12] : memref<48x384xf32, #tpu.memory_space<vmem>>, vector<48x384xf32>
    tpu.vector_store %arg15[%c0_11, %c0_12], %13 {strides = array<i32>} : memref<48x384xf32, #tpu.memory_space<vmem>>, vector<48x384xf32>,
    %c0_13 = arith.constant 0 : index
    %c0_14 = arith.constant 0 : index
    %15 = vector.load %arg8[%c0_13, %c0_14] : memref<1x128xf32, #tpu.memory_space<vmem>>, vector<1x128xf32>
    %16 = vector.shape_cast %15 : vector<1x128xf32> to vector<1x128xf32>
    %17 = vector.broadcast %16 : vector<1x128xf32> to vector<8x128xf32>
    %c0_15 = arith.constant 0 : index
    %c0_16 = arith.constant 0 : index
    %18 = vector.load %arg9[%c0_15, %c0_16] : memref<1x128xf32, #tpu.memory_space<vmem>>, vector<1x128xf32>
    %19 = vector.shape_cast %18 : vector<1x128xf32> to vector<1x128xf32>
    %20 = vector.broadcast %19 : vector<1x128xf32> to vector<8x128xf32>
    %c0_17 = arith.constant 0 : index
    %c0_18 = arith.constant 0 : index
    %21 = vector.load %arg6[%c0_17, %c0_18] : memref<1x384xf32, #tpu.memory_space<vmem>>, vector<1x384xf32>
    %c0_19 = arith.constant 0 : index
    %c0_20 = arith.constant 0 : index
    %c0_21 = arith.constant 0 : index
    %22 = vector.load %arg10[%c0_19, %c0_20, %c0_21] : memref<2x8x128xf32, #tpu.memory_space<vmem>>, vector<1x8x128xf32>
    %23 = vector.shape_cast %22 : vector<1x8x128xf32> to vector<8x128xf32>
    %c1 = arith.constant 1 : index
    %c0_22 = arith.constant 0 : index
    %c0_23 = arith.constant 0 : index
    %24 = vector.load %arg10[%c1, %c0_22, %c0_23] : memref<2x8x128xf32, #tpu.memory_space<vmem>>, vector<1x8x128xf32>
    %25 = vector.shape_cast %24 : vector<1x8x128xf32> to vector<8x128xf32>
    %26 = vector.extract_strided_slice %23 {offsets = [0, 0], sizes = [8, 32], strides = [1, 1]} : vector<8x128xf32> to vector<8x32xf32>
    %27 = arith.truncf %26 : vector<8x32xf32> to vector<8x32xbf16>
    %c0_24 = arith.constant 0 : index
    %c0_25 = arith.constant 0 : index
    %28 = vector.load %arg5[%c0_24, %c0_25] : memref<32x768xbf16, #tpu.memory_space<vmem>>, vector<32x768xbf16>
    %cst_26 = arith.constant dense<0.000000e+00> : vector<8x768xf32>
    %29 = tpu.matmul %27, %28, %cst_26 {dimension_numbers = #tpu.dot_dimension_numbers<[1], [0], [0], [1], [0, 0, 1, 1], [], []>} : vector<8x32xbf16>, vector<32x768xbf16>, vector<8x768xf32> -> vector<8x768xf32>
    %c0_27 = arith.constant 0 : index
    %c0_28 = arith.constant 0 : index
    %30 = vector.load %arg15[%c0_27, %c0_28] : memref<48x384xf32, #tpu.memory_space<vmem>>, vector<8x384xf32>
    %31 = vector.extract_strided_slice %29 {offsets = [0, 0], sizes = [8, 384], strides = [1, 1]} : vector<8x768xf32> to vector<8x384xf32>
    %32 = vector.extract_strided_slice %30 {offsets = [0, 0], sizes = [8, 128], strides = [1, 1]} : vector<8x384xf32> to vector<8x128xf32>
    %33 = vector.extract_strided_slice %31 {offsets = [0, 0], sizes = [8, 128], strides = [1, 1]} : vector<8x384xf32> to vector<8x128xf32>
    %34 = arith.addf %32, %33 : vector<8x128xf32>
    %35 = arith.negf %34 : vector<8x128xf32>
    %36 = math.exp %35 : vector<8x128xf32>
    %cst_29 = arith.constant 1.000000e+00 : f32
    %37 = vector.broadcast %cst_29 : f32 to vector<8x128xf32>
    %38 = arith.addf %37, %36 : vector<8x128xf32>
    %39 = arith.divf %37, %38 : vector<8x128xf32>
    %40 = vector.extract_strided_slice %30 {offsets = [0, 128], sizes = [8, 128], strides = [1, 1]} : vector<8x384xf32> to vector<8x128xf32>
    %41 = vector.extract_strided_slice %31 {offsets = [0, 128], sizes = [8, 128], strides = [1, 1]} : vector<8x384xf32> to vector<8x128xf32>
    %42 = arith.addf %40, %41 : vector<8x128xf32>
    %43 = arith.negf %42 : vector<8x128xf32>
    %44 = math.exp %43 : vector<8x128xf32>
    %cst_30 = arith.constant 1.000000e+00 : f32
    %45 = vector.broadcast %cst_30 : f32 to vector<8x128xf32>
    %46 = arith.addf %45, %44 : vector<8x128xf32>
    %47 = arith.divf %45, %46 : vector<8x128xf32>
    %48 = vector.extract_strided_slice %30 {offsets = [0, 256], sizes = [8, 128], strides = [1, 1]} : vector<8x384xf32> to vector<8x128xf32>
    %49 = vector.extract_strided_slice %31 {offsets = [0, 256], sizes = [8, 128], strides = [1, 1]} : vector<8x384xf32> to vector<8x128xf32>
    %50 = arith.addf %49, %17 : vector<8x128xf32>
    %51 = arith.mulf %39, %50 : vector<8x128xf32>
    %52 = arith.addf %48, %51 : vector<8x128xf32>
    %53 = math.tanh %52 : vector<8x128xf32>
    %cst_31 = arith.constant 1.000000e+00 : f32
    %54 = vector.broadcast %cst_31 : f32 to vector<8x128xf32>
    %55 = arith.subf %54, %47 : vector<8x128xf32>
    %56 = arith.mulf %55, %53 : vector<8x128xf32>
    %57 = arith.mulf %47, %23 : vector<8x128xf32>
    %58 = arith.addf %56, %57 : vector<8x128xf32>
    %59 = vector.extract_strided_slice %58 {offsets = [0, 0], sizes = [8, 32], strides = [1, 1]} : vector<8x128xf32> to vector<8x32xf32>
    %60 = arith.truncf %59 : vector<8x32xf32> to vector<8x32xbf16>
    %c0_32 = arith.constant 0 : index
    %c0_33 = arith.constant 0 : index
    %61 = vector.load %arg5[%c0_32, %c0_33] : memref<32x768xbf16, #tpu.memory_space<vmem>>, vector<32x768xbf16>
    %cst_34 = arith.constant dense<0.000000e+00> : vector<8x768xf32>
    %62 = tpu.matmul %60, %61, %cst_34 {dimension_numbers = #tpu.dot_dimension_numbers<[1], [0], [0], [1], [0, 0, 1, 1], [], []>} : vector<8x32xbf16>, vector<32x768xbf16>, vector<8x768xf32> -> vector<8x768xf32>
    %63 = vector.extract_strided_slice %25 {offsets = [0, 0], sizes = [8, 32], strides = [1, 1]} : vector<8x128xf32> to vector<8x32xf32>
    %64 = arith.truncf %63 : vector<8x32xf32> to vector<8x32xbf16>
    %c0_35 = arith.constant 0 : index
    %c0_36 = arith.constant 0 : index
    %65 = vector.load %arg7[%c0_35, %c0_36] : memref<32x384xbf16, #tpu.memory_space<vmem>>, vector<32x384xbf16>
    %cst_37 = arith.constant dense<0.000000e+00> : vector<8x384xf32>
    %66 = tpu.matmul %64, %65, %cst_37 {dimension_numbers = #tpu.dot_dimension_numbers<[1], [0], [0], [1], [0, 0, 1, 1], [], []>} : vector<8x32xbf16>, vector<32x384xbf16>, vector<8x384xf32> -> vector<8x384xf32>
    %67 = vector.extract_strided_slice %62 {offsets = [0, 384], sizes = [8, 384], strides = [1, 1]} : vector<8x768xf32> to vector<8x384xf32>
    %68 = vector.broadcast %21 : vector<1x384xf32> to vector<8x384xf32>
    %69 = arith.addf %67, %68 : vector<8x384xf32>
    %70 = vector.extract_strided_slice %69 {offsets = [0, 0], sizes = [8, 128], strides = [1, 1]} : vector<8x384xf32> to vector<8x128xf32>
    %71 = vector.extract_strided_slice %66 {offsets = [0, 0], sizes = [8, 128], strides = [1, 1]} : vector<8x384xf32> to vector<8x128xf32>
    %72 = arith.addf %70, %71 : vector<8x128xf32>
    %73 = arith.negf %72 : vector<8x128xf32>
    %74 = math.exp %73 : vector<8x128xf32>
    %cst_38 = arith.constant 1.000000e+00 : f32
    %75 = vector.broadcast %cst_38 : f32 to vector<8x128xf32>
    %76 = arith.addf %75, %74 : vector<8x128xf32>
    %77 = arith.divf %75, %76 : vector<8x128xf32>
    %78 = vector.extract_strided_slice %69 {offsets = [0, 128], sizes = [8, 128], strides = [1, 1]} : vector<8x384xf32> to vector<8x128xf32>
    %79 = vector.extract_strided_slice %66 {offsets = [0, 128], sizes = [8, 128], strides = [1, 1]} : vector<8x384xf32> to vector<8x128xf32>
    %80 = arith.addf %78, %79 : vector<8x128xf32>
    %81 = arith.negf %80 : vector<8x128xf32>
    %82 = math.exp %81 : vector<8x128xf32>
    %cst_39 = arith.constant 1.000000e+00 : f32
    %83 = vector.broadcast %cst_39 : f32 to vector<8x128xf32>
    %84 = arith.addf %83, %82 : vector<8x128xf32>
    %85 = arith.divf %83, %84 : vector<8x128xf32>
    %86 = vector.extract_strided_slice %69 {offsets = [0, 256], sizes = [8, 128], strides = [1, 1]} : vector<8x384xf32> to vector<8x128xf32>
    %87 = vector.extract_strided_slice %66 {offsets = [0, 256], sizes = [8, 128], strides = [1, 1]} : vector<8x384xf32> to vector<8x128xf32>
    %88 = arith.addf %87, %20 : vector<8x128xf32>
    %89 = arith.mulf %77, %88 : vector<8x128xf32>
    %90 = arith.addf %86, %89 : vector<8x128xf32>
    %91 = math.tanh %90 : vector<8x128xf32>
    %cst_40 = arith.constant 1.000000e+00 : f32
    %92 = vector.broadcast %cst_40 : f32 to vector<8x128xf32>
    %93 = arith.subf %92, %85 : vector<8x128xf32>
    %94 = arith.mulf %93, %91 : vector<8x128xf32>
    %95 = arith.mulf %85, %25 : vector<8x128xf32>
    %96 = arith.addf %94, %95 : vector<8x128xf32>
    %c8 = arith.constant 8 : index
    %c0_41 = arith.constant 0 : index
    %97 = vector.load %arg15[%c8, %c0_41] : memref<48x384xf32, #tpu.memory_space<vmem>>, vector<8x384xf32>
    %98 = vector.extract_strided_slice %62 {offsets = [0, 0], sizes = [8, 384], strides = [1, 1]} : vector<8x768xf32> to vector<8x384xf32>
    %99 = vector.extract_strided_slice %97 {offsets = [0, 0], sizes = [8, 128], strides = [1, 1]} : vector<8x384xf32> to vector<8x128xf32>
    %100 = vector.extract_strided_slice %98 {offsets = [0, 0], sizes = [8, 128], strides = [1, 1]} : vector<8x384xf32> to vector<8x128xf32>
    %101 = arith.addf %99, %100 : vector<8x128xf32>
    %102 = arith.negf %101 : vector<8x128xf32>
    %103 = math.exp %102 : vector<8x128xf32>
    %cst_42 = arith.constant 1.000000e+00 : f32
    %104 = vector.broadcast %cst_42 : f32 to vector<8x128xf32>
    %105 = arith.addf %104, %103 : vector<8x128xf32>
    %106 = arith.divf %104, %105 : vector<8x128xf32>
    %107 = vector.extract_strided_slice %97 {offsets = [0, 128], sizes = [8, 128], strides = [1, 1]} : vector<8x384xf32> to vector<8x128xf32>
    %108 = vector.extract_strided_slice %98 {offsets = [0, 128], sizes = [8, 128], strides = [1, 1]} : vector<8x384xf32> to vector<8x128xf32>
    %109 = arith.addf %107, %108 : vector<8x128xf32>
    %110 = arith.negf %109 : vector<8x128xf32>
    %111 = math.exp %110 : vector<8x128xf32>
    %cst_43 = arith.constant 1.000000e+00 : f32
    %112 = vector.broadcast %cst_43 : f32 to vector<8x128xf32>
    %113 = arith.addf %112, %111 : vector<8x128xf32>
    %114 = arith.divf %112, %113 : vector<8x128xf32>
    %115 = vector.extract_strided_slice %97 {offsets = [0, 256], sizes = [8, 128], strides = [1, 1]} : vector<8x384xf32> to vector<8x128xf32>
    %116 = vector.extract_strided_slice %98 {offsets = [0, 256], sizes = [8, 128], strides = [1, 1]} : vector<8x384xf32> to vector<8x128xf32>
    %117 = arith.addf %116, %17 : vector<8x128xf32>
    %118 = arith.mulf %106, %117 : vector<8x128xf32>
    %119 = arith.addf %115, %118 : vector<8x128xf32>
    %120 = math.tanh %119 : vector<8x128xf32>
    %cst_44 = arith.constant 1.000000e+00 : f32
    %121 = vector.broadcast %cst_44 : f32 to vector<8x128xf32>
    %122 = arith.subf %121, %114 : vector<8x128xf32>
    %123 = arith.mulf %122, %120 : vector<8x128xf32>
    %124 = arith.mulf %114, %58 : vector<8x128xf32>
    %125 = arith.addf %123, %124 : vector<8x128xf32>
    %126 = vector.extract_strided_slice %125 {offsets = [0, 0], sizes = [8, 32], strides = [1, 1]} : vector<8x128xf32> to vector<8x32xf32>
    %127 = arith.truncf %126 : vector<8x32xf32> to vector<8x32xbf16>
    %c0_45 = arith.constant 0 : index
    %c0_46 = arith.constant 0 : index
    %128 = vector.load %arg5[%c0_45, %c0_46] : memref<32x768xbf16, #tpu.memory_space<vmem>>, vector<32x768xbf16>
    %cst_47 = arith.constant dense<0.000000e+00> : vector<8x768xf32>
    %129 = tpu.matmul %127, %128, %cst_47 {dimension_numbers = #tpu.dot_dimension_numbers<[1], [0], [0], [1], [0, 0, 1, 1], [], []>} : vector<8x32xbf16>, vector<32x768xbf16>, vector<8x768xf32> -> vector<8x768xf32>
    %130 = vector.extract_strided_slice %96 {offsets = [0, 0], sizes = [8, 32], strides = [1, 1]} : vector<8x128xf32> to vector<8x32xf32>
    %131 = arith.truncf %130 : vector<8x32xf32> to vector<8x32xbf16>
    %c0_48 = arith.constant 0 : index
    %c0_49 = arith.constant 0 : index
    %132 = vector.load %arg7[%c0_48, %c0_49] : memref<32x384xbf16, #tpu.memory_space<vmem>>, vector<32x384xbf16>
    %cst_50 = arith.constant dense<0.000000e+00> : vector<8x384xf32>
    %133 = tpu.matmul %131, %132, %cst_50 {dimension_numbers = #tpu.dot_dimension_numbers<[1], [0], [0], [1], [0, 0, 1, 1], [], []>} : vector<8x32xbf16>, vector<32x384xbf16>, vector<8x384xf32> -> vector<8x384xf32>
    %134 = vector.extract_strided_slice %129 {offsets = [0, 384], sizes = [8, 384], strides = [1, 1]} : vector<8x768xf32> to vector<8x384xf32>
    %135 = vector.broadcast %21 : vector<1x384xf32> to vector<8x384xf32>
    %136 = arith.addf %134, %135 : vector<8x384xf32>
    %137 = vector.extract_strided_slice %136 {offsets = [0, 0], sizes = [8, 128], strides = [1, 1]} : vector<8x384xf32> to vector<8x128xf32>
    %138 = vector.extract_strided_slice %133 {offsets = [0, 0], sizes = [8, 128], strides = [1, 1]} : vector<8x384xf32> to vector<8x128xf32>
    %139 = arith.addf %137, %138 : vector<8x128xf32>
    %140 = arith.negf %139 : vector<8x128xf32>
    %141 = math.exp %140 : vector<8x128xf32>
    %cst_51 = arith.constant 1.000000e+00 : f32
    %142 = vector.broadcast %cst_51 : f32 to vector<8x128xf32>
    %143 = arith.addf %142, %141 : vector<8x128xf32>
    %144 = arith.divf %142, %143 : vector<8x128xf32>
    %145 = vector.extract_strided_slice %136 {offsets = [0, 128], sizes = [8, 128], strides = [1, 1]} : vector<8x384xf32> to vector<8x128xf32>
    %146 = vector.extract_strided_slice %133 {offsets = [0, 128], sizes = [8, 128], strides = [1, 1]} : vector<8x384xf32> to vector<8x128xf32>
    %147 = arith.addf %145, %146 : vector<8x128xf32>
    %148 = arith.negf %147 : vector<8x128xf32>
    %149 = math.exp %148 : vector<8x128xf32>
    %cst_52 = arith.constant 1.000000e+00 : f32
    %150 = vector.broadcast %cst_52 : f32 to vector<8x128xf32>
    %151 = arith.addf %150, %149 : vector<8x128xf32>
    %152 = arith.divf %150, %151 : vector<8x128xf32>
    %153 = vector.extract_strided_slice %136 {offsets = [0, 256], sizes = [8, 128], strides = [1, 1]} : vector<8x384xf32> to vector<8x128xf32>
    %154 = vector.extract_strided_slice %133 {offsets = [0, 256], sizes = [8, 128], strides = [1, 1]} : vector<8x384xf32> to vector<8x128xf32>
    %155 = arith.addf %154, %20 : vector<8x128xf32>
    %156 = arith.mulf %144, %155 : vector<8x128xf32>
    %157 = arith.addf %153, %156 : vector<8x128xf32>
    %158 = math.tanh %157 : vector<8x128xf32>
    %cst_53 = arith.constant 1.000000e+00 : f32
    %159 = vector.broadcast %cst_53 : f32 to vector<8x128xf32>
    %160 = arith.subf %159, %152 : vector<8x128xf32>
    %161 = arith.mulf %160, %158 : vector<8x128xf32>
    %162 = arith.mulf %152, %96 : vector<8x128xf32>
    %163 = arith.addf %161, %162 : vector<8x128xf32>
    %c16 = arith.constant 16 : index
    %c0_54 = arith.constant 0 : index
    %164 = vector.load %arg15[%c16, %c0_54] : memref<48x384xf32, #tpu.memory_space<vmem>>, vector<8x384xf32>
    %165 = vector.extract_strided_slice %129 {offsets = [0, 0], sizes = [8, 384], strides = [1, 1]} : vector<8x768xf32> to vector<8x384xf32>
    %166 = vector.extract_strided_slice %164 {offsets = [0, 0], sizes = [8, 128], strides = [1, 1]} : vector<8x384xf32> to vector<8x128xf32>
    %167 = vector.extract_strided_slice %165 {offsets = [0, 0], sizes = [8, 128], strides = [1, 1]} : vector<8x384xf32> to vector<8x128xf32>
    %168 = arith.addf %166, %167 : vector<8x128xf32>
    %169 = arith.negf %168 : vector<8x128xf32>
    %170 = math.exp %169 : vector<8x128xf32>
    %cst_55 = arith.constant 1.000000e+00 : f32
    %171 = vector.broadcast %cst_55 : f32 to vector<8x128xf32>
    %172 = arith.addf %171, %170 : vector<8x128xf32>
    %173 = arith.divf %171, %172 : vector<8x128xf32>
    %174 = vector.extract_strided_slice %164 {offsets = [0, 128], sizes = [8, 128], strides = [1, 1]} : vector<8x384xf32> to vector<8x128xf32>
    %175 = vector.extract_strided_slice %165 {offsets = [0, 128], sizes = [8, 128], strides = [1, 1]} : vector<8x384xf32> to vector<8x128xf32>
    %176 = arith.addf %174, %175 : vector<8x128xf32>
    %177 = arith.negf %176 : vector<8x128xf32>
    %178 = math.exp %177 : vector<8x128xf32>
    %cst_56 = arith.constant 1.000000e+00 : f32
    %179 = vector.broadcast %cst_56 : f32 to vector<8x128xf32>
    %180 = arith.addf %179, %178 : vector<8x128xf32>
    %181 = arith.divf %179, %180 : vector<8x128xf32>
    %182 = vector.extract_strided_slice %164 {offsets = [0, 256], sizes = [8, 128], strides = [1, 1]} : vector<8x384xf32> to vector<8x128xf32>
    %183 = vector.extract_strided_slice %165 {offsets = [0, 256], sizes = [8, 128], strides = [1, 1]} : vector<8x384xf32> to vector<8x128xf32>
    %184 = arith.addf %183, %17 : vector<8x128xf32>
    %185 = arith.mulf %173, %184 : vector<8x128xf32>
    %186 = arith.addf %182, %185 : vector<8x128xf32>
    %187 = math.tanh %186 : vector<8x128xf32>
    %cst_57 = arith.constant 1.000000e+00 : f32
    %188 = vector.broadcast %cst_57 : f32 to vector<8x128xf32>
    %189 = arith.subf %188, %181 : vector<8x128xf32>
    %190 = arith.mulf %189, %187 : vector<8x128xf32>
    %191 = arith.mulf %181, %125 : vector<8x128xf32>
    %192 = arith.addf %190, %191 : vector<8x128xf32>
    %193 = vector.extract_strided_slice %192 {offsets = [0, 0], sizes = [8, 32], strides = [1, 1]} : vector<8x128xf32> to vector<8x32xf32>
    %194 = arith.truncf %193 : vector<8x32xf32> to vector<8x32xbf16>
    %c0_58 = arith.constant 0 : index
    %c0_59 = arith.constant 0 : index
    %195 = vector.load %arg5[%c0_58, %c0_59] : memref<32x768xbf16, #tpu.memory_space<vmem>>, vector<32x768xbf16>
    %cst_60 = arith.constant dense<0.000000e+00> : vector<8x768xf32>
    %196 = tpu.matmul %194, %195, %cst_60 {dimension_numbers = #tpu.dot_dimension_numbers<[1], [0], [0], [1], [0, 0, 1, 1], [], []>} : vector<8x32xbf16>, vector<32x768xbf16>, vector<8x768xf32> -> vector<8x768xf32>
    %197 = vector.extract_strided_slice %163 {offsets = [0, 0], sizes = [8, 32], strides = [1, 1]} : vector<8x128xf32> to vector<8x32xf32>
    %198 = arith.truncf %197 : vector<8x32xf32> to vector<8x32xbf16>
    %c0_61 = arith.constant 0 : index
    %c0_62 = arith.constant 0 : index
    %199 = vector.load %arg7[%c0_61, %c0_62] : memref<32x384xbf16, #tpu.memory_space<vmem>>, vector<32x384xbf16>
    %cst_63 = arith.constant dense<0.000000e+00> : vector<8x384xf32>
    %200 = tpu.matmul %198, %199, %cst_63 {dimension_numbers = #tpu.dot_dimension_numbers<[1], [0], [0], [1], [0, 0, 1, 1], [], []>} : vector<8x32xbf16>, vector<32x384xbf16>, vector<8x384xf32> -> vector<8x384xf32>
    %201 = vector.extract_strided_slice %196 {offsets = [0, 384], sizes = [8, 384], strides = [1, 1]} : vector<8x768xf32> to vector<8x384xf32>
    %202 = vector.broadcast %21 : vector<1x384xf32> to vector<8x384xf32>
    %203 = arith.addf %201, %202 : vector<8x384xf32>
    %204 = vector.extract_strided_slice %203 {offsets = [0, 0], sizes = [8, 128], strides = [1, 1]} : vector<8x384xf32> to vector<8x128xf32>
    %205 = vector.extract_strided_slice %200 {offsets = [0, 0], sizes = [8, 128], strides = [1, 1]} : vector<8x384xf32> to vector<8x128xf32>
    %206 = arith.addf %204, %205 : vector<8x128xf32>
    %207 = arith.negf %206 : vector<8x128xf32>
    %208 = math.exp %207 : vector<8x128xf32>
    %cst_64 = arith.constant 1.000000e+00 : f32
    %209 = vector.broadcast %cst_64 : f32 to vector<8x128xf32>
    %210 = arith.addf %209, %208 : vector<8x128xf32>
    %211 = arith.divf %209, %210 : vector<8x128xf32>
    %212 = vector.extract_strided_slice %203 {offsets = [0, 128], sizes = [8, 128], strides = [1, 1]} : vector<8x384xf32> to vector<8x128xf32>
    %213 = vector.extract_strided_slice %200 {offsets = [0, 128], sizes = [8, 128], strides = [1, 1]} : vector<8x384xf32> to vector<8x128xf32>
    %214 = arith.addf %212, %213 : vector<8x128xf32>
    %215 = arith.negf %214 : vector<8x128xf32>
    %216 = math.exp %215 : vector<8x128xf32>
    %cst_65 = arith.constant 1.000000e+00 : f32
    %217 = vector.broadcast %cst_65 : f32 to vector<8x128xf32>
    %218 = arith.addf %217, %216 : vector<8x128xf32>
    %219 = arith.divf %217, %218 : vector<8x128xf32>
    %220 = vector.extract_strided_slice %203 {offsets = [0, 256], sizes = [8, 128], strides = [1, 1]} : vector<8x384xf32> to vector<8x128xf32>
    %221 = vector.extract_strided_slice %200 {offsets = [0, 256], sizes = [8, 128], strides = [1, 1]} : vector<8x384xf32> to vector<8x128xf32>
    %222 = arith.addf %221, %20 : vector<8x128xf32>
    %223 = arith.mulf %211, %222 : vector<8x128xf32>
    %224 = arith.addf %220, %223 : vector<8x128xf32>
    %225 = math.tanh %224 : vector<8x128xf32>
    %cst_66 = arith.constant 1.000000e+00 : f32
    %226 = vector.broadcast %cst_66 : f32 to vector<8x128xf32>
    %227 = arith.subf %226, %219 : vector<8x128xf32>
    %228 = arith.mulf %227, %225 : vector<8x128xf32>
    %229 = arith.mulf %219, %163 : vector<8x128xf32>
    %230 = arith.addf %228, %229 : vector<8x128xf32>
    %c24 = arith.constant 24 : index
    %c0_67 = arith.constant 0 : index
    %231 = vector.load %arg15[%c24, %c0_67] : memref<48x384xf32, #tpu.memory_space<vmem>>, vector<8x384xf32>
    %232 = vector.extract_strided_slice %196 {offsets = [0, 0], sizes = [8, 384], strides = [1, 1]} : vector<8x768xf32> to vector<8x384xf32>
    %233 = vector.extract_strided_slice %231 {offsets = [0, 0], sizes = [8, 128], strides = [1, 1]} : vector<8x384xf32> to vector<8x128xf32>
    %234 = vector.extract_strided_slice %232 {offsets = [0, 0], sizes = [8, 128], strides = [1, 1]} : vector<8x384xf32> to vector<8x128xf32>
    %235 = arith.addf %233, %234 : vector<8x128xf32>
    %236 = arith.negf %235 : vector<8x128xf32>
    %237 = math.exp %236 : vector<8x128xf32>
    %cst_68 = arith.constant 1.000000e+00 : f32
    %238 = vector.broadcast %cst_68 : f32 to vector<8x128xf32>
    %239 = arith.addf %238, %237 : vector<8x128xf32>
    %240 = arith.divf %238, %239 : vector<8x128xf32>
    %241 = vector.extract_strided_slice %231 {offsets = [0, 128], sizes = [8, 128], strides = [1, 1]} : vector<8x384xf32> to vector<8x128xf32>
    %242 = vector.extract_strided_slice %232 {offsets = [0, 128], sizes = [8, 128], strides = [1, 1]} : vector<8x384xf32> to vector<8x128xf32>
    %243 = arith.addf %241, %242 : vector<8x128xf32>
    %244 = arith.negf %243 : vector<8x128xf32>
    %245 = math.exp %244 : vector<8x128xf32>
    %cst_69 = arith.constant 1.000000e+00 : f32
    %246 = vector.broadcast %cst_69 : f32 to vector<8x128xf32>
    %247 = arith.addf %246, %245 : vector<8x128xf32>
    %248 = arith.divf %246, %247 : vector<8x128xf32>
    %249 = vector.extract_strided_slice %231 {offsets = [0, 256], sizes = [8, 128], strides = [1, 1]} : vector<8x384xf32> to vector<8x128xf32>
    %250 = vector.extract_strided_slice %232 {offsets = [0, 256], sizes = [8, 128], strides = [1, 1]} : vector<8x384xf32> to vector<8x128xf32>
    %251 = arith.addf %250, %17 : vector<8x128xf32>
    %252 = arith.mulf %240, %251 : vector<8x128xf32>
    %253 = arith.addf %249, %252 : vector<8x128xf32>
    %254 = math.tanh %253 : vector<8x128xf32>
    %cst_70 = arith.constant 1.000000e+00 : f32
    %255 = vector.broadcast %cst_70 : f32 to vector<8x128xf32>
    %256 = arith.subf %255, %248 : vector<8x128xf32>
    %257 = arith.mulf %256, %254 : vector<8x128xf32>
    %258 = arith.mulf %248, %192 : vector<8x128xf32>
    %259 = arith.addf %257, %258 : vector<8x128xf32>
    %260 = vector.extract_strided_slice %259 {offsets = [0, 0], sizes = [8, 32], strides = [1, 1]} : vector<8x128xf32> to vector<8x32xf32>
    %261 = arith.truncf %260 : vector<8x32xf32> to vector<8x32xbf16>
    %c0_71 = arith.constant 0 : index
    %c0_72 = arith.constant 0 : index
    %262 = vector.load %arg5[%c0_71, %c0_72] : memref<32x768xbf16, #tpu.memory_space<vmem>>, vector<32x768xbf16>
    %cst_73 = arith.constant dense<0.000000e+00> : vector<8x768xf32>
    %263 = tpu.matmul %261, %262, %cst_73 {dimension_numbers = #tpu.dot_dimension_numbers<[1], [0], [0], [1], [0, 0, 1, 1], [], []>} : vector<8x32xbf16>, vector<32x768xbf16>, vector<8x768xf32> -> vector<8x768xf32>
    %264 = vector.extract_strided_slice %230 {offsets = [0, 0], sizes = [8, 32], strides = [1, 1]} : vector<8x128xf32> to vector<8x32xf32>
    %265 = arith.truncf %264 : vector<8x32xf32> to vector<8x32xbf16>
    %c0_74 = arith.constant 0 : index
    %c0_75 = arith.constant 0 : index
    %266 = vector.load %arg7[%c0_74, %c0_75] : memref<32x384xbf16, #tpu.memory_space<vmem>>, vector<32x384xbf16>
    %cst_76 = arith.constant dense<0.000000e+00> : vector<8x384xf32>
    %267 = tpu.matmul %265, %266, %cst_76 {dimension_numbers = #tpu.dot_dimension_numbers<[1], [0], [0], [1], [0, 0, 1, 1], [], []>} : vector<8x32xbf16>, vector<32x384xbf16>, vector<8x384xf32> -> vector<8x384xf32>
    %268 = vector.extract_strided_slice %263 {offsets = [0, 384], sizes = [8, 384], strides = [1, 1]} : vector<8x768xf32> to vector<8x384xf32>
    %269 = vector.broadcast %21 : vector<1x384xf32> to vector<8x384xf32>
    %270 = arith.addf %268, %269 : vector<8x384xf32>
    %271 = vector.extract_strided_slice %270 {offsets = [0, 0], sizes = [8, 128], strides = [1, 1]} : vector<8x384xf32> to vector<8x128xf32>
    %272 = vector.extract_strided_slice %267 {offsets = [0, 0], sizes = [8, 128], strides = [1, 1]} : vector<8x384xf32> to vector<8x128xf32>
    %273 = arith.addf %271, %272 : vector<8x128xf32>
    %274 = arith.negf %273 : vector<8x128xf32>
    %275 = math.exp %274 : vector<8x128xf32>
    %cst_77 = arith.constant 1.000000e+00 : f32
    %276 = vector.broadcast %cst_77 : f32 to vector<8x128xf32>
    %277 = arith.addf %276, %275 : vector<8x128xf32>
    %278 = arith.divf %276, %277 : vector<8x128xf32>
    %279 = vector.extract_strided_slice %270 {offsets = [0, 128], sizes = [8, 128], strides = [1, 1]} : vector<8x384xf32> to vector<8x128xf32>
    %280 = vector.extract_strided_slice %267 {offsets = [0, 128], sizes = [8, 128], strides = [1, 1]} : vector<8x384xf32> to vector<8x128xf32>
    %281 = arith.addf %279, %280 : vector<8x128xf32>
    %282 = arith.negf %281 : vector<8x128xf32>
    %283 = math.exp %282 : vector<8x128xf32>
    %cst_78 = arith.constant 1.000000e+00 : f32
    %284 = vector.broadcast %cst_78 : f32 to vector<8x128xf32>
    %285 = arith.addf %284, %283 : vector<8x128xf32>
    %286 = arith.divf %284, %285 : vector<8x128xf32>
    %287 = vector.extract_strided_slice %270 {offsets = [0, 256], sizes = [8, 128], strides = [1, 1]} : vector<8x384xf32> to vector<8x128xf32>
    %288 = vector.extract_strided_slice %267 {offsets = [0, 256], sizes = [8, 128], strides = [1, 1]} : vector<8x384xf32> to vector<8x128xf32>
    %289 = arith.addf %288, %20 : vector<8x128xf32>
    %290 = arith.mulf %278, %289 : vector<8x128xf32>
    %291 = arith.addf %287, %290 : vector<8x128xf32>
    %292 = math.tanh %291 : vector<8x128xf32>
    %cst_79 = arith.constant 1.000000e+00 : f32
    %293 = vector.broadcast %cst_79 : f32 to vector<8x128xf32>
    %294 = arith.subf %293, %286 : vector<8x128xf32>
    %295 = arith.mulf %294, %292 : vector<8x128xf32>
    %296 = arith.mulf %286, %230 : vector<8x128xf32>
    %297 = arith.addf %295, %296 : vector<8x128xf32>
    %c32 = arith.constant 32 : index
    %c0_80 = arith.constant 0 : index
    %298 = vector.load %arg15[%c32, %c0_80] : memref<48x384xf32, #tpu.memory_space<vmem>>, vector<8x384xf32>
    %299 = vector.extract_strided_slice %263 {offsets = [0, 0], sizes = [8, 384], strides = [1, 1]} : vector<8x768xf32> to vector<8x384xf32>
    %300 = vector.extract_strided_slice %298 {offsets = [0, 0], sizes = [8, 128], strides = [1, 1]} : vector<8x384xf32> to vector<8x128xf32>
    %301 = vector.extract_strided_slice %299 {offsets = [0, 0], sizes = [8, 128], strides = [1, 1]} : vector<8x384xf32> to vector<8x128xf32>
    %302 = arith.addf %300, %301 : vector<8x128xf32>
    %303 = arith.negf %302 : vector<8x128xf32>
    %304 = math.exp %303 : vector<8x128xf32>
    %cst_81 = arith.constant 1.000000e+00 : f32
    %305 = vector.broadcast %cst_81 : f32 to vector<8x128xf32>
    %306 = arith.addf %305, %304 : vector<8x128xf32>
    %307 = arith.divf %305, %306 : vector<8x128xf32>
    %308 = vector.extract_strided_slice %298 {offsets = [0, 128], sizes = [8, 128], strides = [1, 1]} : vector<8x384xf32> to vector<8x128xf32>
    %309 = vector.extract_strided_slice %299 {offsets = [0, 128], sizes = [8, 128], strides = [1, 1]} : vector<8x384xf32> to vector<8x128xf32>
    %310 = arith.addf %308, %309 : vector<8x128xf32>
    %311 = arith.negf %310 : vector<8x128xf32>
    %312 = math.exp %311 : vector<8x128xf32>
    %cst_82 = arith.constant 1.000000e+00 : f32
    %313 = vector.broadcast %cst_82 : f32 to vector<8x128xf32>
    %314 = arith.addf %313, %312 : vector<8x128xf32>
    %315 = arith.divf %313, %314 : vector<8x128xf32>
    %316 = vector.extract_strided_slice %298 {offsets = [0, 256], sizes = [8, 128], strides = [1, 1]} : vector<8x384xf32> to vector<8x128xf32>
    %317 = vector.extract_strided_slice %299 {offsets = [0, 256], sizes = [8, 128], strides = [1, 1]} : vector<8x384xf32> to vector<8x128xf32>
    %318 = arith.addf %317, %17 : vector<8x128xf32>
    %319 = arith.mulf %307, %318 : vector<8x128xf32>
    %320 = arith.addf %316, %319 : vector<8x128xf32>
    %321 = math.tanh %320 : vector<8x128xf32>
    %cst_83 = arith.constant 1.000000e+00 : f32
    %322 = vector.broadcast %cst_83 : f32 to vector<8x128xf32>
    %323 = arith.subf %322, %315 : vector<8x128xf32>
    %324 = arith.mulf %323, %321 : vector<8x128xf32>
    %325 = arith.mulf %315, %259 : vector<8x128xf32>
    %326 = arith.addf %324, %325 : vector<8x128xf32>
    %327 = vector.extract_strided_slice %326 {offsets = [0, 0], sizes = [8, 32], strides = [1, 1]} : vector<8x128xf32> to vector<8x32xf32>
    %328 = arith.truncf %327 : vector<8x32xf32> to vector<8x32xbf16>
    %c0_84 = arith.constant 0 : index
    %c0_85 = arith.constant 0 : index
    %329 = vector.load %arg5[%c0_84, %c0_85] : memref<32x768xbf16, #tpu.memory_space<vmem>>, vector<32x768xbf16>
    %cst_86 = arith.constant dense<0.000000e+00> : vector<8x768xf32>
    %330 = tpu.matmul %328, %329, %cst_86 {dimension_numbers = #tpu.dot_dimension_numbers<[1], [0], [0], [1], [0, 0, 1, 1], [], []>} : vector<8x32xbf16>, vector<32x768xbf16>, vector<8x768xf32> -> vector<8x768xf32>
    %331 = vector.extract_strided_slice %297 {offsets = [0, 0], sizes = [8, 32], strides = [1, 1]} : vector<8x128xf32> to vector<8x32xf32>
    %332 = arith.truncf %331 : vector<8x32xf32> to vector<8x32xbf16>
    %c0_87 = arith.constant 0 : index
    %c0_88 = arith.constant 0 : index
    %333 = vector.load %arg7[%c0_87, %c0_88] : memref<32x384xbf16, #tpu.memory_space<vmem>>, vector<32x384xbf16>
    %cst_89 = arith.constant dense<0.000000e+00> : vector<8x384xf32>
    %334 = tpu.matmul %332, %333, %cst_89 {dimension_numbers = #tpu.dot_dimension_numbers<[1], [0], [0], [1], [0, 0, 1, 1], [], []>} : vector<8x32xbf16>, vector<32x384xbf16>, vector<8x384xf32> -> vector<8x384xf32>
    %335 = vector.extract_strided_slice %330 {offsets = [0, 384], sizes = [8, 384], strides = [1, 1]} : vector<8x768xf32> to vector<8x384xf32>
    %336 = vector.broadcast %21 : vector<1x384xf32> to vector<8x384xf32>
    %337 = arith.addf %335, %336 : vector<8x384xf32>
    %338 = vector.extract_strided_slice %337 {offsets = [0, 0], sizes = [8, 128], strides = [1, 1]} : vector<8x384xf32> to vector<8x128xf32>
    %339 = vector.extract_strided_slice %334 {offsets = [0, 0], sizes = [8, 128], strides = [1, 1]} : vector<8x384xf32> to vector<8x128xf32>
    %340 = arith.addf %338, %339 : vector<8x128xf32>
    %341 = arith.negf %340 : vector<8x128xf32>
    %342 = math.exp %341 : vector<8x128xf32>
    %cst_90 = arith.constant 1.000000e+00 : f32
    %343 = vector.broadcast %cst_90 : f32 to vector<8x128xf32>
    %344 = arith.addf %343, %342 : vector<8x128xf32>
    %345 = arith.divf %343, %344 : vector<8x128xf32>
    %346 = vector.extract_strided_slice %337 {offsets = [0, 128], sizes = [8, 128], strides = [1, 1]} : vector<8x384xf32> to vector<8x128xf32>
    %347 = vector.extract_strided_slice %334 {offsets = [0, 128], sizes = [8, 128], strides = [1, 1]} : vector<8x384xf32> to vector<8x128xf32>
    %348 = arith.addf %346, %347 : vector<8x128xf32>
    %349 = arith.negf %348 : vector<8x128xf32>
    %350 = math.exp %349 : vector<8x128xf32>
    %cst_91 = arith.constant 1.000000e+00 : f32
    %351 = vector.broadcast %cst_91 : f32 to vector<8x128xf32>
    %352 = arith.addf %351, %350 : vector<8x128xf32>
    %353 = arith.divf %351, %352 : vector<8x128xf32>
    %354 = vector.extract_strided_slice %337 {offsets = [0, 256], sizes = [8, 128], strides = [1, 1]} : vector<8x384xf32> to vector<8x128xf32>
    %355 = vector.extract_strided_slice %334 {offsets = [0, 256], sizes = [8, 128], strides = [1, 1]} : vector<8x384xf32> to vector<8x128xf32>
    %356 = arith.addf %355, %20 : vector<8x128xf32>
    %357 = arith.mulf %345, %356 : vector<8x128xf32>
    %358 = arith.addf %354, %357 : vector<8x128xf32>
    %359 = math.tanh %358 : vector<8x128xf32>
    %cst_92 = arith.constant 1.000000e+00 : f32
    %360 = vector.broadcast %cst_92 : f32 to vector<8x128xf32>
    %361 = arith.subf %360, %353 : vector<8x128xf32>
    %362 = arith.mulf %361, %359 : vector<8x128xf32>
    %363 = arith.mulf %353, %297 : vector<8x128xf32>
    %364 = arith.addf %362, %363 : vector<8x128xf32>
    %c40 = arith.constant 40 : index
    %c0_93 = arith.constant 0 : index
    %365 = vector.load %arg15[%c40, %c0_93] : memref<48x384xf32, #tpu.memory_space<vmem>>, vector<8x384xf32>
    %366 = vector.extract_strided_slice %330 {offsets = [0, 0], sizes = [8, 384], strides = [1, 1]} : vector<8x768xf32> to vector<8x384xf32>
    %367 = vector.extract_strided_slice %365 {offsets = [0, 0], sizes = [8, 128], strides = [1, 1]} : vector<8x384xf32> to vector<8x128xf32>
    %368 = vector.extract_strided_slice %366 {offsets = [0, 0], sizes = [8, 128], strides = [1, 1]} : vector<8x384xf32> to vector<8x128xf32>
    %369 = arith.addf %367, %368 : vector<8x128xf32>
    %370 = arith.negf %369 : vector<8x128xf32>
    %371 = math.exp %370 : vector<8x128xf32>
    %cst_94 = arith.constant 1.000000e+00 : f32
    %372 = vector.broadcast %cst_94 : f32 to vector<8x128xf32>
    %373 = arith.addf %372, %371 : vector<8x128xf32>
    %374 = arith.divf %372, %373 : vector<8x128xf32>
    %375 = vector.extract_strided_slice %365 {offsets = [0, 128], sizes = [8, 128], strides = [1, 1]} : vector<8x384xf32> to vector<8x128xf32>
    %376 = vector.extract_strided_slice %366 {offsets = [0, 128], sizes = [8, 128], strides = [1, 1]} : vector<8x384xf32> to vector<8x128xf32>
    %377 = arith.addf %375, %376 : vector<8x128xf32>
    %378 = arith.negf %377 : vector<8x128xf32>
    %379 = math.exp %378 : vector<8x128xf32>
    %cst_95 = arith.constant 1.000000e+00 : f32
    %380 = vector.broadcast %cst_95 : f32 to vector<8x128xf32>
    %381 = arith.addf %380, %379 : vector<8x128xf32>
    %382 = arith.divf %380, %381 : vector<8x128xf32>
    %383 = vector.extract_strided_slice %365 {offsets = [0, 256], sizes = [8, 128], strides = [1, 1]} : vector<8x384xf32> to vector<8x128xf32>
    %384 = vector.extract_strided_slice %366 {offsets = [0, 256], sizes = [8, 128], strides = [1, 1]} : vector<8x384xf32> to vector<8x128xf32>
    %385 = arith.addf %384, %17 : vector<8x128xf32>
    %386 = arith.mulf %374, %385 : vector<8x128xf32>
    %387 = arith.addf %383, %386 : vector<8x128xf32>
    %388 = math.tanh %387 : vector<8x128xf32>
    %cst_96 = arith.constant 1.000000e+00 : f32
    %389 = vector.broadcast %cst_96 : f32 to vector<8x128xf32>
    %390 = arith.subf %389, %382 : vector<8x128xf32>
    %391 = arith.mulf %390, %388 : vector<8x128xf32>
    %392 = arith.mulf %382, %326 : vector<8x128xf32>
    %393 = arith.addf %391, %392 : vector<8x128xf32>
    %394 = vector.extract_strided_slice %393 {offsets = [0, 0], sizes = [8, 32], strides = [1, 1]} : vector<8x128xf32> to vector<8x32xf32>
    %395 = arith.truncf %394 : vector<8x32xf32> to vector<8x32xbf16>
    %c0_97 = arith.constant 0 : index
    %c0_98 = arith.constant 0 : index
    %396 = vector.load %arg5[%c0_97, %c0_98] : memref<32x768xbf16, #tpu.memory_space<vmem>>, vector<32x768xbf16>
    %cst_99 = arith.constant dense<0.000000e+00> : vector<8x768xf32>
    %397 = tpu.matmul %395, %396, %cst_99 {dimension_numbers = #tpu.dot_dimension_numbers<[1], [0], [0], [1], [0, 0, 1, 1], [], []>} : vector<8x32xbf16>, vector<32x768xbf16>, vector<8x768xf32> -> vector<8x768xf32>
    %398 = vector.extract_strided_slice %364 {offsets = [0, 0], sizes = [8, 32], strides = [1, 1]} : vector<8x128xf32> to vector<8x32xf32>
    %399 = arith.truncf %398 : vector<8x32xf32> to vector<8x32xbf16>
    %c0_100 = arith.constant 0 : index
    %c0_101 = arith.constant 0 : index
    %400 = vector.load %arg7[%c0_100, %c0_101] : memref<32x384xbf16, #tpu.memory_space<vmem>>, vector<32x384xbf16>
    %cst_102 = arith.constant dense<0.000000e+00> : vector<8x384xf32>
    %401 = tpu.matmul %399, %400, %cst_102 {dimension_numbers = #tpu.dot_dimension_numbers<[1], [0], [0], [1], [0, 0, 1, 1], [], []>} : vector<8x32xbf16>, vector<32x384xbf16>, vector<8x384xf32> -> vector<8x384xf32>
    %402 = vector.extract_strided_slice %397 {offsets = [0, 384], sizes = [8, 384], strides = [1, 1]} : vector<8x768xf32> to vector<8x384xf32>
    %403 = vector.broadcast %21 : vector<1x384xf32> to vector<8x384xf32>
    %404 = arith.addf %402, %403 : vector<8x384xf32>
    %405 = vector.extract_strided_slice %404 {offsets = [0, 0], sizes = [8, 128], strides = [1, 1]} : vector<8x384xf32> to vector<8x128xf32>
    %406 = vector.extract_strided_slice %401 {offsets = [0, 0], sizes = [8, 128], strides = [1, 1]} : vector<8x384xf32> to vector<8x128xf32>
    %407 = arith.addf %405, %406 : vector<8x128xf32>
    %408 = arith.negf %407 : vector<8x128xf32>
    %409 = math.exp %408 : vector<8x128xf32>
    %cst_103 = arith.constant 1.000000e+00 : f32
    %410 = vector.broadcast %cst_103 : f32 to vector<8x128xf32>
    %411 = arith.addf %410, %409 : vector<8x128xf32>
    %412 = arith.divf %410, %411 : vector<8x128xf32>
    %413 = vector.extract_strided_slice %404 {offsets = [0, 128], sizes = [8, 128], strides = [1, 1]} : vector<8x384xf32> to vector<8x128xf32>
    %414 = vector.extract_strided_slice %401 {offsets = [0, 128], sizes = [8, 128], strides = [1, 1]} : vector<8x384xf32> to vector<8x128xf32>
    %415 = arith.addf %413, %414 : vector<8x128xf32>
    %416 = arith.negf %415 : vector<8x128xf32>
    %417 = math.exp %416 : vector<8x128xf32>
    %cst_104 = arith.constant 1.000000e+00 : f32
    %418 = vector.broadcast %cst_104 : f32 to vector<8x128xf32>
    %419 = arith.addf %418, %417 : vector<8x128xf32>
    %420 = arith.divf %418, %419 : vector<8x128xf32>
    %421 = vector.extract_strided_slice %404 {offsets = [0, 256], sizes = [8, 128], strides = [1, 1]} : vector<8x384xf32> to vector<8x128xf32>
    %422 = vector.extract_strided_slice %401 {offsets = [0, 256], sizes = [8, 128], strides = [1, 1]} : vector<8x384xf32> to vector<8x128xf32>
    %423 = arith.addf %422, %20 : vector<8x128xf32>
    %424 = arith.mulf %412, %423 : vector<8x128xf32>
    %425 = arith.addf %421, %424 : vector<8x128xf32>
    %426 = math.tanh %425 : vector<8x128xf32>
    %cst_105 = arith.constant 1.000000e+00 : f32
    %427 = vector.broadcast %cst_105 : f32 to vector<8x128xf32>
    %428 = arith.subf %427, %420 : vector<8x128xf32>
    %429 = arith.mulf %428, %426 : vector<8x128xf32>
    %430 = arith.mulf %420, %364 : vector<8x128xf32>
    %431 = arith.addf %429, %430 : vector<8x128xf32>
    %432 = tpu.concatenate %96, %163, %230, %297, %364, %431 in 0 : vector<8x128xf32>, vector<8x128xf32>, vector<8x128xf32>, vector<8x128xf32>, vector<8x128xf32>, vector<8x128xf32> -> vector<48x128xf32>
    %433 = arith.truncf %432 : vector<48x128xf32> to vector<48x128xbf16>
    %c0_106 = arith.constant 0 : index
    %c0_107 = arith.constant 0 : index
    %434 = vector.load %arg11[%c0_106, %c0_107] : memref<128x128xbf16, #tpu.memory_space<vmem>>, vector<128x128xbf16>
    %cst_108 = arith.constant dense<0.000000e+00> : vector<48x128xf32>
    %435 = tpu.matmul %433, %434, %cst_108 {dimension_numbers = #tpu.dot_dimension_numbers<[1], [0], [0], [1], [0, 0, 1, 1], [], []>} : vector<48x128xbf16>, vector<128x128xbf16>, vector<48x128xf32> -> vector<48x128xf32>
    %c0_109 = arith.constant 0 : index
    %c0_110 = arith.constant 0 : index
    %436 = vector.load %arg12[%c0_109, %c0_110] : memref<1x128xf32, #tpu.memory_space<vmem>>, vector<1x128xf32>
    %437 = vector.broadcast %436 : vector<1x128xf32> to vector<48x128xf32>
    %438 = arith.addf %435, %437 : vector<48x128xf32>
    %c0_111 = arith.constant 0 : index
    %c0_112 = arith.constant 0 : index
    %439 = vector.load %arg13[%c0_111, %c0_112] : memref<48x128xf32, #tpu.memory_space<vmem>>, vector<48x128xf32>
    tpu.vector_store %arg13[%c0_111, %c0_112], %438 {strides = array<i32>} : memref<48x128xf32, #tpu.memory_space<vmem>>, vector<48x128xf32>,
    %c0_113 = arith.constant 0 : index
    %c0_114 = arith.constant 0 : index
    %c0_115 = arith.constant 0 : index
    %440 = vector.load %arg14[%c0_113, %c0_114, %c0_115] : memref<2x8x128xf32, #tpu.memory_space<vmem>>, vector<1x8x128xf32>
    %441 = vector.shape_cast %440 : vector<1x8x128xf32> to vector<8x128xf32>
    %442 = vector.shape_cast %393 : vector<8x128xf32> to vector<1x8x128xf32>
    tpu.vector_store %arg14[%c0_113, %c0_114, %c0_115], %442 {strides = array<i32>} : memref<2x8x128xf32, #tpu.memory_space<vmem>>, vector<1x8x128xf32>,
    %c1_116 = arith.constant 1 : index
    %c0_117 = arith.constant 0 : index
    %c0_118 = arith.constant 0 : index
    %443 = vector.load %arg14[%c1_116, %c0_117, %c0_118] : memref<2x8x128xf32, #tpu.memory_space<vmem>>, vector<1x8x128xf32>
    %444 = vector.shape_cast %443 : vector<1x8x128xf32> to vector<8x128xf32>
    %445 = vector.shape_cast %431 : vector<8x128xf32> to vector<1x8x128xf32>
    tpu.vector_store %arg14[%c1_116, %c0_117, %c0_118], %445 {strides = array<i32>} : memref<2x8x128xf32, #tpu.memory_space<vmem>>, vector<1x8x128xf32>,
    return
  }
}

</mosaic_0001>

<llo_original>
// kernel: multilayer_rnn_actor_forward.1
$region0: #{multilayer_rnn_actor_forward.1}
  #allocation0 [shape = 'u32[]', space=smem, size = 0x4, offset = 0x4, fixed_abs, tag = 'smem constant byte address 0x4 - core index']
  #allocation1 [shape = 'u32[144,128]{1,0:T(1,128)}', space=vmem, size = 0x12000, scoped, tag = 'internal scratch']
  #allocation2 [shape = 'f32[48,384]{1,0:T(8,128)}', space=vmem, size = 0x12000, scoped, tag = 'scratch operand']
  %s0 = inlined_call_operand.vmem [shape: bf16[48,20], index: 0, kind: input, shape index: {}]
  %s1 = inlined_call_operand.vmem [shape: bf16[20,32], index: 1, kind: input, shape index: {}]
  %s2 = inlined_call_operand.vmem [shape: f32[1,32], index: 2, kind: input, shape index: {}]
  %s3 = inlined_call_operand.vmem [shape: bf16[32,384], index: 3, kind: input, shape index: {}]
  %s4 = inlined_call_operand.vmem [shape: f32[1,384], index: 4, kind: input, shape index: {}]
  %s5 = inlined_call_operand.vmem [shape: bf16[32,768], index: 5, kind: input, shape index: {}]
  %s6 = inlined_call_operand.vmem [shape: f32[1,384], index: 6, kind: input, shape index: {}]
  %s7 = inlined_call_operand.vmem [shape: bf16[32,384], index: 7, kind: input, shape index: {}]
  %s8 = inlined_call_operand.vmem [shape: f32[1,128], index: 8, kind: input, shape index: {}]
  %s9 = inlined_call_operand.vmem [shape: f32[1,128], index: 9, kind: input, shape index: {}]
  %s10 = inlined_call_operand.vmem [shape: f32[2,8,128], index: 10, kind: input, shape index: {}]
  %s11 = inlined_call_operand.vmem [shape: bf16[128,128], index: 11, kind: input, shape index: {}]
  %s12 = inlined_call_operand.vmem [shape: f32[1,128], index: 12, kind: input, shape index: {}]
  %s13 = inlined_call_operand.vmem [shape: f32[48,128], index: 13, kind: output, shape index: {0}]
  %s14 = inlined_call_operand.hbm [shape: f32[2,8,128], index: 14, kind: output, shape index: {1}]
  %15 = xla_tuple %s13, %s14
  %s16 = sld [smem:[#allocation0]]
  $region70: #{multilayer_rnn_actor_forward.1} parent=0
    _
  %s18 = ssub.s32 1, %s16
  %s19 = scalar_select 0, %s18, %s16
  $region1: #{multilayer_rnn_actor_forward.1} parent=0
    #allocation3 [shape = 'u8[8192]{0}', space=vmem, size = 0x2000, scoped, tag = 'output window, operand 1, single buffered']
    #allocation4 [shape = 's32[1]{0}', space=sflag, size = 0x4, scoped, tag = 'scoped memory for multilayer_rnn_actor_forward.1']
    %20 = vsyncpa [#allocation4], 0
    // Predicated region
    $region2: #{multilayer_rnn_actor_forward.1} parent=1 // pred_check
      _
    $region3: #{multilayer_rnn_actor_forward.1} parent=1 // pred_check_branch
      %22 = sbr.rel (0) target = $region5
    $region4: #{multilayer_rnn_actor_forward.1} parent=1 // pred_region
      _
    $region5: #{multilayer_rnn_actor_forward.1} parent=1 // pred_fallthru
      _
    // Predicated region
    $region6: #{multilayer_rnn_actor_forward.1} parent=1 // pred_check
      _
    $region7: #{multilayer_rnn_actor_forward.1} parent=1 // pred_check_branch
      %24 = sbr.rel (0) target = $region9
    $region8: #{multilayer_rnn_actor_forward.1} parent=1 // pred_region
      _
    $region9: #{multilayer_rnn_actor_forward.1} parent=1 // pred_fallthru
      _
    // Predicated region
    $region10: #{multilayer_rnn_actor_forward.1} parent=1 // pred_check
      _
    $region11: #{multilayer_rnn_actor_forward.1} parent=1 // pred_check_branch
      %26 = sbr.rel (0) target = $region13
    $region12: #{multilayer_rnn_actor_forward.1} parent=1 // pred_region
      _
    $region13: #{multilayer_rnn_actor_forward.1} parent=1 // pred_fallthru
      _
    // Predicated region
    $region14: #{multilayer_rnn_actor_forward.1} parent=1 // pred_check
      _
    $region15: #{multilayer_rnn_actor_forward.1} parent=1 // pred_check_branch
      %28 = sbr.rel (0) target = $region17
    $region16: #{multilayer_rnn_actor_forward.1} parent=1 // pred_region
      _
    $region17: #{multilayer_rnn_actor_forward.1} parent=1 // pred_fallthru
      _
    // Predicated region
    $region18: #{multilayer_rnn_actor_forward.1} parent=1 // pred_check
      _
    $region19: #{multilayer_rnn_actor_forward.1} parent=1 // pred_check_branch
      %30 = sbr.rel (0) target = $region21
    $region20: #{multilayer_rnn_actor_forward.1} parent=1 // pred_region
      _
    $region21: #{multilayer_rnn_actor_forward.1} parent=1 // pred_fallthru
      _
    // Predicated region
    $region22: #{multilayer_rnn_actor_forward.1} parent=1 // pred_check
      _
    $region23: #{multilayer_rnn_actor_forward.1} parent=1 // pred_check_branch
      %32 = sbr.rel (0) target = $region25
    $region24: #{multilayer_rnn_actor_forward.1} parent=1 // pred_region
      _
    $region25: #{multilayer_rnn_actor_forward.1} parent=1 // pred_fallthru
      _
    // Predicated region
    $region26: #{multilayer_rnn_actor_forward.1} parent=1 // pred_check
      _
    $region27: #{multilayer_rnn_actor_forward.1} parent=1 // pred_check_branch
      %34 = sbr.rel (0) target = $region29
    $region28: #{multilayer_rnn_actor_forward.1} parent=1 // pred_region
      _
    $region29: #{multilayer_rnn_actor_forward.1} parent=1 // pred_fallthru
      _
    // Predicated region
    $region30: #{multilayer_rnn_actor_forward.1} parent=1 // pred_check
      _
    $region31: #{multilayer_rnn_actor_forward.1} parent=1 // pred_check_branch
      %36 = sbr.rel (0) target = $region33
    $region32: #{multilayer_rnn_actor_forward.1} parent=1 // pred_region
      _
    $region33: #{multilayer_rnn_actor_forward.1} parent=1 // pred_fallthru
      _
    // Predicated region
    $region34: #{multilayer_rnn_actor_forward.1} parent=1 // pred_check
      _
    $region35: #{multilayer_rnn_actor_forward.1} parent=1 // pred_check_branch
      %38 = sbr.rel (0) target = $region37
    $region36: #{multilayer_rnn_actor_forward.1} parent=1 // pred_region
      _
    $region37: #{multilayer_rnn_actor_forward.1} parent=1 // pred_fallthru
      _
    // Predicated region
    $region38: #{multilayer_rnn_actor_forward.1} parent=1 // pred_check
      _
    $region39: #{multilayer_rnn_actor_forward.1} parent=1 // pred_check_branch
      %40 = sbr.rel (0) target = $region41
    $region40: #{multilayer_rnn_actor_forward.1} parent=1 // pred_region
      _
    $region41: #{multilayer_rnn_actor_forward.1} parent=1 // pred_fallthru
      _
    // Predicated region
    $region42: #{multilayer_rnn_actor_forward.1} parent=1 // pred_check
      _
    $region43: #{multilayer_rnn_actor_forward.1} parent=1 // pred_check_branch
      %42 = sbr.rel (0) target = $region45
    $region44: #{multilayer_rnn_actor_forward.1} parent=1 // pred_region
      _
    $region45: #{multilayer_rnn_actor_forward.1} parent=1 // pred_fallthru
      _
    // Predicated region
    $region46: #{multilayer_rnn_actor_forward.1} parent=1 // pred_check
      _
    $region47: #{multilayer_rnn_actor_forward.1} parent=1 // pred_check_branch
      %44 = sbr.rel (0) target = $region49
    $region48: #{multilayer_rnn_actor_forward.1} parent=1 // pred_region
      _
    $region49: #{multilayer_rnn_actor_forward.1} parent=1 // pred_fallthru
      _
    // Predicated region
    $region50: #{multilayer_rnn_actor_forward.1} parent=1 // pred_check
      _
    $region51: #{multilayer_rnn_actor_forward.1} parent=1 // pred_check_branch
      %46 = sbr.rel (0) target = $region53
    $region52: #{multilayer_rnn_actor_forward.1} parent=1 // pred_region
      _
    $region53: #{multilayer_rnn_actor_forward.1} parent=1 // pred_fallthru
      _
    %v48 = vld [vmem:[%s0] sm:$0xf]
    %v49 = vld [vmem:[%s0 + $0x4] sm:$0xf]
    %v50 = vld [vmem:[%s0 + $0x8] sm:$0xf]
    %v51 = vld [vmem:[%s0 + $0xc] sm:$0xf]
    %v52 = vld [vmem:[%s0 + $0x10] sm:$0xf]
    %v53 = vld [vmem:[%s0 + $0x14] sm:$0xf]
    %v54 = vld [vmem:[%s1] sm:$0xf]
    %v55 = vld [vmem:[%s1 + $0x4] sm:$0xf]
    %v56 = vld [vmem:[%s1 + $0x8] sm:$0x3]
    %v57 = vld [vmem:[%s2] sm:$0x1]
    %v59 = vlaneseq
    %v60 = vshrl.u32 %v59, 7
    %v61 = vsub.s32 0, %v60
    %v62 = vrot.slane %v57, %v61
    %v70 = vunpack.c.l.b16 %v48
    %v71 = vunpack.c.l.b16 %v49
    %v72 = vunpack.c.l.b16 %v50
    %v73 = vunpack.c.l.b16 %v51
    %v74 = vunpack.c.l.b16 %v52
    %v75 = vunpack.c.l.b16 %v53
    %v76 = vpack.c.b16 %v71, %v70
    %v77 = vpack.c.b16 %v73, %v72
    %v78 = vpack.c.b16 %v75, %v74
    %v82 = vunpack.c.l.b16 %v54
    %v83 = vunpack.c.l.b16 %v55
    %v84 = vunpack.c.l.b16 %v56
    %v85 = vpack.c.b16 %v83, %v82
    %v86 = vpack.c.b16 %v84, %v84
    %vm88 = vcmask 162816
    %v90 = vsel %vm88, %v76, 0
    %v93 = vsel %vm88, %v77, 0
    %v96 = vsel %vm88, %v78, 0
    %vm98 = vcmask 1041408
    %v100 = vsel %vm98, %v86, 0
    %102 = vmatprep.subr.bf16.mxu0 0
    %103 = vmatpush1.bf16.msra.mxu0 %v85
    %104 = vmatprep.subr.bf16.mxu0 0
    %105 = vmatpush1.bf16.msra.mxu0 %v100
    %106 = vmatprep.subr.bf16.mxu0 0
    %107 = vmatpush1.bf16.msra.mxu0 0
    %108 = vmatprep.subr.bf16.mxu0 0
    %109 = vmatpush1.bf16.msra.mxu0 0
    %110 = vmatprep.subr.bf16.mxu0 0
    %111 = vmatpush1.bf16.msra.mxu0 0
    %112 = vmatprep.subr.bf16.mxu0 0
    %113 = vmatpush1.bf16.msra.mxu0 0
    %114 = vmatprep.subr.bf16.mxu0 0
    %115 = vmatpush1.bf16.msra.mxu0 0
    %116 = vmatprep.subr.bf16.mxu0 0
    %117 = vmatpush1.bf16.msra.mxu0 0
    %118 = vmatprep.subr.bf16.mxu0 0
    %119 = vmatpush1.bf16.msra.mxu0 0
    %120 = vmatprep.subr.bf16.mxu0 0
    %121 = vmatpush1.bf16.msra.mxu0 0
    %122 = vmatprep.subr.bf16.mxu0 0
    %123 = vmatpush1.bf16.msra.mxu0 0
    %124 = vmatprep.subr.bf16.mxu0 0
    %125 = vmatpush1.bf16.msra.mxu0 0
    %126 = vmatprep.subr.bf16.mxu0 0
    %127 = vmatpush1.bf16.msra.mxu0 0
    %128 = vmatprep.subr.bf16.mxu0 0
    %129 = vmatpush1.bf16.msra.mxu0 0
    %130 = vmatprep.subr.bf16.mxu0 0
    %131 = vmatpush1.bf16.msra.mxu0 0
    %132 = vmatprep.subr.bf16.mxu0 0
    %133 = vmatpush1.bf16.msra.mxu0 0
    %134 = vmatprep.mubr.bf16.mxu0 0
    %135 = vmatmul.mubr.bf16.gmra.mrb[0].mxu0 %v90
    %v136 = vpop.f32.mrb[0].mxu0
    %v137 = vadd.f32 %v62, %v136
    %v138 = vpop.f32.mrb[0].mxu0
    %v139 = vpop.f32.mrb[0].mxu0
    %v140 = vadd.f32 %v62, %v139
    %v141 = vpop.f32.mrb[0].mxu0
    %142 = vmatprep.mubr.bf16.mxu0 0
    %143 = vmatmul.mubr.bf16.gmra.mrb[0].mxu0 %v93
    %v144 = vpop.f32.mrb[0].mxu0
    %v145 = vadd.f32 %v62, %v144
    %v146 = vpop.f32.mrb[0].mxu0
    %v147 = vpop.f32.mrb[0].mxu0
    %v148 = vadd.f32 %v62, %v147
    %v149 = vpop.f32.mrb[0].mxu0
    %150 = vmatprep.mubr.bf16.mxu0 0
    %151 = vmatmul.mubr.bf16.gmra.mrb[0].mxu0 %v96
    %v152 = vpop.f32.mrb[0].mxu0
    %v153 = vadd.f32 %v62, %v152
    %v154 = vpop.f32.mrb[0].mxu0
    %v155 = vpop.f32.mrb[0].mxu0
    %v156 = vadd.f32 %v62, %v155
    %v157 = vpop.f32.mrb[0].mxu0
    %158 = vdwg.mxu0
    %v159 = vmax.f32 %v137, 0.0
    %v160 = vmax.f32 %v140, 0.0
    %v161 = vmax.f32 %v145, 0.0
    %v162 = vmax.f32 %v148, 0.0
    %v163 = vmax.f32 %v153, 0.0
    %v164 = vmax.f32 %v156, 0.0
    %v165 = vpack.c.bf16 %v160, %v159
    %v166 = vpack.c.bf16 %v162, %v161
    %v167 = vpack.c.bf16 %v164, %v163
    %v168 = vld [vmem:[%s3] sm:$0xff]
    %v169 = vld [vmem:[%s3 + $0x8] sm:$0xf]
    %v170 = vld [vmem:[%s3 + $0xc] sm:$0xff]
    %v171 = vld [vmem:[%s3 + $0x14] sm:$0xf]
    %v172 = vld [vmem:[%s3 + $0x18] sm:$0xff]
    %v173 = vld [vmem:[%s3 + $0x20] sm:$0xf]
    %v174 = vld [vmem:[%s3 + $0x24] sm:$0xff]
    %v175 = vld [vmem:[%s3 + $0x2c] sm:$0xf]
    %v176 = vld [vmem:[%s4] sm:$0x7]
    %v178 = vlaneseq
    %v179 = vshrl.u32 %v178, 7
    %v180 = vsub.s32 0, %v179
    %v181 = vrot.slane %v176, %v180
    %v182 = vlaneseq
    %v183 = vshrl.u32 %v182, 7
    %v184 = vsub.s32 1, %v183
    %v185 = vrot.slane %v176, %v184
    %v186 = vlaneseq
    %v187 = vshrl.u32 %v186, 7
    %v188 = vsub.s32 2, %v187
    %v189 = vrot.slane %v176, %v188
    %v201 = vunpack.c.l.b16 %v168
    %v202 = vunpack.c.h.b16 %v168
    %v203 = vunpack.c.l.b16 %v169
    %v204 = vunpack.c.l.b16 %v170
    %v205 = vunpack.c.h.b16 %v170
    %v206 = vunpack.c.l.b16 %v171
    %v207 = vunpack.c.l.b16 %v172
    %v208 = vunpack.c.h.b16 %v172
    %v209 = vunpack.c.l.b16 %v173
    %v210 = vunpack.c.l.b16 %v174
    %v211 = vunpack.c.h.b16 %v174
    %v212 = vunpack.c.l.b16 %v175
    %v213 = vpack.c.b16 %v204, %v201
    %v214 = vpack.c.b16 %v205, %v202
    %v215 = vpack.c.b16 %v206, %v203
    %v216 = vpack.c.b16 %v210, %v207
    %v217 = vpack.c.b16 %v211, %v208
    %v218 = vpack.c.b16 %v212, %v209
    %vm225 = vcmask 261120
    %v227 = vsel %vm225, %v165, 0
    %v230 = vsel %vm225, %v166, 0
    %v233 = vsel %vm225, %v167, 0
    %235 = vmatprep.subr.bf16.mxu0 %v214
    %236 = vmatpush1.bf16.msra.mxu0 %v213
    %237 = vmatprep.subr.bf16.mxu0 %v217
    %238 = vmatpush1.bf16.msra.mxu0 %v216
    %239 = vmatprep.subr.bf16.mxu0 0
    %240 = vmatpush1.bf16.msra.mxu0 0
    %241 = vmatprep.subr.bf16.mxu0 0
    %242 = vmatpush1.bf16.msra.mxu0 0
    %243 = vmatprep.subr.bf16.mxu0 0
    %244 = vmatpush1.bf16.msra.mxu0 0
    %245 = vmatprep.subr.bf16.mxu0 0
    %246 = vmatpush1.bf16.msra.mxu0 0
    %247 = vmatprep.subr.bf16.mxu0 0
    %248 = vmatpush1.bf16.msra.mxu0 0
    %249 = vmatprep.subr.bf16.mxu0 0
    %250 = vmatpush1.bf16.msra.mxu0 0
    %251 = vmatprep.subr.bf16.mxu0 0
    %252 = vmatpush1.bf16.msra.mxu0 0
    %253 = vmatprep.subr.bf16.mxu0 0
    %254 = vmatpush1.bf16.msra.mxu0 0
    %255 = vmatprep.subr.bf16.mxu0 0
    %256 = vmatpush1.bf16.msra.mxu0 0
    %257 = vmatprep.subr.bf16.mxu0 0
    %258 = vmatpush1.bf16.msra.mxu0 0
    %259 = vmatprep.subr.bf16.mxu0 0
    %260 = vmatpush1.bf16.msra.mxu0 0
    %261 = vmatprep.subr.bf16.mxu0 0
    %262 = vmatpush1.bf16.msra.mxu0 0
    %263 = vmatprep.subr.bf16.mxu0 0
    %264 = vmatpush1.bf16.msra.mxu0 0
    %265 = vmatprep.subr.bf16.mxu0 0
    %266 = vmatpush1.bf16.msra.mxu0 0
    %267 = vmatprep.mubr.bf16.mxu0 0
    %268 = vmatmul.mubr.bf16.gmra.mrb[0].mxu0 %v227
    %v269 = vpop.f32.mrb[0].mxu0
    %v270 = vadd.f32 %v181, %v269
    %v271 = vpop.f32.mrb[0].mxu0
    %v272 = vadd.f32 %v185, %v271
    %v273 = vpop.f32.mrb[0].mxu0
    %v274 = vadd.f32 %v181, %v273
    %v275 = vpop.f32.mrb[0].mxu0
    %v276 = vadd.f32 %v185, %v275
    %277 = vmatprep.mubr.bf16.mxu0 0
    %278 = vmatmul.mubr.bf16.gmra.mrb[0].mxu0 %v230
    %v279 = vpop.f32.mrb[0].mxu0
    %v280 = vadd.f32 %v181, %v279
    %v281 = vpop.f32.mrb[0].mxu0
    %v282 = vadd.f32 %v185, %v281
    %v283 = vpop.f32.mrb[0].mxu0
    %v284 = vadd.f32 %v181, %v283
    %v285 = vpop.f32.mrb[0].mxu0
    %v286 = vadd.f32 %v185, %v285
    %287 = vmatprep.mubr.bf16.mxu0 0
    %288 = vmatmul.mubr.bf16.gmra.mrb[0].mxu0 %v233
    %v289 = vpop.f32.mrb[0].mxu0
    %v290 = vadd.f32 %v181, %v289
    %v291 = vpop.f32.mrb[0].mxu0
    %v292 = vadd.f32 %v185, %v291
    %v293 = vpop.f32.mrb[0].mxu0
    %v294 = vadd.f32 %v181, %v293
    %v295 = vpop.f32.mrb[0].mxu0
    %v296 = vadd.f32 %v185, %v295
    %297 = vdwg.mxu0
    %298 = vmatprep.subr.bf16.mxu0 0
    %299 = vmatpush1.bf16.msra.mxu0 %v215
    %300 = vmatprep.subr.bf16.mxu0 0
    %301 = vmatpush1.bf16.msra.mxu0 %v218
    %302 = vmatprep.subr.bf16.mxu0 0
    %303 = vmatpush1.bf16.msra.mxu0 0
    %304 = vmatprep.subr.bf16.mxu0 0
    %305 = vmatpush1.bf16.msra.mxu0 0
    %306 = vmatprep.subr.bf16.mxu0 0
    %307 = vmatpush1.bf16.msra.mxu0 0
    %308 = vmatprep.subr.bf16.mxu0 0
    %309 = vmatpush1.bf16.msra.mxu0 0
    %310 = vmatprep.subr.bf16.mxu0 0
    %311 = vmatpush1.bf16.msra.mxu0 0
    %312 = vmatprep.subr.bf16.mxu0 0
    %313 = vmatpush1.bf16.msra.mxu0 0
    %314 = vmatprep.subr.bf16.mxu0 0
    %315 = vmatpush1.bf16.msra.mxu0 0
    %316 = vmatprep.subr.bf16.mxu0 0
    %317 = vmatpush1.bf16.msra.mxu0 0
    %318 = vmatprep.subr.bf16.mxu0 0
    %319 = vmatpush1.bf16.msra.mxu0 0
    %320 = vmatprep.subr.bf16.mxu0 0
    %321 = vmatpush1.bf16.msra.mxu0 0
    %322 = vmatprep.subr.bf16.mxu0 0
    %323 = vmatpush1.bf16.msra.mxu0 0
    %324 = vmatprep.subr.bf16.mxu0 0
    %325 = vmatpush1.bf16.msra.mxu0 0
    %326 = vmatprep.subr.bf16.mxu0 0
    %327 = vmatpush1.bf16.msra.mxu0 0
    %328 = vmatprep.subr.bf16.mxu0 0
    %329 = vmatpush1.bf16.msra.mxu0 0
    %330 = vmatprep.mubr.bf16.mxu0 0
    %331 = vmatmul.mubr.bf16.gmra.mrb[0].mxu0 %v227
    %v332 = vpop.f32.mrb[0].mxu0
    %v333 = vadd.f32 %v189, %v332
    %v334 = vpop.f32.mrb[0].mxu0
    %v335 = vpop.f32.mrb[0].mxu0
    %v336 = vadd.f32 %v189, %v335
    %v337 = vpop.f32.mrb[0].mxu0
    %338 = vmatprep.mubr.bf16.mxu0 0
    %339 = vmatmul.mubr.bf16.gmra.mrb[0].mxu0 %v230
    %v340 = vpop.f32.mrb[0].mxu0
    %v341 = vadd.f32 %v189, %v340
    %v342 = vpop.f32.mrb[0].mxu0
    %v343 = vpop.f32.mrb[0].mxu0
    %v344 = vadd.f32 %v189, %v343
    %v345 = vpop.f32.mrb[0].mxu0
    %346 = vmatprep.mubr.bf16.mxu0 0
    %347 = vmatmul.mubr.bf16.gmra.mrb[0].mxu0 %v233
    %v348 = vpop.f32.mrb[0].mxu0
    %v349 = vadd.f32 %v189, %v348
    %v350 = vpop.f32.mrb[0].mxu0
    %v351 = vpop.f32.mrb[0].mxu0
    %v352 = vadd.f32 %v189, %v351
    %v353 = vpop.f32.mrb[0].mxu0
    %354 = vdwg.mxu0
    %355 = vst [vmem:[#allocation2] sm:$0xff] %v270
    %356 = vst [vmem:[#allocation2 + $0x8] sm:$0xff] %v272
    %357 = vst [vmem:[#allocation2 + $0x10] sm:$0xff] %v333
    %358 = vst [vmem:[#allocation2 + $0x18] sm:$0xff] %v274
    %359 = vst [vmem:[#allocation2 + $0x20] sm:$0xff] %v276
    %360 = vst [vmem:[#allocation2 + $0x28] sm:$0xff] %v336
    %361 = vst [vmem:[#allocation2 + $0x30] sm:$0xff] %v280
    %362 = vst [vmem:[#allocation2 + $0x38] sm:$0xff] %v282
    %363 = vst [vmem:[#allocation2 + $0x40] sm:$0xff] %v341
    %364 = vst [vmem:[#allocation2 + $0x48] sm:$0xff] %v284
    %365 = vst [vmem:[#allocation2 + $0x50] sm:$0xff] %v286
    %366 = vst [vmem:[#allocation2 + $0x58] sm:$0xff] %v344
    %367 = vst [vmem:[#allocation2 + $0x60] sm:$0xff] %v290
    %368 = vst [vmem:[#allocation2 + $0x68] sm:$0xff] %v292
    %369 = vst [vmem:[#allocation2 + $0x70] sm:$0xff] %v349
    %370 = vst [vmem:[#allocation2 + $0x78] sm:$0xff] %v294
    %371 = vst [vmem:[#allocation2 + $0x80] sm:$0xff] %v296
    %372 = vst [vmem:[#allocation2 + $0x88] sm:$0xff] %v352
    %v373 = vld [vmem:[%s8] sm:$0x1]
    %v375 = vlaneseq
    %v376 = vshrl.u32 %v375, 7
    %v377 = vsub.s32 0, %v376
    %v378 = vrot.slane %v373, %v377
    %v380 = vld [vmem:[%s9] sm:$0x1]
    %v382 = vlaneseq
    %v383 = vshrl.u32 %v382, 7
    %v384 = vsub.s32 0, %v383
    %v385 = vrot.slane %v380, %v384
    %v387 = vld [vmem:[%s6] sm:$0x7]
    %v388 = vld [vmem:[%s10] sm:$0xff]
    %s389 = scalar_lea.vmem %s10, 8
    %v390 = vld [vmem:[%s389] sm:$0xff]
    %v391 = vpack.c.bf16 %v388, %v388
    %v392 = vld [vmem:[%s5] sm:$0xff]
    %v393 = vld [vmem:[%s5 + $0x8] sm:$0xff]
    %v394 = vld [vmem:[%s5 + $0x10] sm:$0xff]
    %v395 = vld [vmem:[%s5 + $0x18] sm:$0xff]
    %v396 = vld [vmem:[%s5 + $0x20] sm:$0xff]
    %v397 = vld [vmem:[%s5 + $0x28] sm:$0xff]
    %v398 = vld [vmem:[%s5 + $0x30] sm:$0xff]
    %v399 = vld [vmem:[%s5 + $0x38] sm:$0xff]
    %v400 = vld [vmem:[%s5 + $0x40] sm:$0xff]
    %v401 = vld [vmem:[%s5 + $0x48] sm:$0xff]
    %v402 = vld [vmem:[%s5 + $0x50] sm:$0xff]
    %v403 = vld [vmem:[%s5 + $0x58] sm:$0xff]
    %v412 = vunpack.c.l.b16 %v392
    %v413 = vunpack.c.h.b16 %v392
    %v414 = vunpack.c.l.b16 %v393
    %v415 = vunpack.c.h.b16 %v393
    %v416 = vunpack.c.l.b16 %v395
    %v417 = vunpack.c.h.b16 %v395
    %v418 = vunpack.c.l.b16 %v396
    %v419 = vunpack.c.h.b16 %v396
    %v420 = vunpack.c.l.b16 %v398
    %v421 = vunpack.c.h.b16 %v398
    %v422 = vunpack.c.l.b16 %v399
    %v423 = vunpack.c.h.b16 %v399
    %v424 = vunpack.c.l.b16 %v401
    %v425 = vunpack.c.h.b16 %v401
    %v426 = vunpack.c.l.b16 %v402
    %v427 = vunpack.c.h.b16 %v402
    %v428 = vpack.c.b16 %v416, %v412
    %v429 = vpack.c.b16 %v417, %v413
    %v430 = vpack.c.b16 %v418, %v414
    %v431 = vpack.c.b16 %v419, %v415
    %v432 = vpack.c.b16 %v424, %v420
    %v433 = vpack.c.b16 %v425, %v421
    %v434 = vpack.c.b16 %v426, %v422
    %v435 = vpack.c.b16 %v427, %v423
    %v445 = vsel %vm225, %v391, 0
    %447 = vmatprep.subr.bf16.mxu0 %v429
    %448 = vmatpush1.bf16.msra.mxu0 %v428
    %449 = vmatprep.subr.bf16.mxu0 %v433
    %450 = vmatpush1.bf16.msra.mxu0 %v432
    %451 = vmatprep.subr.bf16.mxu0 0
    %452 = vmatpush1.bf16.msra.mxu0 0
    %453 = vmatprep.subr.bf16.mxu0 0
    %454 = vmatpush1.bf16.msra.mxu0 0
    %455 = vmatprep.subr.bf16.mxu0 0
    %456 = vmatpush1.bf16.msra.mxu0 0
    %457 = vmatprep.subr.bf16.mxu0 0
    %458 = vmatpush1.bf16.msra.mxu0 0
    %459 = vmatprep.subr.bf16.mxu0 0
    %460 = vmatpush1.bf16.msra.mxu0 0
    %461 = vmatprep.subr.bf16.mxu0 0
    %462 = vmatpush1.bf16.msra.mxu0 0
    %463 = vmatprep.subr.bf16.mxu0 0
    %464 = vmatpush1.bf16.msra.mxu0 0
    %465 = vmatprep.subr.bf16.mxu0 0
    %466 = vmatpush1.bf16.msra.mxu0 0
    %467 = vmatprep.subr.bf16.mxu0 0
    %468 = vmatpush1.bf16.msra.mxu0 0
    %469 = vmatprep.subr.bf16.mxu0 0
    %470 = vmatpush1.bf16.msra.mxu0 0
    %471 = vmatprep.subr.bf16.mxu0 0
    %472 = vmatpush1.bf16.msra.mxu0 0
    %473 = vmatprep.subr.bf16.mxu0 0
    %474 = vmatpush1.bf16.msra.mxu0 0
    %475 = vmatprep.subr.bf16.mxu0 0
    %476 = vmatpush1.bf16.msra.mxu0 0
    %477 = vmatprep.subr.bf16.mxu0 0
    %478 = vmatpush1.bf16.msra.mxu0 0
    %479 = vmatprep.mubr.bf16.mxu0 0
    %480 = vmatmul.mubr.bf16.gmra.mrb[0].mxu0 %v445
    %v481 = vpop.f32.mrb[0].mxu0
    %v482 = vadd.f32 0.0, %v481
    %v483 = vpop.f32.mrb[0].mxu0
    %v484 = vadd.f32 0.0, %v483
    %v485 = vpop.f32.mrb[0].mxu0
    %v486 = vpop.f32.mrb[0].mxu0
    %487 = vdwg.mxu0
    %488 = vmatprep.subr.bf16.mxu0 %v431
    %489 = vmatpush1.bf16.msra.mxu0 %v430
    %490 = vmatprep.subr.bf16.mxu0 %v435
    %491 = vmatpush1.bf16.msra.mxu0 %v434
    %492 = vmatprep.subr.bf16.mxu0 0
    %493 = vmatpush1.bf16.msra.mxu0 0
    %494 = vmatprep.subr.bf16.mxu0 0
    %495 = vmatpush1.bf16.msra.mxu0 0
    %496 = vmatprep.subr.bf16.mxu0 0
    %497 = vmatpush1.bf16.msra.mxu0 0
    %498 = vmatprep.subr.bf16.mxu0 0
    %499 = vmatpush1.bf16.msra.mxu0 0
    %500 = vmatprep.subr.bf16.mxu0 0
    %501 = vmatpush1.bf16.msra.mxu0 0
    %502 = vmatprep.subr.bf16.mxu0 0
    %503 = vmatpush1.bf16.msra.mxu0 0
    %504 = vmatprep.subr.bf16.mxu0 0
    %505 = vmatpush1.bf16.msra.mxu0 0
    %506 = vmatprep.subr.bf16.mxu0 0
    %507 = vmatpush1.bf16.msra.mxu0 0
    %508 = vmatprep.subr.bf16.mxu0 0
    %509 = vmatpush1.bf16.msra.mxu0 0
    %510 = vmatprep.subr.bf16.mxu0 0
    %511 = vmatpush1.bf16.msra.mxu0 0
    %512 = vmatprep.subr.bf16.mxu0 0
    %513 = vmatpush1.bf16.msra.mxu0 0
    %514 = vmatprep.subr.bf16.mxu0 0
    %515 = vmatpush1.bf16.msra.mxu0 0
    %516 = vmatprep.subr.bf16.mxu0 0
    %517 = vmatpush1.bf16.msra.mxu0 0
    %518 = vmatprep.subr.bf16.mxu0 0
    %519 = vmatpush1.bf16.msra.mxu0 0
    %520 = vmatprep.mubr.bf16.mxu0 0
    %521 = vmatmul.mubr.bf16.gmra.mrb[0].mxu0 %v445
    %v522 = vpop.f32.mrb[0].mxu0
    %v523 = vadd.f32 0.0, %v522
    %v524 = vpop.f32.mrb[0].mxu0
    %v525 = vpop.f32.mrb[0].mxu0
    %v526 = vpop.f32.mrb[0].mxu0
    %527 = vdwg.mxu0
    %v528 = vld [vmem:[#allocation2] sm:$0xff]
    %v529 = vld [vmem:[#allocation2 + $0x8] sm:$0xff]
    %v530 = vld [vmem:[#allocation2 + $0x10] sm:$0xff]
    %v531 = vadd.f32 %v528, %v482
    %v532 = vxor.u32 %v531, 2147483648
    %v533 = vmul.f32 %v532, 1.442695
    %v534 = vpow.pop %v533
    %v535 = vadd.f32 %v534, 1.0
    %v536 = vrcp.pop %v535
    %v537 = vmul.f32 1.0, %v536
    %v538 = vadd.f32 %v529, %v484
    %v539 = vxor.u32 %v538, 2147483648
    %v540 = vmul.f32 %v539, 1.442695
    %v541 = vpow.pop %v540
    %v542 = vadd.f32 %v541, 1.0
    %v543 = vrcp.pop %v542
    %v544 = vmul.f32 1.0, %v543
    %v545 = vadd.f32 %v523, %v378
    %v546 = vmul.f32 %v537, %v545
    %v547 = vadd.f32 %v530, %v546
    %v548 = vtanh.pop %v547
    %v549 = vsub.f32 1.0, %v544
    %v550 = vmul.f32 %v549, %v548
    %v551 = vmul.f32 %v544, %v388
    %v552 = vadd.f32 %v550, %v551
    %v553 = vpack.c.bf16 %v552, %v552
    %v558 = vunpack.c.l.b16 %v394
    %v559 = vunpack.c.h.b16 %v394
    %v560 = vunpack.c.l.b16 %v397
    %v561 = vunpack.c.h.b16 %v397
    %v562 = vunpack.c.l.b16 %v400
    %v563 = vunpack.c.h.b16 %v400
    %v564 = vunpack.c.l.b16 %v403
    %v565 = vunpack.c.h.b16 %v403
    %v566 = vpack.c.b16 %v560, %v558
    %v567 = vpack.c.b16 %v561, %v559
    %v568 = vpack.c.b16 %v564, %v562
    %v569 = vpack.c.b16 %v565, %v563
    %v575 = vsel %vm225, %v553, 0
    %577 = vmatprep.subr.bf16.mxu0 %v429
    %578 = vmatpush1.bf16.msra.mxu0 %v428
    %579 = vmatprep.subr.bf16.mxu0 %v433
    %580 = vmatpush1.bf16.msra.mxu0 %v432
    %581 = vmatprep.subr.bf16.mxu0 0
    %582 = vmatpush1.bf16.msra.mxu0 0
    %583 = vmatprep.subr.bf16.mxu0 0
    %584 = vmatpush1.bf16.msra.mxu0 0
    %585 = vmatprep.subr.bf16.mxu0 0
    %586 = vmatpush1.bf16.msra.mxu0 0
    %587 = vmatprep.subr.bf16.mxu0 0
    %588 = vmatpush1.bf16.msra.mxu0 0
    %589 = vmatprep.subr.bf16.mxu0 0
    %590 = vmatpush1.bf16.msra.mxu0 0
    %591 = vmatprep.subr.bf16.mxu0 0
    %592 = vmatpush1.bf16.msra.mxu0 0
    %593 = vmatprep.subr.bf16.mxu0 0
    %594 = vmatpush1.bf16.msra.mxu0 0
    %595 = vmatprep.subr.bf16.mxu0 0
    %596 = vmatpush1.bf16.msra.mxu0 0
    %597 = vmatprep.subr.bf16.mxu0 0
    %598 = vmatpush1.bf16.msra.mxu0 0
    %599 = vmatprep.subr.bf16.mxu0 0
    %600 = vmatpush1.bf16.msra.mxu0 0
    %601 = vmatprep.subr.bf16.mxu0 0
    %602 = vmatpush1.bf16.msra.mxu0 0
    %603 = vmatprep.subr.bf16.mxu0 0
    %604 = vmatpush1.bf16.msra.mxu0 0
    %605 = vmatprep.subr.bf16.mxu0 0
    %606 = vmatpush1.bf16.msra.mxu0 0
    %607 = vmatprep.subr.bf16.mxu0 0
    %608 = vmatpush1.bf16.msra.mxu0 0
    %609 = vmatprep.mubr.bf16.mxu0 0
    %610 = vmatmul.mubr.bf16.gmra.mrb[0].mxu0 %v575
    %v611 = vpop.f32.mrb[0].mxu0
    %v612 = vadd.f32 0.0, %v611
    %v613 = vpop.f32.mrb[0].mxu0
    %v614 = vadd.f32 0.0, %v613
    %v615 = vpop.f32.mrb[0].mxu0
    %v616 = vpop.f32.mrb[0].mxu0
    %617 = vdwg.mxu0
    %618 = vmatprep.subr.bf16.mxu0 %v431
    %619 = vmatpush1.bf16.msra.mxu0 %v430
    %620 = vmatprep.subr.bf16.mxu0 %v435
    %621 = vmatpush1.bf16.msra.mxu0 %v434
    %622 = vmatprep.subr.bf16.mxu0 0
    %623 = vmatpush1.bf16.msra.mxu0 0
    %624 = vmatprep.subr.bf16.mxu0 0
    %625 = vmatpush1.bf16.msra.mxu0 0
    %626 = vmatprep.subr.bf16.mxu0 0
    %627 = vmatpush1.bf16.msra.mxu0 0
    %628 = vmatprep.subr.bf16.mxu0 0
    %629 = vmatpush1.bf16.msra.mxu0 0
    %630 = vmatprep.subr.bf16.mxu0 0
    %631 = vmatpush1.bf16.msra.mxu0 0
    %632 = vmatprep.subr.bf16.mxu0 0
    %633 = vmatpush1.bf16.msra.mxu0 0
    %634 = vmatprep.subr.bf16.mxu0 0
    %635 = vmatpush1.bf16.msra.mxu0 0
    %636 = vmatprep.subr.bf16.mxu0 0
    %637 = vmatpush1.bf16.msra.mxu0 0
    %638 = vmatprep.subr.bf16.mxu0 0
    %639 = vmatpush1.bf16.msra.mxu0 0
    %640 = vmatprep.subr.bf16.mxu0 0
    %641 = vmatpush1.bf16.msra.mxu0 0
    %642 = vmatprep.subr.bf16.mxu0 0
    %643 = vmatpush1.bf16.msra.mxu0 0
    %644 = vmatprep.subr.bf16.mxu0 0
    %645 = vmatpush1.bf16.msra.mxu0 0
    %646 = vmatprep.subr.bf16.mxu0 0
    %647 = vmatpush1.bf16.msra.mxu0 0
    %648 = vmatprep.subr.bf16.mxu0 0
    %649 = vmatpush1.bf16.msra.mxu0 0
    %650 = vmatprep.mubr.bf16.mxu0 0
    %651 = vmatmul.mubr.bf16.gmra.mrb[0].mxu0 %v575
    %v652 = vpop.f32.mrb[0].mxu0
    %v653 = vadd.f32 0.0, %v652
    %v654 = vpop.f32.mrb[0].mxu0
    %v655 = vadd.f32 0.0, %v654
    %v656 = vpop.f32.mrb[0].mxu0
    %v657 = vpop.f32.mrb[0].mxu0
    %658 = vdwg.mxu0
    %659 = vmatprep.subr.bf16.mxu0 %v567
    %660 = vmatpush1.bf16.msra.mxu0 %v566
    %661 = vmatprep.subr.bf16.mxu0 %v569
    %662 = vmatpush1.bf16.msra.mxu0 %v568
    %663 = vmatprep.subr.bf16.mxu0 0
    %664 = vmatpush1.bf16.msra.mxu0 0
    %665 = vmatprep.subr.bf16.mxu0 0
    %666 = vmatpush1.bf16.msra.mxu0 0
    %667 = vmatprep.subr.bf16.mxu0 0
    %668 = vmatpush1.bf16.msra.mxu0 0
    %669 = vmatprep.subr.bf16.mxu0 0
    %670 = vmatpush1.bf16.msra.mxu0 0
    %671 = vmatprep.subr.bf16.mxu0 0
    %672 = vmatpush1.bf16.msra.mxu0 0
    %673 = vmatprep.subr.bf16.mxu0 0
    %674 = vmatpush1.bf16.msra.mxu0 0
    %675 = vmatprep.subr.bf16.mxu0 0
    %676 = vmatpush1.bf16.msra.mxu0 0
    %677 = vmatprep.subr.bf16.mxu0 0
    %678 = vmatpush1.bf16.msra.mxu0 0
    %679 = vmatprep.subr.bf16.mxu0 0
    %680 = vmatpush1.bf16.msra.mxu0 0
    %681 = vmatprep.subr.bf16.mxu0 0
    %682 = vmatpush1.bf16.msra.mxu0 0
    %683 = vmatprep.subr.bf16.mxu0 0
    %684 = vmatpush1.bf16.msra.mxu0 0
    %685 = vmatprep.subr.bf16.mxu0 0
    %686 = vmatpush1.bf16.msra.mxu0 0
    %687 = vmatprep.subr.bf16.mxu0 0
    %688 = vmatpush1.bf16.msra.mxu0 0
    %689 = vmatprep.subr.bf16.mxu0 0
    %690 = vmatpush1.bf16.msra.mxu0 0
    %691 = vmatprep.mubr.bf16.mxu0 0
    %692 = vmatmul.mubr.bf16.gmra.mrb[0].mxu0 %v575
    %v693 = vpop.f32.mrb[0].mxu0
    %v694 = vadd.f32 0.0, %v693
    %v695 = vpop.f32.mrb[0].mxu0
    %v696 = vadd.f32 0.0, %v695
    %v697 = vpop.f32.mrb[0].mxu0
    %v698 = vpop.f32.mrb[0].mxu0
    %699 = vdwg.mxu0
    %v700 = vpack.c.bf16 %v390, %v390
    %v701 = vld [vmem:[%s7] sm:$0xff]
    %v702 = vld [vmem:[%s7 + $0x8] sm:$0xf]
    %v703 = vld [vmem:[%s7 + $0xc] sm:$0xff]
    %v704 = vld [vmem:[%s7 + $0x14] sm:$0xf]
    %v705 = vld [vmem:[%s7 + $0x18] sm:$0xff]
    %v706 = vld [vmem:[%s7 + $0x20] sm:$0xf]
    %v707 = vld [vmem:[%s7 + $0x24] sm:$0xff]
    %v708 = vld [vmem:[%s7 + $0x2c] sm:$0xf]
    %v717 = vunpack.c.l.b16 %v701
    %v718 = vunpack.c.h.b16 %v701
    %v719 = vunpack.c.l.b16 %v702
    %v720 = vunpack.c.l.b16 %v703
    %v721 = vunpack.c.h.b16 %v703
    %v722 = vunpack.c.l.b16 %v704
    %v723 = vunpack.c.l.b16 %v705
    %v724 = vunpack.c.h.b16 %v705
    %v725 = vunpack.c.l.b16 %v706
    %v726 = vunpack.c.l.b16 %v707
    %v727 = vunpack.c.h.b16 %v707
    %v728 = vunpack.c.l.b16 %v708
    %v729 = vpack.c.b16 %v720, %v717
    %v730 = vpack.c.b16 %v721, %v718
    %v731 = vpack.c.b16 %v722, %v719
    %v732 = vpack.c.b16 %v726, %v723
    %v733 = vpack.c.b16 %v727, %v724
    %v734 = vpack.c.b16 %v728, %v725
    %v742 = vsel %vm225, %v700, 0
    %744 = vmatprep.subr.bf16.mxu0 %v730
    %745 = vmatpush1.bf16.msra.mxu0 %v729
    %746 = vmatprep.subr.bf16.mxu0 %v733
    %747 = vmatpush1.bf16.msra.mxu0 %v732
    %748 = vmatprep.subr.bf16.mxu0 0
    %749 = vmatpush1.bf16.msra.mxu0 0
    %750 = vmatprep.subr.bf16.mxu0 0
    %751 = vmatpush1.bf16.msra.mxu0 0
    %752 = vmatprep.subr.bf16.mxu0 0
    %753 = vmatpush1.bf16.msra.mxu0 0
    %754 = vmatprep.subr.bf16.mxu0 0
    %755 = vmatpush1.bf16.msra.mxu0 0
    %756 = vmatprep.subr.bf16.mxu0 0
    %757 = vmatpush1.bf16.msra.mxu0 0
    %758 = vmatprep.subr.bf16.mxu0 0
    %759 = vmatpush1.bf16.msra.mxu0 0
    %760 = vmatprep.subr.bf16.mxu0 0
    %761 = vmatpush1.bf16.msra.mxu0 0
    %762 = vmatprep.subr.bf16.mxu0 0
    %763 = vmatpush1.bf16.msra.mxu0 0
    %764 = vmatprep.subr.bf16.mxu0 0
    %765 = vmatpush1.bf16.msra.mxu0 0
    %766 = vmatprep.subr.bf16.mxu0 0
    %767 = vmatpush1.bf16.msra.mxu0 0
    %768 = vmatprep.subr.bf16.mxu0 0
    %769 = vmatpush1.bf16.msra.mxu0 0
    %770 = vmatprep.subr.bf16.mxu0 0
    %771 = vmatpush1.bf16.msra.mxu0 0
    %772 = vmatprep.subr.bf16.mxu0 0
    %773 = vmatpush1.bf16.msra.mxu0 0
    %774 = vmatprep.subr.bf16.mxu0 0
    %775 = vmatpush1.bf16.msra.mxu0 0
    %776 = vmatprep.mubr.bf16.mxu0 0
    %777 = vmatmul.mubr.bf16.gmra.mrb[0].mxu0 %v742
    %v778 = vpop.f32.mrb[0].mxu0
    %v779 = vadd.f32 0.0, %v778
    %v780 = vpop.f32.mrb[0].mxu0
    %v781 = vadd.f32 0.0, %v780
    %v782 = vpop.f32.mrb[0].mxu0
    %v783 = vpop.f32.mrb[0].mxu0
    %784 = vdwg.mxu0
    %785 = vmatprep.subr.bf16.mxu0 0
    %786 = vmatpush1.bf16.msra.mxu0 %v731
    %787 = vmatprep.subr.bf16.mxu0 0
    %788 = vmatpush1.bf16.msra.mxu0 %v734
    %789 = vmatprep.subr.bf16.mxu0 0
    %790 = vmatpush1.bf16.msra.mxu0 0
    %791 = vmatprep.subr.bf16.mxu0 0
    %792 = vmatpush1.bf16.msra.mxu0 0
    %793 = vmatprep.subr.bf16.mxu0 0
    %794 = vmatpush1.bf16.msra.mxu0 0
    %795 = vmatprep.subr.bf16.mxu0 0
    %796 = vmatpush1.bf16.msra.mxu0 0
    %797 = vmatprep.subr.bf16.mxu0 0
    %798 = vmatpush1.bf16.msra.mxu0 0
    %799 = vmatprep.subr.bf16.mxu0 0
    %800 = vmatpush1.bf16.msra.mxu0 0
    %801 = vmatprep.subr.bf16.mxu0 0
    %802 = vmatpush1.bf16.msra.mxu0 0
    %803 = vmatprep.subr.bf16.mxu0 0
    %804 = vmatpush1.bf16.msra.mxu0 0
    %805 = vmatprep.subr.bf16.mxu0 0
    %806 = vmatpush1.bf16.msra.mxu0 0
    %807 = vmatprep.subr.bf16.mxu0 0
    %808 = vmatpush1.bf16.msra.mxu0 0
    %809 = vmatprep.subr.bf16.mxu0 0
    %810 = vmatpush1.bf16.msra.mxu0 0
    %811 = vmatprep.subr.bf16.mxu0 0
    %812 = vmatpush1.bf16.msra.mxu0 0
    %813 = vmatprep.subr.bf16.mxu0 0
    %814 = vmatpush1.bf16.msra.mxu0 0
    %815 = vmatprep.subr.bf16.mxu0 0
    %816 = vmatpush1.bf16.msra.mxu0 0
    %817 = vmatprep.mubr.bf16.mxu0 0
    %818 = vmatmul.mubr.bf16.gmra.mrb[0].mxu0 %v742
    %v819 = vpop.f32.mrb[0].mxu0
    %v820 = vadd.f32 0.0, %v819
    %v821 = vpop.f32.mrb[0].mxu0
    %v822 = vpop.f32.mrb[0].mxu0
    %v823 = vpop.f32.mrb[0].mxu0
    %824 = vdwg.mxu0
    %v826 = vlaneseq
    %v827 = vshrl.u32 %v826, 7
    %v828 = vsub.s32 0, %v827
    %v829 = vrot.slane %v387, %v828
    %v830 = vlaneseq
    %v831 = vshrl.u32 %v830, 7
    %v832 = vsub.s32 1, %v831
    %v833 = vrot.slane %v387, %v832
    %v834 = vlaneseq
    %v835 = vshrl.u32 %v834, 7
    %v836 = vsub.s32 2, %v835
    %v837 = vrot.slane %v387, %v836
    %v841 = vadd.f32 %v655, %v829
    %v842 = vadd.f32 %v694, %v833
    %v843 = vadd.f32 %v696, %v837
    %v844 = vadd.f32 %v841, %v779
    %v845 = vxor.u32 %v844, 2147483648
    %v846 = vmul.f32 %v845, 1.442695
    %v847 = vpow.pop %v846
    %v848 = vadd.f32 %v847, 1.0
    %v849 = vrcp.pop %v848
    %v850 = vmul.f32 1.0, %v849
    %v851 = vadd.f32 %v842, %v781
    %v852 = vxor.u32 %v851, 2147483648
    %v853 = vmul.f32 %v852, 1.442695
    %v854 = vpow.pop %v853
    %v855 = vadd.f32 %v854, 1.0
    %v856 = vrcp.pop %v855
    %v857 = vmul.f32 1.0, %v856
    %v858 = vadd.f32 %v820, %v385
    %v859 = vmul.f32 %v850, %v858
    %v860 = vadd.f32 %v843, %v859
    %v861 = vtanh.pop %v860
    %v862 = vsub.f32 1.0, %v857
    %v863 = vmul.f32 %v862, %v861
    %v864 = vmul.f32 %v857, %v390
    %v865 = vadd.f32 %v863, %v864
    %v866 = vld [vmem:[#allocation2 + $0x18] sm:$0xff]
    %v867 = vld [vmem:[#allocation2 + $0x20] sm:$0xff]
    %v868 = vld [vmem:[#allocation2 + $0x28] sm:$0xff]
    %v869 = vadd.f32 %v866, %v612
    %v870 = vxor.u32 %v869, 2147483648
    %v871 = vmul.f32 %v870, 1.442695
    %v872 = vpow.pop %v871
    %v873 = vadd.f32 %v872, 1.0
    %v874 = vrcp.pop %v873
    %v875 = vmul.f32 1.0, %v874
    %v876 = vadd.f32 %v867, %v614
    %v877 = vxor.u32 %v876, 2147483648
    %v878 = vmul.f32 %v877, 1.442695
    %v879 = vpow.pop %v878
    %v880 = vadd.f32 %v879, 1.0
    %v881 = vrcp.pop %v880
    %v882 = vmul.f32 1.0, %v881
    %v883 = vadd.f32 %v653, %v378
    %v884 = vmul.f32 %v875, %v883
    %v885 = vadd.f32 %v868, %v884
    %v886 = vtanh.pop %v885
    %v887 = vsub.f32 1.0, %v882
    %v888 = vmul.f32 %v887, %v886
    %v889 = vmul.f32 %v882, %v552
    %v890 = vadd.f32 %v888, %v889
    %v891 = vpack.c.bf16 %v890, %v890
    %v893 = vsel %vm225, %v891, 0
    %895 = vmatprep.subr.bf16.mxu0 %v429
    %896 = vmatpush1.bf16.msra.mxu0 %v428
    %897 = vmatprep.subr.bf16.mxu0 %v433
    %898 = vmatpush1.bf16.msra.mxu0 %v432
    %899 = vmatprep.subr.bf16.mxu0 0
    %900 = vmatpush1.bf16.msra.mxu0 0
    %901 = vmatprep.subr.bf16.mxu0 0
    %902 = vmatpush1.bf16.msra.mxu0 0
    %903 = vmatprep.subr.bf16.mxu0 0
    %904 = vmatpush1.bf16.msra.mxu0 0
    %905 = vmatprep.subr.bf16.mxu0 0
    %906 = vmatpush1.bf16.msra.mxu0 0
    %907 = vmatprep.subr.bf16.mxu0 0
    %908 = vmatpush1.bf16.msra.mxu0 0
    %909 = vmatprep.subr.bf16.mxu0 0
    %910 = vmatpush1.bf16.msra.mxu0 0
    %911 = vmatprep.subr.bf16.mxu0 0
    %912 = vmatpush1.bf16.msra.mxu0 0
    %913 = vmatprep.subr.bf16.mxu0 0
    %914 = vmatpush1.bf16.msra.mxu0 0
    %915 = vmatprep.subr.bf16.mxu0 0
    %916 = vmatpush1.bf16.msra.mxu0 0
    %917 = vmatprep.subr.bf16.mxu0 0
    %918 = vmatpush1.bf16.msra.mxu0 0
    %919 = vmatprep.subr.bf16.mxu0 0
    %920 = vmatpush1.bf16.msra.mxu0 0
    %921 = vmatprep.subr.bf16.mxu0 0
    %922 = vmatpush1.bf16.msra.mxu0 0
    %923 = vmatprep.subr.bf16.mxu0 0
    %924 = vmatpush1.bf16.msra.mxu0 0
    %925 = vmatprep.subr.bf16.mxu0 0
    %926 = vmatpush1.bf16.msra.mxu0 0
    %927 = vmatprep.mubr.bf16.mxu0 0
    %928 = vmatmul.mubr.bf16.gmra.mrb[0].mxu0 %v893
    %v929 = vpop.f32.mrb[0].mxu0
    %v930 = vadd.f32 0.0, %v929
    %v931 = vpop.f32.mrb[0].mxu0
    %v932 = vadd.f32 0.0, %v931
    %v933 = vpop.f32.mrb[0].mxu0
    %v934 = vpop.f32.mrb[0].mxu0
    %935 = vdwg.mxu0
    %936 = vmatprep.subr.bf16.mxu0 %v431
    %937 = vmatpush1.bf16.msra.mxu0 %v430
    %938 = vmatprep.subr.bf16.mxu0 %v435
    %939 = vmatpush1.bf16.msra.mxu0 %v434
    %940 = vmatprep.subr.bf16.mxu0 0
    %941 = vmatpush1.bf16.msra.mxu0 0
    %942 = vmatprep.subr.bf16.mxu0 0
    %943 = vmatpush1.bf16.msra.mxu0 0
    %944 = vmatprep.subr.bf16.mxu0 0
    %945 = vmatpush1.bf16.msra.mxu0 0
    %946 = vmatprep.subr.bf16.mxu0 0
    %947 = vmatpush1.bf16.msra.mxu0 0
    %948 = vmatprep.subr.bf16.mxu0 0
    %949 = vmatpush1.bf16.msra.mxu0 0
    %950 = vmatprep.subr.bf16.mxu0 0
    %951 = vmatpush1.bf16.msra.mxu0 0
    %952 = vmatprep.subr.bf16.mxu0 0
    %953 = vmatpush1.bf16.msra.mxu0 0
    %954 = vmatprep.subr.bf16.mxu0 0
    %955 = vmatpush1.bf16.msra.mxu0 0
    %956 = vmatprep.subr.bf16.mxu0 0
    %957 = vmatpush1.bf16.msra.mxu0 0
    %958 = vmatprep.subr.bf16.mxu0 0
    %959 = vmatpush1.bf16.msra.mxu0 0
    %960 = vmatprep.subr.bf16.mxu0 0
    %961 = vmatpush1.bf16.msra.mxu0 0
    %962 = vmatprep.subr.bf16.mxu0 0
    %963 = vmatpush1.bf16.msra.mxu0 0
    %964 = vmatprep.subr.bf16.mxu0 0
    %965 = vmatpush1.bf16.msra.mxu0 0
    %966 = vmatprep.subr.bf16.mxu0 0
    %967 = vmatpush1.bf16.msra.mxu0 0
    %968 = vmatprep.mubr.bf16.mxu0 0
    %969 = vmatmul.mubr.bf16.gmra.mrb[0].mxu0 %v893
    %v970 = vpop.f32.mrb[0].mxu0
    %v971 = vadd.f32 0.0, %v970
    %v972 = vpop.f32.mrb[0].mxu0
    %v973 = vadd.f32 0.0, %v972
    %v974 = vpop.f32.mrb[0].mxu0
    %v975 = vpop.f32.mrb[0].mxu0
    %976 = vdwg.mxu0
    %977 = vmatprep.subr.bf16.mxu0 %v567
    %978 = vmatpush1.bf16.msra.mxu0 %v566
    %979 = vmatprep.subr.bf16.mxu0 %v569
    %980 = vmatpush1.bf16.msra.mxu0 %v568
    %981 = vmatprep.subr.bf16.mxu0 0
    %982 = vmatpush1.bf16.msra.mxu0 0
    %983 = vmatprep.subr.bf16.mxu0 0
    %984 = vmatpush1.bf16.msra.mxu0 0
    %985 = vmatprep.subr.bf16.mxu0 0
    %986 = vmatpush1.bf16.msra.mxu0 0
    %987 = vmatprep.subr.bf16.mxu0 0
    %988 = vmatpush1.bf16.msra.mxu0 0
    %989 = vmatprep.subr.bf16.mxu0 0
    %990 = vmatpush1.bf16.msra.mxu0 0
    %991 = vmatprep.subr.bf16.mxu0 0
    %992 = vmatpush1.bf16.msra.mxu0 0
    %993 = vmatprep.subr.bf16.mxu0 0
    %994 = vmatpush1.bf16.msra.mxu0 0
    %995 = vmatprep.subr.bf16.mxu0 0
    %996 = vmatpush1.bf16.msra.mxu0 0
    %997 = vmatprep.subr.bf16.mxu0 0
    %998 = vmatpush1.bf16.msra.mxu0 0
    %999 = vmatprep.subr.bf16.mxu0 0
    %1000 = vmatpush1.bf16.msra.mxu0 0
    %1001 = vmatprep.subr.bf16.mxu0 0
    %1002 = vmatpush1.bf16.msra.mxu0 0
    %1003 = vmatprep.subr.bf16.mxu0 0
    %1004 = vmatpush1.bf16.msra.mxu0 0
    %1005 = vmatprep.subr.bf16.mxu0 0
    %1006 = vmatpush1.bf16.msra.mxu0 0
    %1007 = vmatprep.subr.bf16.mxu0 0
    %1008 = vmatpush1.bf16.msra.mxu0 0
    %1009 = vmatprep.mubr.bf16.mxu0 0
    %1010 = vmatmul.mubr.bf16.gmra.mrb[0].mxu0 %v893
    %v1011 = vpop.f32.mrb[0].mxu0
    %v1012 = vadd.f32 0.0, %v1011
    %v1013 = vpop.f32.mrb[0].mxu0
    %v1014 = vadd.f32 0.0, %v1013
    %v1015 = vpop.f32.mrb[0].mxu0
    %v1016 = vpop.f32.mrb[0].mxu0
    %1017 = vdwg.mxu0
    %v1018 = vpack.c.bf16 %v865, %v865
    %v1020 = vsel %vm225, %v1018, 0
    %1022 = vmatprep.subr.bf16.mxu0 %v730
    %1023 = vmatpush1.bf16.msra.mxu0 %v729
    %1024 = vmatprep.subr.bf16.mxu0 %v733
    %1025 = vmatpush1.bf16.msra.mxu0 %v732
    %1026 = vmatprep.subr.bf16.mxu0 0
    %1027 = vmatpush1.bf16.msra.mxu0 0
    %1028 = vmatprep.subr.bf16.mxu0 0
    %1029 = vmatpush1.bf16.msra.mxu0 0
    %1030 = vmatprep.subr.bf16.mxu0 0
    %1031 = vmatpush1.bf16.msra.mxu0 0
    %1032 = vmatprep.subr.bf16.mxu0 0
    %1033 = vmatpush1.bf16.msra.mxu0 0
    %1034 = vmatprep.subr.bf16.mxu0 0
    %1035 = vmatpush1.bf16.msra.mxu0 0
    %1036 = vmatprep.subr.bf16.mxu0 0
    %1037 = vmatpush1.bf16.msra.mxu0 0
    %1038 = vmatprep.subr.bf16.mxu0 0
    %1039 = vmatpush1.bf16.msra.mxu0 0
    %1040 = vmatprep.subr.bf16.mxu0 0
    %1041 = vmatpush1.bf16.msra.mxu0 0
    %1042 = vmatprep.subr.bf16.mxu0 0
    %1043 = vmatpush1.bf16.msra.mxu0 0
    %1044 = vmatprep.subr.bf16.mxu0 0
    %1045 = vmatpush1.bf16.msra.mxu0 0
    %1046 = vmatprep.subr.bf16.mxu0 0
    %1047 = vmatpush1.bf16.msra.mxu0 0
    %1048 = vmatprep.subr.bf16.mxu0 0
    %1049 = vmatpush1.bf16.msra.mxu0 0
    %1050 = vmatprep.subr.bf16.mxu0 0
    %1051 = vmatpush1.bf16.msra.mxu0 0
    %1052 = vmatprep.subr.bf16.mxu0 0
    %1053 = vmatpush1.bf16.msra.mxu0 0
    %1054 = vmatprep.mubr.bf16.mxu0 0
    %1055 = vmatmul.mubr.bf16.gmra.mrb[0].mxu0 %v1020
    %v1056 = vpop.f32.mrb[0].mxu0
    %v1057 = vadd.f32 0.0, %v1056
    %v1058 = vpop.f32.mrb[0].mxu0
    %v1059 = vadd.f32 0.0, %v1058
    %v1060 = vpop.f32.mrb[0].mxu0
    %v1061 = vpop.f32.mrb[0].mxu0
    %1062 = vdwg.mxu0
    %1063 = vmatprep.subr.bf16.mxu0 0
    %1064 = vmatpush1.bf16.msra.mxu0 %v731
    %1065 = vmatprep.subr.bf16.mxu0 0
    %1066 = vmatpush1.bf16.msra.mxu0 %v734
    %1067 = vmatprep.subr.bf16.mxu0 0
    %1068 = vmatpush1.bf16.msra.mxu0 0
    %1069 = vmatprep.subr.bf16.mxu0 0
    %1070 = vmatpush1.bf16.msra.mxu0 0
    %1071 = vmatprep.subr.bf16.mxu0 0
    %1072 = vmatpush1.bf16.msra.mxu0 0
    %1073 = vmatprep.subr.bf16.mxu0 0
    %1074 = vmatpush1.bf16.msra.mxu0 0
    %1075 = vmatprep.subr.bf16.mxu0 0
    %1076 = vmatpush1.bf16.msra.mxu0 0
    %1077 = vmatprep.subr.bf16.mxu0 0
    %1078 = vmatpush1.bf16.msra.mxu0 0
    %1079 = vmatprep.subr.bf16.mxu0 0
    %1080 = vmatpush1.bf16.msra.mxu0 0
    %1081 = vmatprep.subr.bf16.mxu0 0
    %1082 = vmatpush1.bf16.msra.mxu0 0
    %1083 = vmatprep.subr.bf16.mxu0 0
    %1084 = vmatpush1.bf16.msra.mxu0 0
    %1085 = vmatprep.subr.bf16.mxu0 0
    %1086 = vmatpush1.bf16.msra.mxu0 0
    %1087 = vmatprep.subr.bf16.mxu0 0
    %1088 = vmatpush1.bf16.msra.mxu0 0
    %1089 = vmatprep.subr.bf16.mxu0 0
    %1090 = vmatpush1.bf16.msra.mxu0 0
    %1091 = vmatprep.subr.bf16.mxu0 0
    %1092 = vmatpush1.bf16.msra.mxu0 0
    %1093 = vmatprep.subr.bf16.mxu0 0
    %1094 = vmatpush1.bf16.msra.mxu0 0
    %1095 = vmatprep.mubr.bf16.mxu0 0
    %1096 = vmatmul.mubr.bf16.gmra.mrb[0].mxu0 %v1020
    %v1097 = vpop.f32.mrb[0].mxu0
    %v1098 = vadd.f32 0.0, %v1097
    %v1099 = vpop.f32.mrb[0].mxu0
    %v1100 = vpop.f32.mrb[0].mxu0
    %v1101 = vpop.f32.mrb[0].mxu0
    %1102 = vdwg.mxu0
    %v1103 = vadd.f32 %v973, %v829
    %v1104 = vadd.f32 %v1012, %v833
    %v1105 = vadd.f32 %v1014, %v837
    %v1106 = vadd.f32 %v1103, %v1057
    %v1107 = vxor.u32 %v1106, 2147483648
    %v1108 = vmul.f32 %v1107, 1.442695
    %v1109 = vpow.pop %v1108
    %v1110 = vadd.f32 %v1109, 1.0
    %v1111 = vrcp.pop %v1110
    %v1112 = vmul.f32 1.0, %v1111
    %v1113 = vadd.f32 %v1104, %v1059
    %v1114 = vxor.u32 %v1113, 2147483648
    %v1115 = vmul.f32 %v1114, 1.442695
    %v1116 = vpow.pop %v1115
    %v1117 = vadd.f32 %v1116, 1.0
    %v1118 = vrcp.pop %v1117
    %v1119 = vmul.f32 1.0, %v1118
    %v1120 = vadd.f32 %v1098, %v385
    %v1121 = vmul.f32 %v1112, %v1120
    %v1122 = vadd.f32 %v1105, %v1121
    %v1123 = vtanh.pop %v1122
    %v1124 = vsub.f32 1.0, %v1119
    %v1125 = vmul.f32 %v1124, %v1123
    %v1126 = vmul.f32 %v1119, %v865
    %v1127 = vadd.f32 %v1125, %v1126
    %v1128 = vld [vmem:[#allocation2 + $0x30] sm:$0xff]
    %v1129 = vld [vmem:[#allocation2 + $0x38] sm:$0xff]
    %v1130 = vld [vmem:[#allocation2 + $0x40] sm:$0xff]
    %v1131 = vadd.f32 %v1128, %v930
    %v1132 = vxor.u32 %v1131, 2147483648
    %v1133 = vmul.f32 %v1132, 1.442695
    %v1134 = vpow.pop %v1133
    %v1135 = vadd.f32 %v1134, 1.0
    %v1136 = vrcp.pop %v1135
    %v1137 = vmul.f32 1.0, %v1136
    %v1138 = vadd.f32 %v1129, %v932
    %v1139 = vxor.u32 %v1138, 2147483648
    %v1140 = vmul.f32 %v1139, 1.442695
    %v1141 = vpow.pop %v1140
    %v1142 = vadd.f32 %v1141, 1.0
    %v1143 = vrcp.pop %v1142
    %v1144 = vmul.f32 1.0, %v1143
    %v1145 = vadd.f32 %v971, %v378
    %v1146 = vmul.f32 %v1137, %v1145
    %v1147 = vadd.f32 %v1130, %v1146
    %v1148 = vtanh.pop %v1147
    %v1149 = vsub.f32 1.0, %v1144
    %v1150 = vmul.f32 %v1149, %v1148
    %v1151 = vmul.f32 %v1144, %v890
    %v1152 = vadd.f32 %v1150, %v1151
    %v1153 = vpack.c.bf16 %v1152, %v1152
    %v1155 = vsel %vm225, %v1153, 0
    %1157 = vmatprep.subr.bf16.mxu0 %v429
    %1158 = vmatpush1.bf16.msra.mxu0 %v428
    %1159 = vmatprep.subr.bf16.mxu0 %v433
    %1160 = vmatpush1.bf16.msra.mxu0 %v432
    %1161 = vmatprep.subr.bf16.mxu0 0
    %1162 = vmatpush1.bf16.msra.mxu0 0
    %1163 = vmatprep.subr.bf16.mxu0 0
    %1164 = vmatpush1.bf16.msra.mxu0 0
    %1165 = vmatprep.subr.bf16.mxu0 0
    %1166 = vmatpush1.bf16.msra.mxu0 0
    %1167 = vmatprep.subr.bf16.mxu0 0
    %1168 = vmatpush1.bf16.msra.mxu0 0
    %1169 = vmatprep.subr.bf16.mxu0 0
    %1170 = vmatpush1.bf16.msra.mxu0 0
    %1171 = vmatprep.subr.bf16.mxu0 0
    %1172 = vmatpush1.bf16.msra.mxu0 0
    %1173 = vmatprep.subr.bf16.mxu0 0
    %1174 = vmatpush1.bf16.msra.mxu0 0
    %1175 = vmatprep.subr.bf16.mxu0 0
    %1176 = vmatpush1.bf16.msra.mxu0 0
    %1177 = vmatprep.subr.bf16.mxu0 0
    %1178 = vmatpush1.bf16.msra.mxu0 0
    %1179 = vmatprep.subr.bf16.mxu0 0
    %1180 = vmatpush1.bf16.msra.mxu0 0
    %1181 = vmatprep.subr.bf16.mxu0 0
    %1182 = vmatpush1.bf16.msra.mxu0 0
    %1183 = vmatprep.subr.bf16.mxu0 0
    %1184 = vmatpush1.bf16.msra.mxu0 0
    %1185 = vmatprep.subr.bf16.mxu0 0
    %1186 = vmatpush1.bf16.msra.mxu0 0
    %1187 = vmatprep.subr.bf16.mxu0 0
    %1188 = vmatpush1.bf16.msra.mxu0 0
    %1189 = vmatprep.mubr.bf16.mxu0 0
    %1190 = vmatmul.mubr.bf16.gmra.mrb[0].mxu0 %v1155
    %v1191 = vpop.f32.mrb[0].mxu0
    %v1192 = vadd.f32 0.0, %v1191
    %v1193 = vpop.f32.mrb[0].mxu0
    %v1194 = vadd.f32 0.0, %v1193
    %v1195 = vpop.f32.mrb[0].mxu0
    %v1196 = vpop.f32.mrb[0].mxu0
    %1197 = vdwg.mxu0
    %1198 = vmatprep.subr.bf16.mxu0 %v431
    %1199 = vmatpush1.bf16.msra.mxu0 %v430
    %1200 = vmatprep.subr.bf16.mxu0 %v435
    %1201 = vmatpush1.bf16.msra.mxu0 %v434
    %1202 = vmatprep.subr.bf16.mxu0 0
    %1203 = vmatpush1.bf16.msra.mxu0 0
    %1204 = vmatprep.subr.bf16.mxu0 0
    %1205 = vmatpush1.bf16.msra.mxu0 0
    %1206 = vmatprep.subr.bf16.mxu0 0
    %1207 = vmatpush1.bf16.msra.mxu0 0
    %1208 = vmatprep.subr.bf16.mxu0 0
    %1209 = vmatpush1.bf16.msra.mxu0 0
    %1210 = vmatprep.subr.bf16.mxu0 0
    %1211 = vmatpush1.bf16.msra.mxu0 0
    %1212 = vmatprep.subr.bf16.mxu0 0
    %1213 = vmatpush1.bf16.msra.mxu0 0
    %1214 = vmatprep.subr.bf16.mxu0 0
    %1215 = vmatpush1.bf16.msra.mxu0 0
    %1216 = vmatprep.subr.bf16.mxu0 0
    %1217 = vmatpush1.bf16.msra.mxu0 0
    %1218 = vmatprep.subr.bf16.mxu0 0
    %1219 = vmatpush1.bf16.msra.mxu0 0
    %1220 = vmatprep.subr.bf16.mxu0 0
    %1221 = vmatpush1.bf16.msra.mxu0 0
    %1222 = vmatprep.subr.bf16.mxu0 0
    %1223 = vmatpush1.bf16.msra.mxu0 0
    %1224 = vmatprep.subr.bf16.mxu0 0
    %1225 = vmatpush1.bf16.msra.mxu0 0
    %1226 = vmatprep.subr.bf16.mxu0 0
    %1227 = vmatpush1.bf16.msra.mxu0 0
    %1228 = vmatprep.subr.bf16.mxu0 0
    %1229 = vmatpush1.bf16.msra.mxu0 0
    %1230 = vmatprep.mubr.bf16.mxu0 0
    %1231 = vmatmul.mubr.bf16.gmra.mrb[0].mxu0 %v1155
    %v1232 = vpop.f32.mrb[0].mxu0
    %v1233 = vadd.f32 0.0, %v1232
    %v1234 = vpop.f32.mrb[0].mxu0
    %v1235 = vadd.f32 0.0, %v1234
    %v1236 = vpop.f32.mrb[0].mxu0
    %v1237 = vpop.f32.mrb[0].mxu0
    %1238 = vdwg.mxu0
    %1239 = vmatprep.subr.bf16.mxu0 %v567
    %1240 = vmatpush1.bf16.msra.mxu0 %v566
    %1241 = vmatprep.subr.bf16.mxu0 %v569
    %1242 = vmatpush1.bf16.msra.mxu0 %v568
    %1243 = vmatprep.subr.bf16.mxu0 0
    %1244 = vmatpush1.bf16.msra.mxu0 0
    %1245 = vmatprep.subr.bf16.mxu0 0
    %1246 = vmatpush1.bf16.msra.mxu0 0
    %1247 = vmatprep.subr.bf16.mxu0 0
    %1248 = vmatpush1.bf16.msra.mxu0 0
    %1249 = vmatprep.subr.bf16.mxu0 0
    %1250 = vmatpush1.bf16.msra.mxu0 0
    %1251 = vmatprep.subr.bf16.mxu0 0
    %1252 = vmatpush1.bf16.msra.mxu0 0
    %1253 = vmatprep.subr.bf16.mxu0 0
    %1254 = vmatpush1.bf16.msra.mxu0 0
    %1255 = vmatprep.subr.bf16.mxu0 0
    %1256 = vmatpush1.bf16.msra.mxu0 0
    %1257 = vmatprep.subr.bf16.mxu0 0
    %1258 = vmatpush1.bf16.msra.mxu0 0
    %1259 = vmatprep.subr.bf16.mxu0 0
    %1260 = vmatpush1.bf16.msra.mxu0 0
    %1261 = vmatprep.subr.bf16.mxu0 0
    %1262 = vmatpush1.bf16.msra.mxu0 0
    %1263 = vmatprep.subr.bf16.mxu0 0
    %1264 = vmatpush1.bf16.msra.mxu0 0
    %1265 = vmatprep.subr.bf16.mxu0 0
    %1266 = vmatpush1.bf16.msra.mxu0 0
    %1267 = vmatprep.subr.bf16.mxu0 0
    %1268 = vmatpush1.bf16.msra.mxu0 0
    %1269 = vmatprep.subr.bf16.mxu0 0
    %1270 = vmatpush1.bf16.msra.mxu0 0
    %1271 = vmatprep.mubr.bf16.mxu0 0
    %1272 = vmatmul.mubr.bf16.gmra.mrb[0].mxu0 %v1155
    %v1273 = vpop.f32.mrb[0].mxu0
    %v1274 = vadd.f32 0.0, %v1273
    %v1275 = vpop.f32.mrb[0].mxu0
    %v1276 = vadd.f32 0.0, %v1275
    %v1277 = vpop.f32.mrb[0].mxu0
    %v1278 = vpop.f32.mrb[0].mxu0
    %1279 = vdwg.mxu0
    %v1280 = vpack.c.bf16 %v1127, %v1127
    %v1282 = vsel %vm225, %v1280, 0
    %1284 = vmatprep.subr.bf16.mxu0 %v730
    %1285 = vmatpush1.bf16.msra.mxu0 %v729
    %1286 = vmatprep.subr.bf16.mxu0 %v733
    %1287 = vmatpush1.bf16.msra.mxu0 %v732
    %1288 = vmatprep.subr.bf16.mxu0 0
    %1289 = vmatpush1.bf16.msra.mxu0 0
    %1290 = vmatprep.subr.bf16.mxu0 0
    %1291 = vmatpush1.bf16.msra.mxu0 0
    %1292 = vmatprep.subr.bf16.mxu0 0
    %1293 = vmatpush1.bf16.msra.mxu0 0
    %1294 = vmatprep.subr.bf16.mxu0 0
    %1295 = vmatpush1.bf16.msra.mxu0 0
    %1296 = vmatprep.subr.bf16.mxu0 0
    %1297 = vmatpush1.bf16.msra.mxu0 0
    %1298 = vmatprep.subr.bf16.mxu0 0
    %1299 = vmatpush1.bf16.msra.mxu0 0
    %1300 = vmatprep.subr.bf16.mxu0 0
    %1301 = vmatpush1.bf16.msra.mxu0 0
    %1302 = vmatprep.subr.bf16.mxu0 0
    %1303 = vmatpush1.bf16.msra.mxu0 0
    %1304 = vmatprep.subr.bf16.mxu0 0
    %1305 = vmatpush1.bf16.msra.mxu0 0
    %1306 = vmatprep.subr.bf16.mxu0 0
    %1307 = vmatpush1.bf16.msra.mxu0 0
    %1308 = vmatprep.subr.bf16.mxu0 0
    %1309 = vmatpush1.bf16.msra.mxu0 0
    %1310 = vmatprep.subr.bf16.mxu0 0
    %1311 = vmatpush1.bf16.msra.mxu0 0
    %1312 = vmatprep.subr.bf16.mxu0 0
    %1313 = vmatpush1.bf16.msra.mxu0 0
    %1314 = vmatprep.subr.bf16.mxu0 0
    %1315 = vmatpush1.bf16.msra.mxu0 0
    %1316 = vmatprep.mubr.bf16.mxu0 0
    %1317 = vmatmul.mubr.bf16.gmra.mrb[0].mxu0 %v1282
    %v1318 = vpop.f32.mrb[0].mxu0
    %v1319 = vadd.f32 0.0, %v1318
    %v1320 = vpop.f32.mrb[0].mxu0
    %v1321 = vadd.f32 0.0, %v1320
    %v1322 = vpop.f32.mrb[0].mxu0
    %v1323 = vpop.f32.mrb[0].mxu0
    %1324 = vdwg.mxu0
    %1325 = vmatprep.subr.bf16.mxu0 0
    %1326 = vmatpush1.bf16.msra.mxu0 %v731
    %1327 = vmatprep.subr.bf16.mxu0 0
    %1328 = vmatpush1.bf16.msra.mxu0 %v734
    %1329 = vmatprep.subr.bf16.mxu0 0
    %1330 = vmatpush1.bf16.msra.mxu0 0
    %1331 = vmatprep.subr.bf16.mxu0 0
    %1332 = vmatpush1.bf16.msra.mxu0 0
    %1333 = vmatprep.subr.bf16.mxu0 0
    %1334 = vmatpush1.bf16.msra.mxu0 0
    %1335 = vmatprep.subr.bf16.mxu0 0
    %1336 = vmatpush1.bf16.msra.mxu0 0
    %1337 = vmatprep.subr.bf16.mxu0 0
    %1338 = vmatpush1.bf16.msra.mxu0 0
    %1339 = vmatprep.subr.bf16.mxu0 0
    %1340 = vmatpush1.bf16.msra.mxu0 0
    %1341 = vmatprep.subr.bf16.mxu0 0
    %1342 = vmatpush1.bf16.msra.mxu0 0
    %1343 = vmatprep.subr.bf16.mxu0 0
    %1344 = vmatpush1.bf16.msra.mxu0 0
    %1345 = vmatprep.subr.bf16.mxu0 0
    %1346 = vmatpush1.bf16.msra.mxu0 0
    %1347 = vmatprep.subr.bf16.mxu0 0
    %1348 = vmatpush1.bf16.msra.mxu0 0
    %1349 = vmatprep.subr.bf16.mxu0 0
    %1350 = vmatpush1.bf16.msra.mxu0 0
    %1351 = vmatprep.subr.bf16.mxu0 0
    %1352 = vmatpush1.bf16.msra.mxu0 0
    %1353 = vmatprep.subr.bf16.mxu0 0
    %1354 = vmatpush1.bf16.msra.mxu0 0
    %1355 = vmatprep.subr.bf16.mxu0 0
    %1356 = vmatpush1.bf16.msra.mxu0 0
    %1357 = vmatprep.mubr.bf16.mxu0 0
    %1358 = vmatmul.mubr.bf16.gmra.mrb[0].mxu0 %v1282
    %v1359 = vpop.f32.mrb[0].mxu0
    %v1360 = vadd.f32 0.0, %v1359
    %v1361 = vpop.f32.mrb[0].mxu0
    %v1362 = vpop.f32.mrb[0].mxu0
    %v1363 = vpop.f32.mrb[0].mxu0
    %1364 = vdwg.mxu0
    %v1365 = vadd.f32 %v1235, %v829
    %v1366 = vadd.f32 %v1274, %v833
    %v1367 = vadd.f32 %v1276, %v837
    %v1368 = vadd.f32 %v1365, %v1319
    %v1369 = vxor.u32 %v1368, 2147483648
    %v1370 = vmul.f32 %v1369, 1.442695
    %v1371 = vpow.pop %v1370
    %v1372 = vadd.f32 %v1371, 1.0
    %v1373 = vrcp.pop %v1372
    %v1374 = vmul.f32 1.0, %v1373
    %v1375 = vadd.f32 %v1366, %v1321
    %v1376 = vxor.u32 %v1375, 2147483648
    %v1377 = vmul.f32 %v1376, 1.442695
    %v1378 = vpow.pop %v1377
    %v1379 = vadd.f32 %v1378, 1.0
    %v1380 = vrcp.pop %v1379
    %v1381 = vmul.f32 1.0, %v1380
    %v1382 = vadd.f32 %v1360, %v385
    %v1383 = vmul.f32 %v1374, %v1382
    %v1384 = vadd.f32 %v1367, %v1383
    %v1385 = vtanh.pop %v1384
    %v1386 = vsub.f32 1.0, %v1381
    %v1387 = vmul.f32 %v1386, %v1385
    %v1388 = vmul.f32 %v1381, %v1127
    %v1389 = vadd.f32 %v1387, %v1388
    %v1390 = vld [vmem:[#allocation2 + $0x48] sm:$0xff]
    %v1391 = vld [vmem:[#allocation2 + $0x50] sm:$0xff]
    %v1392 = vld [vmem:[#allocation2 + $0x58] sm:$0xff]
    %v1393 = vadd.f32 %v1390, %v1192
    %v1394 = vxor.u32 %v1393, 2147483648
    %v1395 = vmul.f32 %v1394, 1.442695
    %v1396 = vpow.pop %v1395
    %v1397 = vadd.f32 %v1396, 1.0
    %v1398 = vrcp.pop %v1397
    %v1399 = vmul.f32 1.0, %v1398
    %v1400 = vadd.f32 %v1391, %v1194
    %v1401 = vxor.u32 %v1400, 2147483648
    %v1402 = vmul.f32 %v1401, 1.442695
    %v1403 = vpow.pop %v1402
    %v1404 = vadd.f32 %v1403, 1.0
    %v1405 = vrcp.pop %v1404
    %v1406 = vmul.f32 1.0, %v1405
    %v1407 = vadd.f32 %v1233, %v378
    %v1408 = vmul.f32 %v1399, %v1407
    %v1409 = vadd.f32 %v1392, %v1408
    %v1410 = vtanh.pop %v1409
    %v1411 = vsub.f32 1.0, %v1406
    %v1412 = vmul.f32 %v1411, %v1410
    %v1413 = vmul.f32 %v1406, %v1152
    %v1414 = vadd.f32 %v1412, %v1413
    %v1415 = vpack.c.bf16 %v1414, %v1414
    %v1417 = vsel %vm225, %v1415, 0
    %1419 = vmatprep.subr.bf16.mxu0 %v429
    %1420 = vmatpush1.bf16.msra.mxu0 %v428
    %1421 = vmatprep.subr.bf16.mxu0 %v433
    %1422 = vmatpush1.bf16.msra.mxu0 %v432
    %1423 = vmatprep.subr.bf16.mxu0 0
    %1424 = vmatpush1.bf16.msra.mxu0 0
    %1425 = vmatprep.subr.bf16.mxu0 0
    %1426 = vmatpush1.bf16.msra.mxu0 0
    %1427 = vmatprep.subr.bf16.mxu0 0
    %1428 = vmatpush1.bf16.msra.mxu0 0
    %1429 = vmatprep.subr.bf16.mxu0 0
    %1430 = vmatpush1.bf16.msra.mxu0 0
    %1431 = vmatprep.subr.bf16.mxu0 0
    %1432 = vmatpush1.bf16.msra.mxu0 0
    %1433 = vmatprep.subr.bf16.mxu0 0
    %1434 = vmatpush1.bf16.msra.mxu0 0
    %1435 = vmatprep.subr.bf16.mxu0 0
    %1436 = vmatpush1.bf16.msra.mxu0 0
    %1437 = vmatprep.subr.bf16.mxu0 0
    %1438 = vmatpush1.bf16.msra.mxu0 0
    %1439 = vmatprep.subr.bf16.mxu0 0
    %1440 = vmatpush1.bf16.msra.mxu0 0
    %1441 = vmatprep.subr.bf16.mxu0 0
    %1442 = vmatpush1.bf16.msra.mxu0 0
    %1443 = vmatprep.subr.bf16.mxu0 0
    %1444 = vmatpush1.bf16.msra.mxu0 0
    %1445 = vmatprep.subr.bf16.mxu0 0
    %1446 = vmatpush1.bf16.msra.mxu0 0
    %1447 = vmatprep.subr.bf16.mxu0 0
    %1448 = vmatpush1.bf16.msra.mxu0 0
    %1449 = vmatprep.subr.bf16.mxu0 0
    %1450 = vmatpush1.bf16.msra.mxu0 0
    %1451 = vmatprep.mubr.bf16.mxu0 0
    %1452 = vmatmul.mubr.bf16.gmra.mrb[0].mxu0 %v1417
    %v1453 = vpop.f32.mrb[0].mxu0
    %v1454 = vadd.f32 0.0, %v1453
    %v1455 = vpop.f32.mrb[0].mxu0
    %v1456 = vadd.f32 0.0, %v1455
    %v1457 = vpop.f32.mrb[0].mxu0
    %v1458 = vpop.f32.mrb[0].mxu0
    %1459 = vdwg.mxu0
    %1460 = vmatprep.subr.bf16.mxu0 %v431
    %1461 = vmatpush1.bf16.msra.mxu0 %v430
    %1462 = vmatprep.subr.bf16.mxu0 %v435
    %1463 = vmatpush1.bf16.msra.mxu0 %v434
    %1464 = vmatprep.subr.bf16.mxu0 0
    %1465 = vmatpush1.bf16.msra.mxu0 0
    %1466 = vmatprep.subr.bf16.mxu0 0
    %1467 = vmatpush1.bf16.msra.mxu0 0
    %1468 = vmatprep.subr.bf16.mxu0 0
    %1469 = vmatpush1.bf16.msra.mxu0 0
    %1470 = vmatprep.subr.bf16.mxu0 0
    %1471 = vmatpush1.bf16.msra.mxu0 0
    %1472 = vmatprep.subr.bf16.mxu0 0
    %1473 = vmatpush1.bf16.msra.mxu0 0
    %1474 = vmatprep.subr.bf16.mxu0 0
    %1475 = vmatpush1.bf16.msra.mxu0 0
    %1476 = vmatprep.subr.bf16.mxu0 0
    %1477 = vmatpush1.bf16.msra.mxu0 0
    %1478 = vmatprep.subr.bf16.mxu0 0
    %1479 = vmatpush1.bf16.msra.mxu0 0
    %1480 = vmatprep.subr.bf16.mxu0 0
    %1481 = vmatpush1.bf16.msra.mxu0 0
    %1482 = vmatprep.subr.bf16.mxu0 0
    %1483 = vmatpush1.bf16.msra.mxu0 0
    %1484 = vmatprep.subr.bf16.mxu0 0
    %1485 = vmatpush1.bf16.msra.mxu0 0
    %1486 = vmatprep.subr.bf16.mxu0 0
    %1487 = vmatpush1.bf16.msra.mxu0 0
    %1488 = vmatprep.subr.bf16.mxu0 0
    %1489 = vmatpush1.bf16.msra.mxu0 0
    %1490 = vmatprep.subr.bf16.mxu0 0
    %1491 = vmatpush1.bf16.msra.mxu0 0
    %1492 = vmatprep.mubr.bf16.mxu0 0
    %1493 = vmatmul.mubr.bf16.gmra.mrb[0].mxu0 %v1417
    %v1494 = vpop.f32.mrb[0].mxu0
    %v1495 = vadd.f32 0.0, %v1494
    %v1496 = vpop.f32.mrb[0].mxu0
    %v1497 = vadd.f32 0.0, %v1496
    %v1498 = vpop.f32.mrb[0].mxu0
    %v1499 = vpop.f32.mrb[0].mxu0
    %1500 = vdwg.mxu0
    %1501 = vmatprep.subr.bf16.mxu0 %v567
    %1502 = vmatpush1.bf16.msra.mxu0 %v566
    %1503 = vmatprep.subr.bf16.mxu0 %v569
    %1504 = vmatpush1.bf16.msra.mxu0 %v568
    %1505 = vmatprep.subr.bf16.mxu0 0
    %1506 = vmatpush1.bf16.msra.mxu0 0
    %1507 = vmatprep.subr.bf16.mxu0 0
    %1508 = vmatpush1.bf16.msra.mxu0 0
    %1509 = vmatprep.subr.bf16.mxu0 0
    %1510 = vmatpush1.bf16.msra.mxu0 0
    %1511 = vmatprep.subr.bf16.mxu0 0
    %1512 = vmatpush1.bf16.msra.mxu0 0
    %1513 = vmatprep.subr.bf16.mxu0 0
    %1514 = vmatpush1.bf16.msra.mxu0 0
    %1515 = vmatprep.subr.bf16.mxu0 0
    %1516 = vmatpush1.bf16.msra.mxu0 0
    %1517 = vmatprep.subr.bf16.mxu0 0
    %1518 = vmatpush1.bf16.msra.mxu0 0
    %1519 = vmatprep.subr.bf16.mxu0 0
    %1520 = vmatpush1.bf16.msra.mxu0 0
    %1521 = vmatprep.subr.bf16.mxu0 0
    %1522 = vmatpush1.bf16.msra.mxu0 0
    %1523 = vmatprep.subr.bf16.mxu0 0
    %1524 = vmatpush1.bf16.msra.mxu0 0
    %1525 = vmatprep.subr.bf16.mxu0 0
    %1526 = vmatpush1.bf16.msra.mxu0 0
    %1527 = vmatprep.subr.bf16.mxu0 0
    %1528 = vmatpush1.bf16.msra.mxu0 0
    %1529 = vmatprep.subr.bf16.mxu0 0
    %1530 = vmatpush1.bf16.msra.mxu0 0
    %1531 = vmatprep.subr.bf16.mxu0 0
    %1532 = vmatpush1.bf16.msra.mxu0 0
    %1533 = vmatprep.mubr.bf16.mxu0 0
    %1534 = vmatmul.mubr.bf16.gmra.mrb[0].mxu0 %v1417
    %v1535 = vpop.f32.mrb[0].mxu0
    %v1536 = vadd.f32 0.0, %v1535
    %v1537 = vpop.f32.mrb[0].mxu0
    %v1538 = vadd.f32 0.0, %v1537
    %v1539 = vpop.f32.mrb[0].mxu0
    %v1540 = vpop.f32.mrb[0].mxu0
    %1541 = vdwg.mxu0
    %v1542 = vpack.c.bf16 %v1389, %v1389
    %v1544 = vsel %vm225, %v1542, 0
    %1546 = vmatprep.subr.bf16.mxu0 %v730
    %1547 = vmatpush1.bf16.msra.mxu0 %v729
    %1548 = vmatprep.subr.bf16.mxu0 %v733
    %1549 = vmatpush1.bf16.msra.mxu0 %v732
    %1550 = vmatprep.subr.bf16.mxu0 0
    %1551 = vmatpush1.bf16.msra.mxu0 0
    %1552 = vmatprep.subr.bf16.mxu0 0
    %1553 = vmatpush1.bf16.msra.mxu0 0
    %1554 = vmatprep.subr.bf16.mxu0 0
    %1555 = vmatpush1.bf16.msra.mxu0 0
    %1556 = vmatprep.subr.bf16.mxu0 0
    %1557 = vmatpush1.bf16.msra.mxu0 0
    %1558 = vmatprep.subr.bf16.mxu0 0
    %1559 = vmatpush1.bf16.msra.mxu0 0
    %1560 = vmatprep.subr.bf16.mxu0 0
    %1561 = vmatpush1.bf16.msra.mxu0 0
    %1562 = vmatprep.subr.bf16.mxu0 0
    %1563 = vmatpush1.bf16.msra.mxu0 0
    %1564 = vmatprep.subr.bf16.mxu0 0
    %1565 = vmatpush1.bf16.msra.mxu0 0
    %1566 = vmatprep.subr.bf16.mxu0 0
    %1567 = vmatpush1.bf16.msra.mxu0 0
    %1568 = vmatprep.subr.bf16.mxu0 0
    %1569 = vmatpush1.bf16.msra.mxu0 0
    %1570 = vmatprep.subr.bf16.mxu0 0
    %1571 = vmatpush1.bf16.msra.mxu0 0
    %1572 = vmatprep.subr.bf16.mxu0 0
    %1573 = vmatpush1.bf16.msra.mxu0 0
    %1574 = vmatprep.subr.bf16.mxu0 0
    %1575 = vmatpush1.bf16.msra.mxu0 0
    %1576 = vmatprep.subr.bf16.mxu0 0
    %1577 = vmatpush1.bf16.msra.mxu0 0
    %1578 = vmatprep.mubr.bf16.mxu0 0
    %1579 = vmatmul.mubr.bf16.gmra.mrb[0].mxu0 %v1544
    %v1580 = vpop.f32.mrb[0].mxu0
    %v1581 = vadd.f32 0.0, %v1580
    %v1582 = vpop.f32.mrb[0].mxu0
    %v1583 = vadd.f32 0.0, %v1582
    %v1584 = vpop.f32.mrb[0].mxu0
    %v1585 = vpop.f32.mrb[0].mxu0
    %1586 = vdwg.mxu0
    %1587 = vmatprep.subr.bf16.mxu0 0
    %1588 = vmatpush1.bf16.msra.mxu0 %v731
    %1589 = vmatprep.subr.bf16.mxu0 0
    %1590 = vmatpush1.bf16.msra.mxu0 %v734
    %1591 = vmatprep.subr.bf16.mxu0 0
    %1592 = vmatpush1.bf16.msra.mxu0 0
    %1593 = vmatprep.subr.bf16.mxu0 0
    %1594 = vmatpush1.bf16.msra.mxu0 0
    %1595 = vmatprep.subr.bf16.mxu0 0
    %1596 = vmatpush1.bf16.msra.mxu0 0
    %1597 = vmatprep.subr.bf16.mxu0 0
    %1598 = vmatpush1.bf16.msra.mxu0 0
    %1599 = vmatprep.subr.bf16.mxu0 0
    %1600 = vmatpush1.bf16.msra.mxu0 0
    %1601 = vmatprep.subr.bf16.mxu0 0
    %1602 = vmatpush1.bf16.msra.mxu0 0
    %1603 = vmatprep.subr.bf16.mxu0 0
    %1604 = vmatpush1.bf16.msra.mxu0 0
    %1605 = vmatprep.subr.bf16.mxu0 0
    %1606 = vmatpush1.bf16.msra.mxu0 0
    %1607 = vmatprep.subr.bf16.mxu0 0
    %1608 = vmatpush1.bf16.msra.mxu0 0
    %1609 = vmatprep.subr.bf16.mxu0 0
    %1610 = vmatpush1.bf16.msra.mxu0 0
    %1611 = vmatprep.subr.bf16.mxu0 0
    %1612 = vmatpush1.bf16.msra.mxu0 0
    %1613 = vmatprep.subr.bf16.mxu0 0
    %1614 = vmatpush1.bf16.msra.mxu0 0
    %1615 = vmatprep.subr.bf16.mxu0 0
    %1616 = vmatpush1.bf16.msra.mxu0 0
    %1617 = vmatprep.subr.bf16.mxu0 0
    %1618 = vmatpush1.bf16.msra.mxu0 0
    %1619 = vmatprep.mubr.bf16.mxu0 0
    %1620 = vmatmul.mubr.bf16.gmra.mrb[0].mxu0 %v1544
    %v1621 = vpop.f32.mrb[0].mxu0
    %v1622 = vadd.f32 0.0, %v1621
    %v1623 = vpop.f32.mrb[0].mxu0
    %v1624 = vpop.f32.mrb[0].mxu0
    %v1625 = vpop.f32.mrb[0].mxu0
    %1626 = vdwg.mxu0
    %v1627 = vadd.f32 %v1497, %v829
    %v1628 = vadd.f32 %v1536, %v833
    %v1629 = vadd.f32 %v1538, %v837
    %v1630 = vadd.f32 %v1627, %v1581
    %v1631 = vxor.u32 %v1630, 2147483648
    %v1632 = vmul.f32 %v1631, 1.442695
    %v1633 = vpow.pop %v1632
    %v1634 = vadd.f32 %v1633, 1.0
    %v1635 = vrcp.pop %v1634
    %v1636 = vmul.f32 1.0, %v1635
    %v1637 = vadd.f32 %v1628, %v1583
    %v1638 = vxor.u32 %v1637, 2147483648
    %v1639 = vmul.f32 %v1638, 1.442695
    %v1640 = vpow.pop %v1639
    %v1641 = vadd.f32 %v1640, 1.0
    %v1642 = vrcp.pop %v1641
    %v1643 = vmul.f32 1.0, %v1642
    %v1644 = vadd.f32 %v1622, %v385
    %v1645 = vmul.f32 %v1636, %v1644
    %v1646 = vadd.f32 %v1629, %v1645
    %v1647 = vtanh.pop %v1646
    %v1648 = vsub.f32 1.0, %v1643
    %v1649 = vmul.f32 %v1648, %v1647
    %v1650 = vmul.f32 %v1643, %v1389
    %v1651 = vadd.f32 %v1649, %v1650
    %v1652 = vld [vmem:[#allocation2 + $0x60] sm:$0xff]
    %v1653 = vld [vmem:[#allocation2 + $0x68] sm:$0xff]
    %v1654 = vld [vmem:[#allocation2 + $0x70] sm:$0xff]
    %v1655 = vadd.f32 %v1652, %v1454
    %v1656 = vxor.u32 %v1655, 2147483648
    %v1657 = vmul.f32 %v1656, 1.442695
    %v1658 = vpow.pop %v1657
    %v1659 = vadd.f32 %v1658, 1.0
    %v1660 = vrcp.pop %v1659
    %v1661 = vmul.f32 1.0, %v1660
    %v1662 = vadd.f32 %v1653, %v1456
    %v1663 = vxor.u32 %v1662, 2147483648
    %v1664 = vmul.f32 %v1663, 1.442695
    %v1665 = vpow.pop %v1664
    %v1666 = vadd.f32 %v1665, 1.0
    %v1667 = vrcp.pop %v1666
    %v1668 = vmul.f32 1.0, %v1667
    %v1669 = vadd.f32 %v1495, %v378
    %v1670 = vmul.f32 %v1661, %v1669
    %v1671 = vadd.f32 %v1654, %v1670
    %v1672 = vtanh.pop %v1671
    %v1673 = vsub.f32 1.0, %v1668
    %v1674 = vmul.f32 %v1673, %v1672
    %v1675 = vmul.f32 %v1668, %v1414
    %v1676 = vadd.f32 %v1674, %v1675
    %v1677 = vpack.c.bf16 %v1676, %v1676
    %v1679 = vsel %vm225, %v1677, 0
    %1681 = vmatprep.subr.bf16.mxu0 %v429
    %1682 = vmatpush1.bf16.msra.mxu0 %v428
    %1683 = vmatprep.subr.bf16.mxu0 %v433
    %1684 = vmatpush1.bf16.msra.mxu0 %v432
    %1685 = vmatprep.subr.bf16.mxu0 0
    %1686 = vmatpush1.bf16.msra.mxu0 0
    %1687 = vmatprep.subr.bf16.mxu0 0
    %1688 = vmatpush1.bf16.msra.mxu0 0
    %1689 = vmatprep.subr.bf16.mxu0 0
    %1690 = vmatpush1.bf16.msra.mxu0 0
    %1691 = vmatprep.subr.bf16.mxu0 0
    %1692 = vmatpush1.bf16.msra.mxu0 0
    %1693 = vmatprep.subr.bf16.mxu0 0
    %1694 = vmatpush1.bf16.msra.mxu0 0
    %1695 = vmatprep.subr.bf16.mxu0 0
    %1696 = vmatpush1.bf16.msra.mxu0 0
    %1697 = vmatprep.subr.bf16.mxu0 0
    %1698 = vmatpush1.bf16.msra.mxu0 0
    %1699 = vmatprep.subr.bf16.mxu0 0
    %1700 = vmatpush1.bf16.msra.mxu0 0
    %1701 = vmatprep.subr.bf16.mxu0 0
    %1702 = vmatpush1.bf16.msra.mxu0 0
    %1703 = vmatprep.subr.bf16.mxu0 0
    %1704 = vmatpush1.bf16.msra.mxu0 0
    %1705 = vmatprep.subr.bf16.mxu0 0
    %1706 = vmatpush1.bf16.msra.mxu0 0
    %1707 = vmatprep.subr.bf16.mxu0 0
    %1708 = vmatpush1.bf16.msra.mxu0 0
    %1709 = vmatprep.subr.bf16.mxu0 0
    %1710 = vmatpush1.bf16.msra.mxu0 0
    %1711 = vmatprep.subr.bf16.mxu0 0
    %1712 = vmatpush1.bf16.msra.mxu0 0
    %1713 = vmatprep.mubr.bf16.mxu0 0
    %1714 = vmatmul.mubr.bf16.gmra.mrb[0].mxu0 %v1679
    %v1715 = vpop.f32.mrb[0].mxu0
    %v1716 = vadd.f32 0.0, %v1715
    %v1717 = vpop.f32.mrb[0].mxu0
    %v1718 = vadd.f32 0.0, %v1717
    %v1719 = vpop.f32.mrb[0].mxu0
    %v1720 = vpop.f32.mrb[0].mxu0
    %1721 = vdwg.mxu0
    %1722 = vmatprep.subr.bf16.mxu0 %v431
    %1723 = vmatpush1.bf16.msra.mxu0 %v430
    %1724 = vmatprep.subr.bf16.mxu0 %v435
    %1725 = vmatpush1.bf16.msra.mxu0 %v434
    %1726 = vmatprep.subr.bf16.mxu0 0
    %1727 = vmatpush1.bf16.msra.mxu0 0
    %1728 = vmatprep.subr.bf16.mxu0 0
    %1729 = vmatpush1.bf16.msra.mxu0 0
    %1730 = vmatprep.subr.bf16.mxu0 0
    %1731 = vmatpush1.bf16.msra.mxu0 0
    %1732 = vmatprep.subr.bf16.mxu0 0
    %1733 = vmatpush1.bf16.msra.mxu0 0
    %1734 = vmatprep.subr.bf16.mxu0 0
    %1735 = vmatpush1.bf16.msra.mxu0 0
    %1736 = vmatprep.subr.bf16.mxu0 0
    %1737 = vmatpush1.bf16.msra.mxu0 0
    %1738 = vmatprep.subr.bf16.mxu0 0
    %1739 = vmatpush1.bf16.msra.mxu0 0
    %1740 = vmatprep.subr.bf16.mxu0 0
    %1741 = vmatpush1.bf16.msra.mxu0 0
    %1742 = vmatprep.subr.bf16.mxu0 0
    %1743 = vmatpush1.bf16.msra.mxu0 0
    %1744 = vmatprep.subr.bf16.mxu0 0
    %1745 = vmatpush1.bf16.msra.mxu0 0
    %1746 = vmatprep.subr.bf16.mxu0 0
    %1747 = vmatpush1.bf16.msra.mxu0 0
    %1748 = vmatprep.subr.bf16.mxu0 0
    %1749 = vmatpush1.bf16.msra.mxu0 0
    %1750 = vmatprep.subr.bf16.mxu0 0
    %1751 = vmatpush1.bf16.msra.mxu0 0
    %1752 = vmatprep.subr.bf16.mxu0 0
    %1753 = vmatpush1.bf16.msra.mxu0 0
    %1754 = vmatprep.mubr.bf16.mxu0 0
    %1755 = vmatmul.mubr.bf16.gmra.mrb[0].mxu0 %v1679
    %v1756 = vpop.f32.mrb[0].mxu0
    %v1757 = vadd.f32 0.0, %v1756
    %v1758 = vpop.f32.mrb[0].mxu0
    %v1759 = vadd.f32 0.0, %v1758
    %v1760 = vpop.f32.mrb[0].mxu0
    %v1761 = vpop.f32.mrb[0].mxu0
    %1762 = vdwg.mxu0
    %1763 = vmatprep.subr.bf16.mxu0 %v567
    %1764 = vmatpush1.bf16.msra.mxu0 %v566
    %1765 = vmatprep.subr.bf16.mxu0 %v569
    %1766 = vmatpush1.bf16.msra.mxu0 %v568
    %1767 = vmatprep.subr.bf16.mxu0 0
    %1768 = vmatpush1.bf16.msra.mxu0 0
    %1769 = vmatprep.subr.bf16.mxu0 0
    %1770 = vmatpush1.bf16.msra.mxu0 0
    %1771 = vmatprep.subr.bf16.mxu0 0
    %1772 = vmatpush1.bf16.msra.mxu0 0
    %1773 = vmatprep.subr.bf16.mxu0 0
    %1774 = vmatpush1.bf16.msra.mxu0 0
    %1775 = vmatprep.subr.bf16.mxu0 0
    %1776 = vmatpush1.bf16.msra.mxu0 0
    %1777 = vmatprep.subr.bf16.mxu0 0
    %1778 = vmatpush1.bf16.msra.mxu0 0
    %1779 = vmatprep.subr.bf16.mxu0 0
    %1780 = vmatpush1.bf16.msra.mxu0 0
    %1781 = vmatprep.subr.bf16.mxu0 0
    %1782 = vmatpush1.bf16.msra.mxu0 0
    %1783 = vmatprep.subr.bf16.mxu0 0
    %1784 = vmatpush1.bf16.msra.mxu0 0
    %1785 = vmatprep.subr.bf16.mxu0 0
    %1786 = vmatpush1.bf16.msra.mxu0 0
    %1787 = vmatprep.subr.bf16.mxu0 0
    %1788 = vmatpush1.bf16.msra.mxu0 0
    %1789 = vmatprep.subr.bf16.mxu0 0
    %1790 = vmatpush1.bf16.msra.mxu0 0
    %1791 = vmatprep.subr.bf16.mxu0 0
    %1792 = vmatpush1.bf16.msra.mxu0 0
    %1793 = vmatprep.subr.bf16.mxu0 0
    %1794 = vmatpush1.bf16.msra.mxu0 0
    %1795 = vmatprep.mubr.bf16.mxu0 0
    %1796 = vmatmul.mubr.bf16.gmra.mrb[0].mxu0 %v1679
    %v1797 = vpop.f32.mrb[0].mxu0
    %v1798 = vadd.f32 0.0, %v1797
    %v1799 = vpop.f32.mrb[0].mxu0
    %v1800 = vadd.f32 0.0, %v1799
    %v1801 = vpop.f32.mrb[0].mxu0
    %v1802 = vpop.f32.mrb[0].mxu0
    %1803 = vdwg.mxu0
    %v1804 = vpack.c.bf16 %v1651, %v1651
    %v1806 = vsel %vm225, %v1804, 0
    %1808 = vmatprep.subr.bf16.mxu0 %v730
    %1809 = vmatpush1.bf16.msra.mxu0 %v729
    %1810 = vmatprep.subr.bf16.mxu0 %v733
    %1811 = vmatpush1.bf16.msra.mxu0 %v732
    %1812 = vmatprep.subr.bf16.mxu0 0
    %1813 = vmatpush1.bf16.msra.mxu0 0
    %1814 = vmatprep.subr.bf16.mxu0 0
    %1815 = vmatpush1.bf16.msra.mxu0 0
    %1816 = vmatprep.subr.bf16.mxu0 0
    %1817 = vmatpush1.bf16.msra.mxu0 0
    %1818 = vmatprep.subr.bf16.mxu0 0
    %1819 = vmatpush1.bf16.msra.mxu0 0
    %1820 = vmatprep.subr.bf16.mxu0 0
    %1821 = vmatpush1.bf16.msra.mxu0 0
    %1822 = vmatprep.subr.bf16.mxu0 0
    %1823 = vmatpush1.bf16.msra.mxu0 0
    %1824 = vmatprep.subr.bf16.mxu0 0
    %1825 = vmatpush1.bf16.msra.mxu0 0
    %1826 = vmatprep.subr.bf16.mxu0 0
    %1827 = vmatpush1.bf16.msra.mxu0 0
    %1828 = vmatprep.subr.bf16.mxu0 0
    %1829 = vmatpush1.bf16.msra.mxu0 0
    %1830 = vmatprep.subr.bf16.mxu0 0
    %1831 = vmatpush1.bf16.msra.mxu0 0
    %1832 = vmatprep.subr.bf16.mxu0 0
    %1833 = vmatpush1.bf16.msra.mxu0 0
    %1834 = vmatprep.subr.bf16.mxu0 0
    %1835 = vmatpush1.bf16.msra.mxu0 0
    %1836 = vmatprep.subr.bf16.mxu0 0
    %1837 = vmatpush1.bf16.msra.mxu0 0
    %1838 = vmatprep.subr.bf16.mxu0 0
    %1839 = vmatpush1.bf16.msra.mxu0 0
    %1840 = vmatprep.mubr.bf16.mxu0 0
    %1841 = vmatmul.mubr.bf16.gmra.mrb[0].mxu0 %v1806
    %v1842 = vpop.f32.mrb[0].mxu0
    %v1843 = vadd.f32 0.0, %v1842
    %v1844 = vpop.f32.mrb[0].mxu0
    %v1845 = vadd.f32 0.0, %v1844
    %v1846 = vpop.f32.mrb[0].mxu0
    %v1847 = vpop.f32.mrb[0].mxu0
    %1848 = vdwg.mxu0
    %1849 = vmatprep.subr.bf16.mxu0 0
    %1850 = vmatpush1.bf16.msra.mxu0 %v731
    %1851 = vmatprep.subr.bf16.mxu0 0
    %1852 = vmatpush1.bf16.msra.mxu0 %v734
    %1853 = vmatprep.subr.bf16.mxu0 0
    %1854 = vmatpush1.bf16.msra.mxu0 0
    %1855 = vmatprep.subr.bf16.mxu0 0
    %1856 = vmatpush1.bf16.msra.mxu0 0
    %1857 = vmatprep.subr.bf16.mxu0 0
    %1858 = vmatpush1.bf16.msra.mxu0 0
    %1859 = vmatprep.subr.bf16.mxu0 0
    %1860 = vmatpush1.bf16.msra.mxu0 0
    %1861 = vmatprep.subr.bf16.mxu0 0
    %1862 = vmatpush1.bf16.msra.mxu0 0
    %1863 = vmatprep.subr.bf16.mxu0 0
    %1864 = vmatpush1.bf16.msra.mxu0 0
    %1865 = vmatprep.subr.bf16.mxu0 0
    %1866 = vmatpush1.bf16.msra.mxu0 0
    %1867 = vmatprep.subr.bf16.mxu0 0
    %1868 = vmatpush1.bf16.msra.mxu0 0
    %1869 = vmatprep.subr.bf16.mxu0 0
    %1870 = vmatpush1.bf16.msra.mxu0 0
    %1871 = vmatprep.subr.bf16.mxu0 0
    %1872 = vmatpush1.bf16.msra.mxu0 0
    %1873 = vmatprep.subr.bf16.mxu0 0
    %1874 = vmatpush1.bf16.msra.mxu0 0
    %1875 = vmatprep.subr.bf16.mxu0 0
    %1876 = vmatpush1.bf16.msra.mxu0 0
    %1877 = vmatprep.subr.bf16.mxu0 0
    %1878 = vmatpush1.bf16.msra.mxu0 0
    %1879 = vmatprep.subr.bf16.mxu0 0
    %1880 = vmatpush1.bf16.msra.mxu0 0
    %1881 = vmatprep.mubr.bf16.mxu0 0
    %1882 = vmatmul.mubr.bf16.gmra.mrb[0].mxu0 %v1806
    %v1883 = vpop.f32.mrb[0].mxu0
    %v1884 = vadd.f32 0.0, %v1883
    %v1885 = vpop.f32.mrb[0].mxu0
    %v1886 = vpop.f32.mrb[0].mxu0
    %v1887 = vpop.f32.mrb[0].mxu0
    %1888 = vdwg.mxu0
    %v1889 = vadd.f32 %v1759, %v829
    %v1890 = vadd.f32 %v1798, %v833
    %v1891 = vadd.f32 %v1800, %v837
    %v1892 = vadd.f32 %v1889, %v1843
    %v1893 = vxor.u32 %v1892, 2147483648
    %v1894 = vmul.f32 %v1893, 1.442695
    %v1895 = vpow.pop %v1894
    %v1896 = vadd.f32 %v1895, 1.0
    %v1897 = vrcp.pop %v1896
    %v1898 = vmul.f32 1.0, %v1897
    %v1899 = vadd.f32 %v1890, %v1845
    %v1900 = vxor.u32 %v1899, 2147483648
    %v1901 = vmul.f32 %v1900, 1.442695
    %v1902 = vpow.pop %v1901
    %v1903 = vadd.f32 %v1902, 1.0
    %v1904 = vrcp.pop %v1903
    %v1905 = vmul.f32 1.0, %v1904
    %v1906 = vadd.f32 %v1884, %v385
    %v1907 = vmul.f32 %v1898, %v1906
    %v1908 = vadd.f32 %v1891, %v1907
    %v1909 = vtanh.pop %v1908
    %v1910 = vsub.f32 1.0, %v1905
    %v1911 = vmul.f32 %v1910, %v1909
    %v1912 = vmul.f32 %v1905, %v1651
    %v1913 = vadd.f32 %v1911, %v1912
    %v1914 = vld [vmem:[#allocation2 + $0x78] sm:$0xff]
    %v1915 = vld [vmem:[#allocation2 + $0x80] sm:$0xff]
    %v1916 = vld [vmem:[#allocation2 + $0x88] sm:$0xff]
    %v1917 = vadd.f32 %v1914, %v1716
    %v1918 = vxor.u32 %v1917, 2147483648
    %v1919 = vmul.f32 %v1918, 1.442695
    %v1920 = vpow.pop %v1919
    %v1921 = vadd.f32 %v1920, 1.0
    %v1922 = vrcp.pop %v1921
    %v1923 = vmul.f32 1.0, %v1922
    %v1924 = vadd.f32 %v1915, %v1718
    %v1925 = vxor.u32 %v1924, 2147483648
    %v1926 = vmul.f32 %v1925, 1.442695
    %v1927 = vpow.pop %v1926
    %v1928 = vadd.f32 %v1927, 1.0
    %v1929 = vrcp.pop %v1928
    %v1930 = vmul.f32 1.0, %v1929
    %v1931 = vadd.f32 %v1757, %v378
    %v1932 = vmul.f32 %v1923, %v1931
    %v1933 = vadd.f32 %v1916, %v1932
    %v1934 = vtanh.pop %v1933
    %v1935 = vsub.f32 1.0, %v1930
    %v1936 = vmul.f32 %v1935, %v1934
    %v1937 = vmul.f32 %v1930, %v1676
    %v1938 = vadd.f32 %v1936, %v1937
    %v1939 = vpack.c.bf16 %v1938, %v1938
    %v1941 = vsel %vm225, %v1939, 0
    %1943 = vmatprep.subr.bf16.mxu0 %v431
    %1944 = vmatpush1.bf16.msra.mxu0 %v430
    %1945 = vmatprep.subr.bf16.mxu0 %v435
    %1946 = vmatpush1.bf16.msra.mxu0 %v434
    %1947 = vmatprep.subr.bf16.mxu0 0
    %1948 = vmatpush1.bf16.msra.mxu0 0
    %1949 = vmatprep.subr.bf16.mxu0 0
    %1950 = vmatpush1.bf16.msra.mxu0 0
    %1951 = vmatprep.subr.bf16.mxu0 0
    %1952 = vmatpush1.bf16.msra.mxu0 0
    %1953 = vmatprep.subr.bf16.mxu0 0
    %1954 = vmatpush1.bf16.msra.mxu0 0
    %1955 = vmatprep.subr.bf16.mxu0 0
    %1956 = vmatpush1.bf16.msra.mxu0 0
    %1957 = vmatprep.subr.bf16.mxu0 0
    %1958 = vmatpush1.bf16.msra.mxu0 0
    %1959 = vmatprep.subr.bf16.mxu0 0
    %1960 = vmatpush1.bf16.msra.mxu0 0
    %1961 = vmatprep.subr.bf16.mxu0 0
    %1962 = vmatpush1.bf16.msra.mxu0 0
    %1963 = vmatprep.subr.bf16.mxu0 0
    %1964 = vmatpush1.bf16.msra.mxu0 0
    %1965 = vmatprep.subr.bf16.mxu0 0
    %1966 = vmatpush1.bf16.msra.mxu0 0
    %1967 = vmatprep.subr.bf16.mxu0 0
    %1968 = vmatpush1.bf16.msra.mxu0 0
    %1969 = vmatprep.subr.bf16.mxu0 0
    %1970 = vmatpush1.bf16.msra.mxu0 0
    %1971 = vmatprep.subr.bf16.mxu0 0
    %1972 = vmatpush1.bf16.msra.mxu0 0
    %1973 = vmatprep.subr.bf16.mxu0 0
    %1974 = vmatpush1.bf16.msra.mxu0 0
    %1975 = vmatprep.mubr.bf16.mxu0 0
    %1976 = vmatmul.mubr.bf16.gmra.mrb[0].mxu0 %v1941
    %v1977 = vpop.f32.mrb[0].mxu0
    %v1978 = vpop.f32.mrb[0].mxu0
    %v1979 = vadd.f32 0.0, %v1978
    %v1980 = vpop.f32.mrb[0].mxu0
    %v1981 = vpop.f32.mrb[0].mxu0
    %1982 = vdwg.mxu0
    %1983 = vmatprep.subr.bf16.mxu0 %v567
    %1984 = vmatpush1.bf16.msra.mxu0 %v566
    %1985 = vmatprep.subr.bf16.mxu0 %v569
    %1986 = vmatpush1.bf16.msra.mxu0 %v568
    %1987 = vmatprep.subr.bf16.mxu0 0
    %1988 = vmatpush1.bf16.msra.mxu0 0
    %1989 = vmatprep.subr.bf16.mxu0 0
    %1990 = vmatpush1.bf16.msra.mxu0 0
    %1991 = vmatprep.subr.bf16.mxu0 0
    %1992 = vmatpush1.bf16.msra.mxu0 0
    %1993 = vmatprep.subr.bf16.mxu0 0
    %1994 = vmatpush1.bf16.msra.mxu0 0
    %1995 = vmatprep.subr.bf16.mxu0 0
    %1996 = vmatpush1.bf16.msra.mxu0 0
    %1997 = vmatprep.subr.bf16.mxu0 0
    %1998 = vmatpush1.bf16.msra.mxu0 0
    %1999 = vmatprep.subr.bf16.mxu0 0
    %2000 = vmatpush1.bf16.msra.mxu0 0
    %2001 = vmatprep.subr.bf16.mxu0 0
    %2002 = vmatpush1.bf16.msra.mxu0 0
    %2003 = vmatprep.subr.bf16.mxu0 0
    %2004 = vmatpush1.bf16.msra.mxu0 0
    %2005 = vmatprep.subr.bf16.mxu0 0
    %2006 = vmatpush1.bf16.msra.mxu0 0
    %2007 = vmatprep.subr.bf16.mxu0 0
    %2008 = vmatpush1.bf16.msra.mxu0 0
    %2009 = vmatprep.subr.bf16.mxu0 0
    %2010 = vmatpush1.bf16.msra.mxu0 0
    %2011 = vmatprep.subr.bf16.mxu0 0
    %2012 = vmatpush1.bf16.msra.mxu0 0
    %2013 = vmatprep.subr.bf16.mxu0 0
    %2014 = vmatpush1.bf16.msra.mxu0 0
    %2015 = vmatprep.mubr.bf16.mxu0 0
    %2016 = vmatmul.mubr.bf16.gmra.mrb[0].mxu0 %v1941
    %v2017 = vpop.f32.mrb[0].mxu0
    %v2018 = vadd.f32 0.0, %v2017
    %v2019 = vpop.f32.mrb[0].mxu0
    %v2020 = vadd.f32 0.0, %v2019
    %v2021 = vpop.f32.mrb[0].mxu0
    %v2022 = vpop.f32.mrb[0].mxu0
    %2023 = vdwg.mxu0
    %v2024 = vpack.c.bf16 %v1913, %v1913
    %v2026 = vsel %vm225, %v2024, 0
    %2028 = vmatprep.subr.bf16.mxu0 %v730
    %2029 = vmatpush1.bf16.msra.mxu0 %v729
    %2030 = vmatprep.subr.bf16.mxu0 %v733
    %2031 = vmatpush1.bf16.msra.mxu0 %v732
    %2032 = vmatprep.subr.bf16.mxu0 0
    %2033 = vmatpush1.bf16.msra.mxu0 0
    %2034 = vmatprep.subr.bf16.mxu0 0
    %2035 = vmatpush1.bf16.msra.mxu0 0
    %2036 = vmatprep.subr.bf16.mxu0 0
    %2037 = vmatpush1.bf16.msra.mxu0 0
    %2038 = vmatprep.subr.bf16.mxu0 0
    %2039 = vmatpush1.bf16.msra.mxu0 0
    %2040 = vmatprep.subr.bf16.mxu0 0
    %2041 = vmatpush1.bf16.msra.mxu0 0
    %2042 = vmatprep.subr.bf16.mxu0 0
    %2043 = vmatpush1.bf16.msra.mxu0 0
    %2044 = vmatprep.subr.bf16.mxu0 0
    %2045 = vmatpush1.bf16.msra.mxu0 0
    %2046 = vmatprep.subr.bf16.mxu0 0
    %2047 = vmatpush1.bf16.msra.mxu0 0
    %2048 = vmatprep.subr.bf16.mxu0 0
    %2049 = vmatpush1.bf16.msra.mxu0 0
    %2050 = vmatprep.subr.bf16.mxu0 0
    %2051 = vmatpush1.bf16.msra.mxu0 0
    %2052 = vmatprep.subr.bf16.mxu0 0
    %2053 = vmatpush1.bf16.msra.mxu0 0
    %2054 = vmatprep.subr.bf16.mxu0 0
    %2055 = vmatpush1.bf16.msra.mxu0 0
    %2056 = vmatprep.subr.bf16.mxu0 0
    %2057 = vmatpush1.bf16.msra.mxu0 0
    %2058 = vmatprep.subr.bf16.mxu0 0
    %2059 = vmatpush1.bf16.msra.mxu0 0
    %2060 = vmatprep.mubr.bf16.mxu0 0
    %2061 = vmatmul.mubr.bf16.gmra.mrb[0].mxu0 %v2026
    %v2062 = vpop.f32.mrb[0].mxu0
    %v2063 = vadd.f32 0.0, %v2062
    %v2064 = vpop.f32.mrb[0].mxu0
    %v2065 = vadd.f32 0.0, %v2064
    %v2066 = vpop.f32.mrb[0].mxu0
    %v2067 = vpop.f32.mrb[0].mxu0
    %2068 = vdwg.mxu0
    %2069 = vmatprep.subr.bf16.mxu0 0
    %2070 = vmatpush1.bf16.msra.mxu0 %v731
    %2071 = vmatprep.subr.bf16.mxu0 0
    %2072 = vmatpush1.bf16.msra.mxu0 %v734
    %2073 = vmatprep.subr.bf16.mxu0 0
    %2074 = vmatpush1.bf16.msra.mxu0 0
    %2075 = vmatprep.subr.bf16.mxu0 0
    %2076 = vmatpush1.bf16.msra.mxu0 0
    %2077 = vmatprep.subr.bf16.mxu0 0
    %2078 = vmatpush1.bf16.msra.mxu0 0
    %2079 = vmatprep.subr.bf16.mxu0 0
    %2080 = vmatpush1.bf16.msra.mxu0 0
    %2081 = vmatprep.subr.bf16.mxu0 0
    %2082 = vmatpush1.bf16.msra.mxu0 0
    %2083 = vmatprep.subr.bf16.mxu0 0
    %2084 = vmatpush1.bf16.msra.mxu0 0
    %2085 = vmatprep.subr.bf16.mxu0 0
    %2086 = vmatpush1.bf16.msra.mxu0 0
    %2087 = vmatprep.subr.bf16.mxu0 0
    %2088 = vmatpush1.bf16.msra.mxu0 0
    %2089 = vmatprep.subr.bf16.mxu0 0
    %2090 = vmatpush1.bf16.msra.mxu0 0
    %2091 = vmatprep.subr.bf16.mxu0 0
    %2092 = vmatpush1.bf16.msra.mxu0 0
    %2093 = vmatprep.subr.bf16.mxu0 0
    %2094 = vmatpush1.bf16.msra.mxu0 0
    %2095 = vmatprep.subr.bf16.mxu0 0
    %2096 = vmatpush1.bf16.msra.mxu0 0
    %2097 = vmatprep.subr.bf16.mxu0 0
    %2098 = vmatpush1.bf16.msra.mxu0 0
    %2099 = vmatprep.subr.bf16.mxu0 0
    %2100 = vmatpush1.bf16.msra.mxu0 0
    %2101 = vmatprep.mubr.bf16.mxu0 0
    %2102 = vmatmul.mubr.bf16.gmra.mrb[0].mxu0 %v2026
    %v2103 = vpop.f32.mrb[0].mxu0
    %v2104 = vadd.f32 0.0, %v2103
    %v2105 = vpop.f32.mrb[0].mxu0
    %v2106 = vpop.f32.mrb[0].mxu0
    %v2107 = vpop.f32.mrb[0].mxu0
    %2108 = vdwg.mxu0
    %v2109 = vadd.f32 %v1979, %v829
    %v2110 = vadd.f32 %v2018, %v833
    %v2111 = vadd.f32 %v2020, %v837
    %v2112 = vadd.f32 %v2109, %v2063
    %v2113 = vxor.u32 %v2112, 2147483648
    %v2114 = vmul.f32 %v2113, 1.442695
    %v2115 = vpow.pop %v2114
    %v2116 = vadd.f32 %v2115, 1.0
    %v2117 = vrcp.pop %v2116
    %v2118 = vmul.f32 1.0, %v2117
    %v2119 = vadd.f32 %v2110, %v2065
    %v2120 = vxor.u32 %v2119, 2147483648
    %v2121 = vmul.f32 %v2120, 1.442695
    %v2122 = vpow.pop %v2121
    %v2123 = vadd.f32 %v2122, 1.0
    %v2124 = vrcp.pop %v2123
    %v2125 = vmul.f32 1.0, %v2124
    %v2126 = vadd.f32 %v2104, %v385
    %v2127 = vmul.f32 %v2118, %v2126
    %v2128 = vadd.f32 %v2111, %v2127
    %v2129 = vtanh.pop %v2128
    %v2130 = vsub.f32 1.0, %v2125
    %v2131 = vmul.f32 %v2130, %v2129
    %v2132 = vmul.f32 %v2125, %v1913
    %v2133 = vadd.f32 %v2131, %v2132
    %v2134 = vpack.c.bf16 %v1127, %v865
    %v2135 = vpack.c.bf16 %v1651, %v1389
    %v2136 = vpack.c.bf16 %v2133, %v1913
    %v2137 = vld [vmem:[%s11] sm:$0xf]
    %v2138 = vld [vmem:[%s11 + $0x4] sm:$0xf]
    %v2139 = vld [vmem:[%s11 + $0x8] sm:$0xf]
    %v2140 = vld [vmem:[%s11 + $0xc] sm:$0xf]
    %v2141 = vld [vmem:[%s11 + $0x10] sm:$0xf]
    %v2142 = vld [vmem:[%s11 + $0x14] sm:$0xf]
    %v2143 = vld [vmem:[%s11 + $0x18] sm:$0xf]
    %v2144 = vld [vmem:[%s11 + $0x1c] sm:$0xf]
    %v2145 = vld [vmem:[%s11 + $0x20] sm:$0xf]
    %v2146 = vld [vmem:[%s11 + $0x24] sm:$0xf]
    %v2147 = vld [vmem:[%s11 + $0x28] sm:$0xf]
    %v2148 = vld [vmem:[%s11 + $0x2c] sm:$0xf]
    %v2149 = vld [vmem:[%s11 + $0x30] sm:$0xf]
    %v2150 = vld [vmem:[%s11 + $0x34] sm:$0xf]
    %v2151 = vld [vmem:[%s11 + $0x38] sm:$0xf]
    %v2152 = vld [vmem:[%s11 + $0x3c] sm:$0xf]
    %v2153 = vld [vmem:[%s12] sm:$0x1]
    %v2155 = vlaneseq
    %v2156 = vshrl.u32 %v2155, 7
    %v2157 = vsub.s32 0, %v2156
    %v2158 = vrot.slane %v2153, %v2157
    %v2176 = vunpack.c.l.b16 %v2137
    %v2177 = vunpack.c.l.b16 %v2138
    %v2178 = vunpack.c.l.b16 %v2139
    %v2179 = vunpack.c.l.b16 %v2140
    %v2180 = vunpack.c.l.b16 %v2141
    %v2181 = vunpack.c.l.b16 %v2142
    %v2182 = vunpack.c.l.b16 %v2143
    %v2183 = vunpack.c.l.b16 %v2144
    %v2184 = vunpack.c.l.b16 %v2145
    %v2185 = vunpack.c.l.b16 %v2146
    %v2186 = vunpack.c.l.b16 %v2147
    %v2187 = vunpack.c.l.b16 %v2148
    %v2188 = vunpack.c.l.b16 %v2149
    %v2189 = vunpack.c.l.b16 %v2150
    %v2190 = vunpack.c.l.b16 %v2151
    %v2191 = vunpack.c.l.b16 %v2152
    %v2192 = vpack.c.b16 %v2177, %v2176
    %v2193 = vpack.c.b16 %v2179, %v2178
    %v2194 = vpack.c.b16 %v2181, %v2180
    %v2195 = vpack.c.b16 %v2183, %v2182
    %v2196 = vpack.c.b16 %v2185, %v2184
    %v2197 = vpack.c.b16 %v2187, %v2186
    %v2198 = vpack.c.b16 %v2189, %v2188
    %v2199 = vpack.c.b16 %v2191, %v2190
    %2208 = vmatprep.subr.bf16.mxu0 0
    %2209 = vmatpush1.bf16.msra.mxu0 %v2192
    %2210 = vmatprep.subr.bf16.mxu0 0
    %2211 = vmatpush1.bf16.msra.mxu0 %v2193
    %2212 = vmatprep.subr.bf16.mxu0 0
    %2213 = vmatpush1.bf16.msra.mxu0 %v2194
    %2214 = vmatprep.subr.bf16.mxu0 0
    %2215 = vmatpush1.bf16.msra.mxu0 %v2195
    %2216 = vmatprep.subr.bf16.mxu0 0
    %2217 = vmatpush1.bf16.msra.mxu0 %v2196
    %2218 = vmatprep.subr.bf16.mxu0 0
    %2219 = vmatpush1.bf16.msra.mxu0 %v2197
    %2220 = vmatprep.subr.bf16.mxu0 0
    %2221 = vmatpush1.bf16.msra.mxu0 %v2198
    %2222 = vmatprep.subr.bf16.mxu0 0
    %2223 = vmatpush1.bf16.msra.mxu0 %v2199
    %2224 = vmatprep.subr.bf16.mxu0 0
    %2225 = vmatpush1.bf16.msra.mxu0 0
    %2226 = vmatprep.subr.bf16.mxu0 0
    %2227 = vmatpush1.bf16.msra.mxu0 0
    %2228 = vmatprep.subr.bf16.mxu0 0
    %2229 = vmatpush1.bf16.msra.mxu0 0
    %2230 = vmatprep.subr.bf16.mxu0 0
    %2231 = vmatpush1.bf16.msra.mxu0 0
    %2232 = vmatprep.subr.bf16.mxu0 0
    %2233 = vmatpush1.bf16.msra.mxu0 0
    %2234 = vmatprep.subr.bf16.mxu0 0
    %2235 = vmatpush1.bf16.msra.mxu0 0
    %2236 = vmatprep.subr.bf16.mxu0 0
    %2237 = vmatpush1.bf16.msra.mxu0 0
    %2238 = vmatprep.subr.bf16.mxu0 0
    %2239 = vmatpush1.bf16.msra.mxu0 0
    %2240 = vmatprep.mubr.bf16.mxu0 0
    %2241 = vmatmul.mubr.bf16.gmra.mrb[0].mxu0 %v2134
    %v2242 = vpop.f32.mrb[0].mxu0
    %v2243 = vadd.f32 %v2158, %v2242
    %v2244 = vpop.f32.mrb[0].mxu0
    %v2245 = vpop.f32.mrb[0].mxu0
    %v2246 = vadd.f32 %v2158, %v2245
    %v2247 = vpop.f32.mrb[0].mxu0
    %2248 = vmatprep.mubr.bf16.mxu0 0
    %2249 = vmatmul.mubr.bf16.gmra.mrb[0].mxu0 %v2135
    %v2250 = vpop.f32.mrb[0].mxu0
    %v2251 = vadd.f32 %v2158, %v2250
    %v2252 = vpop.f32.mrb[0].mxu0
    %v2253 = vpop.f32.mrb[0].mxu0
    %v2254 = vadd.f32 %v2158, %v2253
    %v2255 = vpop.f32.mrb[0].mxu0
    %2256 = vmatprep.mubr.bf16.mxu0 0
    %2257 = vmatmul.mubr.bf16.gmra.mrb[0].mxu0 %v2136
    %v2258 = vpop.f32.mrb[0].mxu0
    %v2259 = vadd.f32 %v2158, %v2258
    %v2260 = vpop.f32.mrb[0].mxu0
    %v2261 = vpop.f32.mrb[0].mxu0
    %v2262 = vadd.f32 %v2158, %v2261
    %v2263 = vpop.f32.mrb[0].mxu0
    %2264 = vdwg.mxu0
    %2265 = vst [vmem:[%s13] sm:$0xff] %v2243
    %2266 = vst [vmem:[%s13 + $0x8] sm:$0xff] %v2246
    %2267 = vst [vmem:[%s13 + $0x10] sm:$0xff] %v2251
    %2268 = vst [vmem:[%s13 + $0x18] sm:$0xff] %v2254
    %2269 = vst [vmem:[%s13 + $0x20] sm:$0xff] %v2259
    %2270 = vst [vmem:[%s13 + $0x28] sm:$0xff] %v2262
    %2271 = vst [vmem:[#allocation3] sm:$0xff] %v1938
    %s2272 = scalar_lea.vmem [#allocation3], 8
    %2273 = vst [vmem:[%s2272] sm:$0xff] %v2133
    // Predicated region
    $region54: #{multilayer_rnn_actor_forward.1} parent=1 // pred_check
      _
    $region55: #{multilayer_rnn_actor_forward.1} parent=1 // pred_check_branch
      %2275 = sbr.rel (0) target = $region57
    $region56: #{multilayer_rnn_actor_forward.1} parent=1 // pred_region
      _
    $region57: #{multilayer_rnn_actor_forward.1} parent=1 // pred_fallthru
      _
    // Predicated region
    $region58: #{multilayer_rnn_actor_forward.1} parent=1 // pred_check
      _
    $region59: #{multilayer_rnn_actor_forward.1} parent=1 // pred_check_branch
      %2277 = sbr.rel (0) target = $region61
    $region60: #{multilayer_rnn_actor_forward.1} parent=1 // pred_region
      %s2279 = ssub.s32 256, 256
      %2280 = vsyncadd [#allocation4], %s2279
      %s2281 = sshll.u32 [#allocation3], 4
      %s2282 = int_to_ptr.vmem [resolvable:$true] %s2281
      %2287 = dma.vmem_to_hbm [thread:$0]  %s2282, 256, %s14, [#allocation4], 128, 128, 8
    $region61: #{multilayer_rnn_actor_forward.1} parent=1 // pred_fallthru
      _
    // Predicated region
    $region62: #{multilayer_rnn_actor_forward.1} parent=1 // pred_check
      _
    $region63: #{multilayer_rnn_actor_forward.1} parent=1 // pred_check_branch
      %2289 = sbr.rel (0) target = $region65
    $region64: #{multilayer_rnn_actor_forward.1} parent=1 // pred_region
      _
    $region65: #{multilayer_rnn_actor_forward.1} parent=1 // pred_fallthru
      _
    // Predicated region
    $region66: #{multilayer_rnn_actor_forward.1} parent=1 // pred_check
      _
    $region67: #{multilayer_rnn_actor_forward.1} parent=1 // pred_check_branch
      %2291 = sbr.rel (0) target = $region69
    $region68: #{multilayer_rnn_actor_forward.1} parent=1 // pred_region
      %2292 = dma.done [#allocation4], 256
    $region69: #{multilayer_rnn_actor_forward.1} parent=1 // pred_fallthru
      _
    %2293 = vsyncpa [#allocation4], 1

</llo_original>
